<compile_context>
chip_gen: v7x
topology: tpu7x:2x2x1
jax: 0.10.0
libtpu: 0.0.40
codegen_flags: <defaults>
</compile_context>

<pallas_src>
import math
import re
from functools import partial

import jax
import jax.numpy as jnp
from jax.experimental import pallas as pl
from jax.experimental.pallas import tpu as pltpu

# ----------------------------- config (small synthetic CLIP text model) -----
VOCAB = 512
HIDDEN = 128
HEADS = 2
HEAD_DIM = HIDDEN // HEADS
INTERMEDIATE = 4 * HIDDEN
LAYERS = 2
SEQ = 77            # 75 prompt tokens + BOS + EOS (webui chunk size)
SEQ_PAD = 128       # (8,128)-aligned sequence length used inside the kernel
EPS = 1e-5
NEG_INF = -1e9      # finite mask value (avoids -inf after max-subtraction)

WEIGHT_NAMES = ('ln1_g', 'ln1_b', 'wqkv', 'bqkv', 'wo', 'bo',
                'ln2_g', 'ln2_b', 'w1', 'b1', 'w2', 'b2')

# ----------------------------- prompt attention parsing (host python) -------
re_attention = re.compile(r"""
\\\(|\\\)|\\\[|\\]|\\\\|\\|\(|\[|:([+-]?[.\d]+)\)|
\)|]|[^\\()\[\]:]+|:
""", re.X)


def parse_prompt_attention(text):
    res = []
    round_brackets = []
    square_brackets = []
    round_bracket_multiplier = 1.1
    square_bracket_multiplier = 1 / 1.1

    def multiply_range(start_position, multiplier):
        for p in range(start_position, len(res)):
            res[p][1] *= multiplier

    for m in re_attention.finditer(text):
        text_m = m.group(0)
        weight = m.group(1)
        if text_m.startswith('\\'):
            res.append([text_m[1:], 1.0])
        elif text_m == '(':
            round_brackets.append(len(res))
        elif text_m == '[':
            square_brackets.append(len(res))
        elif weight is not None and len(round_brackets) > 0:
            multiply_range(round_brackets.pop(), float(weight))
        elif text_m == ')' and len(round_brackets) > 0:
            multiply_range(round_brackets.pop(), round_bracket_multiplier)
        elif text_m == ']' and len(square_brackets) > 0:
            multiply_range(square_brackets.pop(), square_bracket_multiplier)
        else:
            res.append([text_m, 1.0])
    for pos in round_brackets:
        multiply_range(pos, round_bracket_multiplier)
    for pos in square_brackets:
        multiply_range(pos, square_bracket_multiplier)
    if len(res) == 0:
        res = [['', 1.0]]
    i = 0
    while i + 1 < len(res):
        if res[i][1] == res[i + 1][1]:
            res[i][0] += res[i + 1][0]
            res.pop(i + 1)
        else:
            i += 1
    return res


# ----------------------------- toy tokenizer (host python) ------------------
# TODO(synk): the real CLIPTokenizer BPE vocab cannot be reproduced in-script;
# this deterministic per-character tokenizer stands in for it.
class ToyCLIPTokenizer:
    def __init__(self, vocab_size=VOCAB):
        self.vocab_size = vocab_size
        self._char_vocab = vocab_size - 2
        self.bos_token_id = vocab_size - 2
        self.eos_token_id = vocab_size - 1
        self.comma_token_id = ord(',') % self._char_vocab

    def _encode(self, text):
        return [ord(c) % self._char_vocab for c in text]

    def __call__(self, texts, truncation=False, add_special_tokens=False):
        return {'input_ids': [self._encode(t) for t in texts]}


# ----------------------------- fused Pallas kernel --------------------------
def _ln(x, g, b):
    # E[x^2] - E[x]^2 form: the two cross-lane reductions are independent.
    mean = jnp.mean(x, axis=-1, keepdims=True)
    mean_sq = jnp.mean(x * x, axis=-1, keepdims=True)
    var = mean_sq - mean * mean
    return (x - mean) * jax.lax.rsqrt(var + EPS) * g + b


def _fused_clip_kernel(x_ref, m_ref, mask_ref,
                       ln1_g_ref, ln1_b_ref, wqkv_ref, bqkv_ref, wo_ref, bo_ref,
                       ln2_g_ref, ln2_b_ref, w1_ref, b1_ref, w2_ref, b2_ref,
                       fg_ref, fb_ref,
                       zm_ref, sb_ref, sa_ref,
                       x_acc):
    l = pl.program_id(1)
    last_l = pl.num_programs(1) - 1

    @pl.when(l == 0)
    def _():
        x_acc[...] = x_ref[0]                         # load embeddings once per item

    x = x_acc[...]                                    # (SEQ_PAD, D) f32
    mask = mask_ref[...]                              # hoisted causal + key-pad mask
    q_scale = jnp.float32(HEAD_DIM ** -0.5)

    # -------- attention block: LayerNorm1 + causal MHA --------
    h = _ln(x, ln1_g_ref[0], ln1_b_ref[0])
    qkv = jnp.dot(h.astype(jnp.bfloat16), wqkv_ref[0],
                  preferred_element_type=jnp.float32) + bqkv_ref[0]
    q = qkv[:, 0:HIDDEN] * q_scale                    # CLIP scales q after bias
    k = qkv[:, HIDDEN:2 * HIDDEN]
    v = qkv[:, 2 * HIDDEN:3 * HIDDEN]

    wo = wo_ref[0]                                    # (D, D) bf16
    attn = jnp.zeros_like(x)                          # (SEQ_PAD, D) f32 accumulator
    for hd in range(HEADS):                           # static head loop
        lo = hd * HEAD_DIM
        qh = q[:, lo:lo + HEAD_DIM].astype(jnp.bfloat16)
        kh = k[:, lo:lo + HEAD_DIM].astype(jnp.bfloat16)
        vh = v[:, lo:lo + HEAD_DIM].astype(jnp.bfloat16)
        scores = jax.lax.dot_general(
            qh, kh, (((1,), (1,)), ((), ())),
            preferred_element_type=jnp.float32) + mask
        s_max = jnp.max(scores, axis=-1, keepdims=True)
        e = jnp.exp(scores - s_max)                   # f32 softmax
        inv = pl.reciprocal(jnp.sum(e, axis=-1, keepdims=True), approx=True)
        probs = (e * inv).astype(jnp.bfloat16)
        ctx_h = jnp.dot(probs, vh, preferred_element_type=jnp.float32)
        # Per-head output projection accumulation: ctx_h @ wo[lo:lo+HD, :]
        # (identical math to concat(ctx) @ wo, without the lane concat).
        attn = attn + jnp.dot(ctx_h.astype(jnp.bfloat16), wo[lo:lo + HEAD_DIM, :],
                              preferred_element_type=jnp.float32)
    x = x + attn + bo_ref[0]                          # residual

    # -------- MLP block: LayerNorm2 + quickGELU MLP --------
    h = _ln(x, ln2_g_ref[0], ln2_b_ref[0])
    h1 = jnp.dot(h.astype(jnp.bfloat16), w1_ref[0],
                 preferred_element_type=jnp.float32) + b1_ref[0]
    h1 = h1 * jax.nn.sigmoid(1.702 * h1)              # quick_gelu (f32, EUP)
    h2 = jnp.dot(h1.astype(jnp.bfloat16), w2_ref[0],
                 preferred_element_type=jnp.float32) + b2_ref[0]
    x = x + h2                                        # residual
    x_acc[...] = x                                    # carry to next layer step

    # -------- finalize at the last layer: final LN + multipliers + sums -----
    @pl.when(l == last_l)
    def _():
        z = _ln(x, fg_ref[...], fb_ref[...])
        zm = z * m_ref[0]                             # (S,1) lane-broadcast multipliers
        zm_ref[0] = zm
        # Exclude padded rows (>= SEQ) from the global-mean rescale sums.
        row = jax.lax.broadcasted_iota(jnp.int32, (SEQ_PAD, 1), 0)
        valid = (row < SEQ).astype(jnp.float32)
        sb_ref[0] = jnp.sum(z * valid, axis=0, keepdims=True)
        sa_ref[0] = jnp.sum(zm * valid, axis=0, keepdims=True)


# ----------------------------- Pallas wrappers ------------------------------
def _fused_clip_call(x, m, mask, layer_ws, final_g, final_b):
    N, S_pad, D = x.shape
    L = layer_ws[0].shape[0]

    seq_spec = pl.BlockSpec((1, S_pad, D), lambda n, l: (n, 0, 0))
    m_spec = pl.BlockSpec((1, S_pad, 1), lambda n, l: (n, 0, 0))
    mask_spec = pl.BlockSpec((S_pad, S_pad), lambda n, l: (0, 0))
    sum_spec = pl.BlockSpec((1, 1, D), lambda n, l: (n, 0, 0))

    def layer_spec(arr):
        # Stacked per-layer weights: stream one layer per L-step (default
        # double-buffering pipelines next layer's DMA under current compute).
        return pl.BlockSpec((1,) + arr.shape[1:], lambda n, l: (l, 0, 0))

    def const_spec(arr):
        nd = arr.ndim
        return pl.BlockSpec(arr.shape, lambda n, l, _nd=nd: (0,) * _nd)

    in_specs = ([seq_spec, m_spec, mask_spec]
                + [layer_spec(w) for w in layer_ws]
                + [const_spec(final_g), const_spec(final_b)])
    out_shape = (jax.ShapeDtypeStruct((N, S_pad, D), jnp.float32),
                 jax.ShapeDtypeStruct((N, 1, D), jnp.float32),
                 jax.ShapeDtypeStruct((N, 1, D), jnp.float32))
    out_specs = (seq_spec, sum_spec, sum_spec)

    return pl.pallas_call(
        _fused_clip_kernel,
        out_shape=out_shape,
        grid=(N, L),
        in_specs=in_specs,
        out_specs=out_specs,
        scratch_shapes=[pltpu.VMEM((S_pad, D), jnp.float32)],
        compiler_params=pltpu.CompilerParams(
            dimension_semantics=("parallel", "arbitrary"),
            vmem_limit_bytes=32 * 1024 * 1024),   # v7x-safe scoped VMEM budget
    )(x, m, mask, *layer_ws, final_g, final_b)


@partial(jax.jit, static_argnames=('n_layers', 'n_chunks', 'batch'))
def _clip_forward_all(tokens, mult, params, n_layers, n_chunks, batch):
    """All 75-token chunks of the whole prompt batch in ONE kernel launch.

    tokens/mult: (n_chunks*batch, 77). Returns (batch, n_chunks*77, HIDDEN).
    """
    N, S = tokens.shape
    # embedding gather + positional add stay in plain JAX (glue, not hot path)
    x = jnp.take(params['tok_emb'], tokens, axis=0) + params['pos_emb'][None, :S, :]
    # Pad the sequence to the (8,128)-aligned kernel length. Padded key columns
    # are blocked by the additive mask; padded rows are dropped again below.
    x = jnp.pad(x, ((0, 0), (0, SEQ_PAD - S), (0, 0)))
    m = jnp.pad(mult, ((0, 0), (0, SEQ_PAD - S)), constant_values=1.0)[..., None]
    row = jnp.arange(SEQ_PAD)[:, None]
    col = jnp.arange(SEQ_PAD)[None, :]
    mask = jnp.where((col > row) | (col >= S), NEG_INF, 0.0).astype(jnp.float32)

    # only the layers whose output is actually used (skips the dead last layer
    # in penultimate mode)
    layer_ws = tuple(params[name][:n_layers] for name in WEIGHT_NAMES)
    zm, sb, sa = _fused_clip_call(x, m, mask, layer_ws,
                                  params['final_ln_g'], params['final_ln_b'])

    # webui rescale: z *= original_mean / new_mean, computed per chunk-call
    # over that chunk's whole batch (ratio of sums == ratio of means).
    sbc = sb.reshape(n_chunks, batch, -1).sum(axis=(1, 2))       # (n_chunks,)
    sac = sa.reshape(n_chunks, batch, -1).sum(axis=(1, 2))
    scale = sbc / sac
    z = zm[:, :S, :].reshape(n_chunks, batch, S, HIDDEN) * scale[:, None, None, None]
    # chunks concatenate along the sequence axis, like the torch module
    return jnp.transpose(z, (1, 0, 2, 3)).reshape(batch, n_chunks * S, HIDDEN)


# ----------------------------- params ----------------------------------------
def init_params(key):
    keys = jax.random.split(key, 2 + LAYERS)

    def rnd(k, shape, scale=0.02, dtype=jnp.float32):
        return (jax.random.normal(k, shape, jnp.float32) * scale).astype(dtype)

    params = {
        'tok_emb': rnd(keys[0], (VOCAB, HIDDEN), 0.02),
        'pos_emb': rnd(keys[1], (SEQ, HIDDEN), 0.01),
        'final_ln_g': jnp.ones((1, HIDDEN), jnp.float32),
        'final_ln_b': jnp.zeros((1, HIDDEN), jnp.float32),
        # stacked per-layer params (leading axis = layer)
        'ln1_g': jnp.ones((LAYERS, 1, HIDDEN), jnp.float32),
        'ln1_b': jnp.zeros((LAYERS, 1, HIDDEN), jnp.float32),
        'ln2_g': jnp.ones((LAYERS, 1, HIDDEN), jnp.float32),
        'ln2_b': jnp.zeros((LAYERS, 1, HIDDEN), jnp.float32),
        'bqkv': jnp.zeros((LAYERS, 1, 3 * HIDDEN), jnp.float32),
        'bo': jnp.zeros((LAYERS, 1, HIDDEN), jnp.float32),
        'b1': jnp.zeros((LAYERS, 1, INTERMEDIATE), jnp.float32),
        'b2': jnp.zeros((LAYERS, 1, HIDDEN), jnp.float32),
    }
    wqkv, wo, w1, w2 = [], [], [], []
    for l in range(LAYERS):
        lk = jax.random.split(keys[2 + l], 4)
        wqkv.append(rnd(lk[0], (HIDDEN, 3 * HIDDEN), 0.02, jnp.bfloat16))
        wo.append(rnd(lk[1], (HIDDEN, HIDDEN), 0.02, jnp.bfloat16))
        w1.append(rnd(lk[2], (HIDDEN, INTERMEDIATE), 0.02, jnp.bfloat16))
        w2.append(rnd(lk[3], (INTERMEDIATE, HIDDEN), 0.02, jnp.bfloat16))
    params['wqkv'] = jnp.stack(wqkv)
    params['wo'] = jnp.stack(wo)
    params['w1'] = jnp.stack(w1)
    params['w2'] = jnp.stack(w2)
    return params


# ----------------------------- the embedder (mirrors torch module) ----------
class WebUIFrozenCLIPEmbedderPallas:
    def __init__(self, params, tokenizer, layer='penultimate'):
        self.tokenizer = tokenizer
        self.params = params
        self.layer = layer
        self.comma_token = tokenizer.comma_token_id
        self.comma_padding_backtrack = 20

    def _n_layers(self):
        return LAYERS - 1 if self.layer == 'penultimate' else LAYERS

    def tokenize(self, texts):
        return self.tokenizer(texts, truncation=False,
                              add_special_tokens=False)['input_ids']

    def tokenize_line(self, line):
        parsed = parse_prompt_attention(line)
        tokenized = self.tokenize([text for text, _ in parsed])
        remade_tokens = []
        multipliers = []
        last_comma = -1
        for tokens, (text, weight) in zip(tokenized, parsed):
            i = 0
            while i < len(tokens):
                token = tokens[i]
                if token == self.comma_token:
                    last_comma = len(remade_tokens)
                elif (self.comma_padding_backtrack != 0
                      and max(len(remade_tokens), 1) % 75 == 0
                      and (last_comma != -1)
                      and (len(remade_tokens) - last_comma
                           <= self.comma_padding_backtrack)):
                    last_comma += 1
                    reloc_tokens = remade_tokens[last_comma:]
                    reloc_mults = multipliers[last_comma:]
                    remade_tokens = remade_tokens[:last_comma]
                    length = len(remade_tokens)
                    rem = int(math.ceil(length / 75)) * 75 - length
                    remade_tokens += ([self.tokenizer.eos_token_id] * rem
                                      + reloc_tokens)
                    multipliers = (multipliers[:last_comma]
                                   + [1.0] * rem + reloc_mults)
                remade_tokens.append(token)
                multipliers.append(weight)
                i += 1
        token_count = len(remade_tokens)
        prompt_target_length = math.ceil(max(token_count, 1) / 75) * 75
        tokens_to_add = prompt_target_length - len(remade_tokens)
        remade_tokens = remade_tokens + [self.tokenizer.eos_token_id] * tokens_to_add
        multipliers = multipliers + [1.0] * tokens_to_add
        return (remade_tokens, multipliers, token_count)

    def process_text(self, texts):
        remade_batch_tokens = []
        token_count = 0
        cache = {}
        batch_multipliers = []
        for line in texts:
            if line in cache:
                remade_tokens, multipliers = cache[line]
            else:
                remade_tokens, multipliers, current_token_count = \
                    self.tokenize_line(line)
                token_count = max(current_token_count, token_count)
                cache[line] = (remade_tokens, multipliers)
            remade_batch_tokens.append(remade_tokens)
            batch_multipliers.append(multipliers)
        return (batch_multipliers, remade_batch_tokens, token_count)

    def process_tokens(self, remade_batch_tokens, batch_multipliers):
        # Single-chunk path (API parity with the torch module).
        bos = self.tokenizer.bos_token_id
        eos = self.tokenizer.eos_token_id
        remade_batch_tokens = [[bos] + x[:75] + [eos] for x in remade_batch_tokens]
        batch_multipliers = [[1.0] + x[:75] + [1.0] for x in batch_multipliers]
        batch_multipliers = [x + [1.0] * max(SEQ - len(x), 0)
                             for x in batch_multipliers]
        tokens = jnp.asarray(remade_batch_tokens, dtype=jnp.int32)
        mult = jnp.asarray(batch_multipliers, dtype=jnp.float32)
        return _clip_forward_all(tokens, mult, self.params,
                                 n_layers=self._n_layers(),
                                 n_chunks=1, batch=tokens.shape[0])

    def forward(self, text):
        batch_multipliers, remade_batch_tokens, _ = self.process_text(text)
        B = len(remade_batch_tokens)
        n_chunks = max(max(len(x) for x in remade_batch_tokens) // 75, 1)
        bos = self.tokenizer.bos_token_id
        eos = self.tokenizer.eos_token_id
        # Batch ALL 75-token chunks into a single kernel launch (one dispatch,
        # no per-chunk device concatenation).
        chunk_tokens = []
        chunk_mults = []
        for c in range(n_chunks):
            for j in range(B):
                t = remade_batch_tokens[j][c * 75:(c + 1) * 75]
                mlt = batch_multipliers[j][c * 75:(c + 1) * 75]
                if len(t) == 0:
                    t = [eos] * 75
                    mlt = [1.0] * 75
                t = [bos] + t[:75] + [eos]
                mlt = [1.0] + mlt[:75] + [1.0]
                mlt = mlt + [1.0] * max(SEQ - len(mlt), 0)
                chunk_tokens.append(t)
                chunk_mults.append(mlt)
        tokens = jnp.asarray(chunk_tokens, dtype=jnp.int32)    # (n_chunks*B, 77)
        mult = jnp.asarray(chunk_mults, dtype=jnp.float32)
        return _clip_forward_all(tokens, mult, self.params,
                                 n_layers=self._n_layers(),
                                 n_chunks=n_chunks, batch=B)

    def encode(self, text):
        return self.forward(text)

    __call__ = forward


# ----------------------------- main ------------------------------------------
if __name__ == "__main__":
    key = jax.random.PRNGKey(0)
    params = init_params(key)
    tokenizer = ToyCLIPTokenizer(VOCAB)
    model = WebUIFrozenCLIPEmbedderPallas(params, tokenizer, layer='penultimate')

    # batch of 2 short prompts -> one chunk each -> z shape (2, 77, 128)
    texts = ["a (photo:1.2) of a cat, on a hill", "normal text"]
    z = model.encode(texts)
    z = jax.block_until_ready(z)
    assert z.shape == (2, SEQ, HIDDEN), z.shape
    assert z.dtype == jnp.float32
    assert bool(jnp.all(jnp.isfinite(z)))

    # one long prompt -> 2 chunks batched into a single kernel launch
    long_text = ["a scenic view of mountains, " * 5]
    z2 = model.encode(long_text)
    z2 = jax.block_until_ready(z2)
    assert z2.shape == (1, 2 * SEQ, HIDDEN), z2.shape
    assert bool(jnp.all(jnp.isfinite(z2)))

    print("KERNEL_OK")
</pallas_src>

<mosaic_0001>
module attributes {stable_mosaic.version = 11 : i64} {
  func.func @_fused_clip_kernel(%arg0: i32, %arg1: i32, %arg2: memref<1x128x128xf32, #tpu.memory_space<vmem>>, %arg3: memref<1x128x1xf32, #tpu.memory_space<vmem>>, %arg4: memref<128x128xf32, #tpu.memory_space<vmem>>, %arg5: memref<1x1x128xf32, #tpu.memory_space<vmem>>, %arg6: memref<1x1x128xf32, #tpu.memory_space<vmem>>, %arg7: memref<1x128x384xbf16, #tpu.memory_space<vmem>>, %arg8: memref<1x1x384xf32, #tpu.memory_space<vmem>>, %arg9: memref<1x128x128xbf16, #tpu.memory_space<vmem>>, %arg10: memref<1x1x128xf32, #tpu.memory_space<vmem>>, %arg11: memref<1x1x128xf32, #tpu.memory_space<vmem>>, %arg12: memref<1x1x128xf32, #tpu.memory_space<vmem>>, %arg13: memref<1x128x512xbf16, #tpu.memory_space<vmem>>, %arg14: memref<1x1x512xf32, #tpu.memory_space<vmem>>, %arg15: memref<1x512x128xbf16, #tpu.memory_space<vmem>>, %arg16: memref<1x1x128xf32, #tpu.memory_space<vmem>>, %arg17: memref<1x128xf32, #tpu.memory_space<vmem>>, %arg18: memref<1x128xf32, #tpu.memory_space<vmem>>, %arg19: memref<1x128x128xf32, #tpu.memory_space<vmem>>, %arg20: memref<1x1x128xf32, #tpu.memory_space<vmem>>, %arg21: memref<1x1x128xf32, #tpu.memory_space<vmem>>, %arg22: memref<128x128xf32, #tpu.memory_space<vmem>>) attributes {dimension_semantics = [#tpu.dimension_semantics<parallel>, #tpu.dimension_semantics<arbitrary>], iteration_bounds = array<i64: 2, 1>, scalar_prefetch = 0 : i64, scratch_operands = 1 : i64, tpu.core_type = #tpu.core_type<tc>, window_params = [{transform_indices = @transform_0, window_bounds = array<i64: 1, 128, 128>}, {transform_indices = @transform_1, window_bounds = array<i64: 1, 128, 1>}, {pipeline_mode = #tpu.pipeline_mode<synchronous>, transform_indices = @transform_2, window_bounds = array<i64: 128, 128>}, {transform_indices = @transform_3, window_bounds = array<i64: 1, 1, 128>}, {transform_indices = @transform_4, window_bounds = array<i64: 1, 1, 128>}, {transform_indices = @transform_5, window_bounds = array<i64: 1, 128, 384>}, {transform_indices = @transform_6, window_bounds = array<i64: 1, 1, 384>}, {transform_indices = @transform_7, window_bounds = array<i64: 1, 128, 128>}, {transform_indices = @transform_8, window_bounds = array<i64: 1, 1, 128>}, {transform_indices = @transform_9, window_bounds = array<i64: 1, 1, 128>}, {transform_indices = @transform_10, window_bounds = array<i64: 1, 1, 128>}, {transform_indices = @transform_11, window_bounds = array<i64: 1, 128, 512>}, {transform_indices = @transform_12, window_bounds = array<i64: 1, 1, 512>}, {transform_indices = @transform_13, window_bounds = array<i64: 1, 512, 128>}, {transform_indices = @transform_14, window_bounds = array<i64: 1, 1, 128>}, {pipeline_mode = #tpu.pipeline_mode<synchronous>, transform_indices = @transform_15, window_bounds = array<i64: 1, 128>}, {pipeline_mode = #tpu.pipeline_mode<synchronous>, transform_indices = @transform_16, window_bounds = array<i64: 1, 128>}, {transform_indices = @transform_17, window_bounds = array<i64: 1, 128, 128>}, {transform_indices = @transform_18, window_bounds = array<i64: 1, 1, 128>}, {transform_indices = @transform_19, window_bounds = array<i64: 1, 1, 128>}]} {
    %c0_i32 = arith.constant 0 : i32
    %0 = arith.cmpi eq, %arg1, %c0_i32 : i32
    %1 = arith.extui %0 : i1 to i32
    %c0_i32_0 = arith.constant 0 : i32
    %2 = arith.cmpi ne, %1, %c0_i32_0 : i32
    scf.if %2 {
      %c0_70 = arith.constant 0 : index
      %c0_71 = arith.constant 0 : index
      %c0_72 = arith.constant 0 : index
      %155 = vector.load %arg2[%c0_70, %c0_71, %c0_72] : memref<1x128x128xf32, #tpu.memory_space<vmem>>, vector<1x128x128xf32>
      %156 = vector.shape_cast %155 : vector<1x128x128xf32> to vector<128x128xf32>
      %c0_73 = arith.constant 0 : index
      %c0_74 = arith.constant 0 : index
      %157 = vector.load %arg22[%c0_73, %c0_74] : memref<128x128xf32, #tpu.memory_space<vmem>>, vector<128x128xf32>
      tpu.vector_store %arg22[%c0_73, %c0_74], %156 {strides = array<i32>} : memref<128x128xf32, #tpu.memory_space<vmem>>, vector<128x128xf32>,
    } else {
    }
    %c0 = arith.constant 0 : index
    %c0_1 = arith.constant 0 : index
    %3 = vector.load %arg22[%c0, %c0_1] : memref<128x128xf32, #tpu.memory_space<vmem>>, vector<128x128xf32>
    %c0_2 = arith.constant 0 : index
    %c0_3 = arith.constant 0 : index
    %4 = vector.load %arg4[%c0_2, %c0_3] : memref<128x128xf32, #tpu.memory_space<vmem>>, vector<128x128xf32>
    %c0_4 = arith.constant 0 : index
    %c0_5 = arith.constant 0 : index
    %c0_6 = arith.constant 0 : index
    %5 = vector.load %arg5[%c0_4, %c0_5, %c0_6] : memref<1x1x128xf32, #tpu.memory_space<vmem>>, vector<1x1x128xf32>
    %6 = vector.shape_cast %5 : vector<1x1x128xf32> to vector<1x128xf32>
    %c0_7 = arith.constant 0 : index
    %c0_8 = arith.constant 0 : index
    %c0_9 = arith.constant 0 : index
    %7 = vector.load %arg6[%c0_7, %c0_8, %c0_9] : memref<1x1x128xf32, #tpu.memory_space<vmem>>, vector<1x1x128xf32>
    %8 = vector.shape_cast %7 : vector<1x1x128xf32> to vector<1x128xf32>
    %cst = arith.constant dense<0.000000e+00> : vector<128xf32>
    %9 = vector.multi_reduction <add>, %3, %cst [1] : vector<128x128xf32> to vector<128xf32>
    %10 = vector.shape_cast %9 : vector<128xf32> to vector<128x1xf32>
    %cst_10 = arith.constant 1.280000e+02 : f32
    %11 = vector.broadcast %cst_10 : f32 to vector<128x1xf32>
    %12 = arith.divf %10, %11 : vector<128x1xf32>
    %13 = arith.mulf %3, %3 : vector<128x128xf32>
    %cst_11 = arith.constant dense<0.000000e+00> : vector<128xf32>
    %14 = vector.multi_reduction <add>, %13, %cst_11 [1] : vector<128x128xf32> to vector<128xf32>
    %15 = vector.shape_cast %14 : vector<128xf32> to vector<128x1xf32>
    %cst_12 = arith.constant 1.280000e+02 : f32
    %16 = vector.broadcast %cst_12 : f32 to vector<128x1xf32>
    %17 = arith.divf %15, %16 : vector<128x1xf32>
    %18 = arith.mulf %12, %12 : vector<128x1xf32>
    %19 = arith.subf %17, %18 : vector<128x1xf32>
    %20 = vector.broadcast %12 : vector<128x1xf32> to vector<128x128xf32>
    %21 = arith.subf %3, %20 : vector<128x128xf32>
    %cst_13 = arith.constant 9.99999974E-6 : f32
    %22 = vector.broadcast %cst_13 : f32 to vector<128x1xf32>
    %23 = arith.addf %19, %22 : vector<128x1xf32>
    %24 = math.rsqrt %23 : vector<128x1xf32>
    %25 = vector.broadcast %24 : vector<128x1xf32> to vector<128x128xf32>
    %26 = arith.mulf %21, %25 : vector<128x128xf32>
    %27 = vector.broadcast %6 : vector<1x128xf32> to vector<128x128xf32>
    %28 = arith.mulf %26, %27 : vector<128x128xf32>
    %29 = vector.broadcast %8 : vector<1x128xf32> to vector<128x128xf32>
    %30 = arith.addf %28, %29 : vector<128x128xf32>
    %31 = arith.truncf %30 : vector<128x128xf32> to vector<128x128xbf16>
    %c0_14 = arith.constant 0 : index
    %c0_15 = arith.constant 0 : index
    %c0_16 = arith.constant 0 : index
    %32 = vector.load %arg7[%c0_14, %c0_15, %c0_16] : memref<1x128x384xbf16, #tpu.memory_space<vmem>>, vector<1x128x384xbf16>
    %33 = vector.shape_cast %32 : vector<1x128x384xbf16> to vector<128x384xbf16>
    %cst_17 = arith.constant dense<0.000000e+00> : vector<128x384xf32>
    %34 = tpu.matmul %31, %33, %cst_17 {dimension_numbers = #tpu.dot_dimension_numbers<[1], [0], [0], [1], [0, 0, 1, 1], [], []>} : vector<128x128xbf16>, vector<128x384xbf16>, vector<128x384xf32> -> vector<128x384xf32>
    %c0_18 = arith.constant 0 : index
    %c0_19 = arith.constant 0 : index
    %c0_20 = arith.constant 0 : index
    %35 = vector.load %arg8[%c0_18, %c0_19, %c0_20] : memref<1x1x384xf32, #tpu.memory_space<vmem>>, vector<1x1x384xf32>
    %36 = vector.shape_cast %35 : vector<1x1x384xf32> to vector<1x384xf32>
    %37 = vector.broadcast %36 : vector<1x384xf32> to vector<128x384xf32>
    %38 = arith.addf %34, %37 : vector<128x384xf32>
    %39 = vector.extract_strided_slice %38 {offsets = [0, 0], sizes = [128, 128], strides = [1, 1]} : vector<128x384xf32> to vector<128x128xf32>
    %cst_21 = arith.constant 1.250000e-01 : f32
    %40 = vector.broadcast %cst_21 : f32 to vector<128x128xf32>
    %41 = arith.mulf %39, %40 : vector<128x128xf32>
    %42 = vector.extract_strided_slice %38 {offsets = [0, 128], sizes = [128, 128], strides = [1, 1]} : vector<128x384xf32> to vector<128x128xf32>
    %43 = vector.extract_strided_slice %38 {offsets = [0, 256], sizes = [128, 128], strides = [1, 1]} : vector<128x384xf32> to vector<128x128xf32>
    %c0_22 = arith.constant 0 : index
    %c0_23 = arith.constant 0 : index
    %c0_24 = arith.constant 0 : index
    %44 = vector.load %arg9[%c0_22, %c0_23, %c0_24] : memref<1x128x128xbf16, #tpu.memory_space<vmem>>, vector<1x128x128xbf16>
    %45 = vector.shape_cast %44 : vector<1x128x128xbf16> to vector<128x128xbf16>
    %cst_25 = arith.constant 0.000000e+00 : f32
    %46 = vector.broadcast %cst_25 : f32 to vector<128x128xf32>
    %47 = vector.extract_strided_slice %41 {offsets = [0, 0], sizes = [128, 64], strides = [1, 1]} : vector<128x128xf32> to vector<128x64xf32>
    %48 = arith.truncf %47 : vector<128x64xf32> to vector<128x64xbf16>
    %49 = vector.extract_strided_slice %42 {offsets = [0, 0], sizes = [128, 64], strides = [1, 1]} : vector<128x128xf32> to vector<128x64xf32>
    %50 = arith.truncf %49 : vector<128x64xf32> to vector<128x64xbf16>
    %51 = vector.extract_strided_slice %43 {offsets = [0, 0], sizes = [128, 64], strides = [1, 1]} : vector<128x128xf32> to vector<128x64xf32>
    %52 = arith.truncf %51 : vector<128x64xf32> to vector<128x64xbf16>
    %cst_26 = arith.constant dense<0.000000e+00> : vector<128x128xf32>
    %53 = tpu.matmul %48, %50, %cst_26 {dimension_numbers = #tpu.dot_dimension_numbers<[1], [1], [0], [0], [0, 0, 1, 0], [], []>} : vector<128x64xbf16>, vector<128x64xbf16>, vector<128x128xf32> -> vector<128x128xf32>
    %54 = arith.addf %53, %4 : vector<128x128xf32>
    %cst_27 = arith.constant dense<0xFF800000> : vector<128xf32>
    %55 = vector.multi_reduction <maximumf>, %54, %cst_27 [1] : vector<128x128xf32> to vector<128xf32>
    %56 = vector.shape_cast %55 : vector<128xf32> to vector<128x1xf32>
    %57 = vector.broadcast %56 : vector<128x1xf32> to vector<128x128xf32>
    %58 = arith.subf %54, %57 : vector<128x128xf32>
    %59 = math.exp %58 : vector<128x128xf32>
    %cst_28 = arith.constant dense<0.000000e+00> : vector<128xf32>
    %60 = vector.multi_reduction <add>, %59, %cst_28 [1] : vector<128x128xf32> to vector<128xf32>
    %61 = vector.shape_cast %60 : vector<128xf32> to vector<128x1xf32>
    %62 = tpu.reciprocal %61 {approx = true} : vector<128x1xf32> -> vector<128x1xf32>
    %63 = vector.broadcast %62 : vector<128x1xf32> to vector<128x128xf32>
    %64 = arith.mulf %59, %63 : vector<128x128xf32>
    %65 = arith.truncf %64 : vector<128x128xf32> to vector<128x128xbf16>
    %cst_29 = arith.constant dense<0.000000e+00> : vector<128x64xf32>
    %66 = tpu.matmul %65, %52, %cst_29 {dimension_numbers = #tpu.dot_dimension_numbers<[1], [0], [0], [1], [0, 0, 1, 1], [], []>} : vector<128x128xbf16>, vector<128x64xbf16>, vector<128x64xf32> -> vector<128x64xf32>
    %67 = arith.truncf %66 : vector<128x64xf32> to vector<128x64xbf16>
    %68 = vector.extract_strided_slice %45 {offsets = [0, 0], sizes = [64, 128], strides = [1, 1]} : vector<128x128xbf16> to vector<64x128xbf16>
    %cst_30 = arith.constant dense<0.000000e+00> : vector<128x128xf32>
    %69 = tpu.matmul %67, %68, %cst_30 {dimension_numbers = #tpu.dot_dimension_numbers<[1], [0], [0], [1], [0, 0, 1, 1], [], []>} : vector<128x64xbf16>, vector<64x128xbf16>, vector<128x128xf32> -> vector<128x128xf32>
    %70 = arith.addf %46, %69 : vector<128x128xf32>
    %71 = vector.extract_strided_slice %41 {offsets = [0, 64], sizes = [128, 64], strides = [1, 1]} : vector<128x128xf32> to vector<128x64xf32>
    %72 = arith.truncf %71 : vector<128x64xf32> to vector<128x64xbf16>
    %73 = vector.extract_strided_slice %42 {offsets = [0, 64], sizes = [128, 64], strides = [1, 1]} : vector<128x128xf32> to vector<128x64xf32>
    %74 = arith.truncf %73 : vector<128x64xf32> to vector<128x64xbf16>
    %75 = vector.extract_strided_slice %43 {offsets = [0, 64], sizes = [128, 64], strides = [1, 1]} : vector<128x128xf32> to vector<128x64xf32>
    %76 = arith.truncf %75 : vector<128x64xf32> to vector<128x64xbf16>
    %cst_31 = arith.constant dense<0.000000e+00> : vector<128x128xf32>
    %77 = tpu.matmul %72, %74, %cst_31 {dimension_numbers = #tpu.dot_dimension_numbers<[1], [1], [0], [0], [0, 0, 1, 0], [], []>} : vector<128x64xbf16>, vector<128x64xbf16>, vector<128x128xf32> -> vector<128x128xf32>
    %78 = arith.addf %77, %4 : vector<128x128xf32>
    %cst_32 = arith.constant dense<0xFF800000> : vector<128xf32>
    %79 = vector.multi_reduction <maximumf>, %78, %cst_32 [1] : vector<128x128xf32> to vector<128xf32>
    %80 = vector.shape_cast %79 : vector<128xf32> to vector<128x1xf32>
    %81 = vector.broadcast %80 : vector<128x1xf32> to vector<128x128xf32>
    %82 = arith.subf %78, %81 : vector<128x128xf32>
    %83 = math.exp %82 : vector<128x128xf32>
    %cst_33 = arith.constant dense<0.000000e+00> : vector<128xf32>
    %84 = vector.multi_reduction <add>, %83, %cst_33 [1] : vector<128x128xf32> to vector<128xf32>
    %85 = vector.shape_cast %84 : vector<128xf32> to vector<128x1xf32>
    %86 = tpu.reciprocal %85 {approx = true} : vector<128x1xf32> -> vector<128x1xf32>
    %87 = vector.broadcast %86 : vector<128x1xf32> to vector<128x128xf32>
    %88 = arith.mulf %83, %87 : vector<128x128xf32>
    %89 = arith.truncf %88 : vector<128x128xf32> to vector<128x128xbf16>
    %cst_34 = arith.constant dense<0.000000e+00> : vector<128x64xf32>
    %90 = tpu.matmul %89, %76, %cst_34 {dimension_numbers = #tpu.dot_dimension_numbers<[1], [0], [0], [1], [0, 0, 1, 1], [], []>} : vector<128x128xbf16>, vector<128x64xbf16>, vector<128x64xf32> -> vector<128x64xf32>
    %91 = arith.truncf %90 : vector<128x64xf32> to vector<128x64xbf16>
    %92 = vector.extract_strided_slice %45 {offsets = [64, 0], sizes = [64, 128], strides = [1, 1]} : vector<128x128xbf16> to vector<64x128xbf16>
    %cst_35 = arith.constant dense<0.000000e+00> : vector<128x128xf32>
    %93 = tpu.matmul %91, %92, %cst_35 {dimension_numbers = #tpu.dot_dimension_numbers<[1], [0], [0], [1], [0, 0, 1, 1], [], []>} : vector<128x64xbf16>, vector<64x128xbf16>, vector<128x128xf32> -> vector<128x128xf32>
    %94 = arith.addf %70, %93 : vector<128x128xf32>
    %95 = arith.addf %3, %94 : vector<128x128xf32>
    %c0_36 = arith.constant 0 : index
    %c0_37 = arith.constant 0 : index
    %c0_38 = arith.constant 0 : index
    %96 = vector.load %arg10[%c0_36, %c0_37, %c0_38] : memref<1x1x128xf32, #tpu.memory_space<vmem>>, vector<1x1x128xf32>
    %97 = vector.shape_cast %96 : vector<1x1x128xf32> to vector<1x128xf32>
    %98 = vector.broadcast %97 : vector<1x128xf32> to vector<128x128xf32>
    %99 = arith.addf %95, %98 : vector<128x128xf32>
    %c0_39 = arith.constant 0 : index
    %c0_40 = arith.constant 0 : index
    %c0_41 = arith.constant 0 : index
    %100 = vector.load %arg11[%c0_39, %c0_40, %c0_41] : memref<1x1x128xf32, #tpu.memory_space<vmem>>, vector<1x1x128xf32>
    %101 = vector.shape_cast %100 : vector<1x1x128xf32> to vector<1x128xf32>
    %c0_42 = arith.constant 0 : index
    %c0_43 = arith.constant 0 : index
    %c0_44 = arith.constant 0 : index
    %102 = vector.load %arg12[%c0_42, %c0_43, %c0_44] : memref<1x1x128xf32, #tpu.memory_space<vmem>>, vector<1x1x128xf32>
    %103 = vector.shape_cast %102 : vector<1x1x128xf32> to vector<1x128xf32>
    %cst_45 = arith.constant dense<0.000000e+00> : vector<128xf32>
    %104 = vector.multi_reduction <add>, %99, %cst_45 [1] : vector<128x128xf32> to vector<128xf32>
    %105 = vector.shape_cast %104 : vector<128xf32> to vector<128x1xf32>
    %cst_46 = arith.constant 1.280000e+02 : f32
    %106 = vector.broadcast %cst_46 : f32 to vector<128x1xf32>
    %107 = arith.divf %105, %106 : vector<128x1xf32>
    %108 = arith.mulf %99, %99 : vector<128x128xf32>
    %cst_47 = arith.constant dense<0.000000e+00> : vector<128xf32>
    %109 = vector.multi_reduction <add>, %108, %cst_47 [1] : vector<128x128xf32> to vector<128xf32>
    %110 = vector.shape_cast %109 : vector<128xf32> to vector<128x1xf32>
    %cst_48 = arith.constant 1.280000e+02 : f32
    %111 = vector.broadcast %cst_48 : f32 to vector<128x1xf32>
    %112 = arith.divf %110, %111 : vector<128x1xf32>
    %113 = arith.mulf %107, %107 : vector<128x1xf32>
    %114 = arith.subf %112, %113 : vector<128x1xf32>
    %115 = vector.broadcast %107 : vector<128x1xf32> to vector<128x128xf32>
    %116 = arith.subf %99, %115 : vector<128x128xf32>
    %cst_49 = arith.constant 9.99999974E-6 : f32
    %117 = vector.broadcast %cst_49 : f32 to vector<128x1xf32>
    %118 = arith.addf %114, %117 : vector<128x1xf32>
    %119 = math.rsqrt %118 : vector<128x1xf32>
    %120 = vector.broadcast %119 : vector<128x1xf32> to vector<128x128xf32>
    %121 = arith.mulf %116, %120 : vector<128x128xf32>
    %122 = vector.broadcast %101 : vector<1x128xf32> to vector<128x128xf32>
    %123 = arith.mulf %121, %122 : vector<128x128xf32>
    %124 = vector.broadcast %103 : vector<1x128xf32> to vector<128x128xf32>
    %125 = arith.addf %123, %124 : vector<128x128xf32>
    %126 = arith.truncf %125 : vector<128x128xf32> to vector<128x128xbf16>
    %c0_50 = arith.constant 0 : index
    %c0_51 = arith.constant 0 : index
    %c0_52 = arith.constant 0 : index
    %127 = vector.load %arg13[%c0_50, %c0_51, %c0_52] : memref<1x128x512xbf16, #tpu.memory_space<vmem>>, vector<1x128x512xbf16>
    %128 = vector.shape_cast %127 : vector<1x128x512xbf16> to vector<128x512xbf16>
    %cst_53 = arith.constant dense<0.000000e+00> : vector<128x512xf32>
    %129 = tpu.matmul %126, %128, %cst_53 {dimension_numbers = #tpu.dot_dimension_numbers<[1], [0], [0], [1], [0, 0, 1, 1], [], []>} : vector<128x128xbf16>, vector<128x512xbf16>, vector<128x512xf32> -> vector<128x512xf32>
    %c0_54 = arith.constant 0 : index
    %c0_55 = arith.constant 0 : index
    %c0_56 = arith.constant 0 : index
    %130 = vector.load %arg14[%c0_54, %c0_55, %c0_56] : memref<1x1x512xf32, #tpu.memory_space<vmem>>, vector<1x1x512xf32>
    %131 = vector.shape_cast %130 : vector<1x1x512xf32> to vector<1x512xf32>
    %132 = vector.broadcast %131 : vector<1x512xf32> to vector<128x512xf32>
    %133 = arith.addf %129, %132 : vector<128x512xf32>
    %cst_57 = arith.constant 1.702000e+00 : f32
    %134 = vector.broadcast %cst_57 : f32 to vector<128x512xf32>
    %135 = arith.mulf %134, %133 : vector<128x512xf32>
    %136 = arith.negf %135 : vector<128x512xf32>
    %137 = math.exp %136 : vector<128x512xf32>
    %cst_58 = arith.constant 1.000000e+00 : f32
    %138 = vector.broadcast %cst_58 : f32 to vector<128x512xf32>
    %139 = arith.addf %138, %137 : vector<128x512xf32>
    %140 = arith.divf %138, %139 : vector<128x512xf32>
    %141 = arith.mulf %133, %140 : vector<128x512xf32>
    %142 = arith.truncf %141 : vector<128x512xf32> to vector<128x512xbf16>
    %c0_59 = arith.constant 0 : index
    %c0_60 = arith.constant 0 : index
    %c0_61 = arith.constant 0 : index
    %143 = vector.load %arg15[%c0_59, %c0_60, %c0_61] : memref<1x512x128xbf16, #tpu.memory_space<vmem>>, vector<1x512x128xbf16>
    %144 = vector.shape_cast %143 : vector<1x512x128xbf16> to vector<512x128xbf16>
    %cst_62 = arith.constant dense<0.000000e+00> : vector<128x128xf32>
    %145 = tpu.matmul %142, %144, %cst_62 {dimension_numbers = #tpu.dot_dimension_numbers<[1], [0], [0], [1], [0, 0, 1, 1], [], []>} : vector<128x512xbf16>, vector<512x128xbf16>, vector<128x128xf32> -> vector<128x128xf32>
    %c0_63 = arith.constant 0 : index
    %c0_64 = arith.constant 0 : index
    %c0_65 = arith.constant 0 : index
    %146 = vector.load %arg16[%c0_63, %c0_64, %c0_65] : memref<1x1x128xf32, #tpu.memory_space<vmem>>, vector<1x1x128xf32>
    %147 = vector.shape_cast %146 : vector<1x1x128xf32> to vector<1x128xf32>
    %148 = vector.broadcast %147 : vector<1x128xf32> to vector<128x128xf32>
    %149 = arith.addf %145, %148 : vector<128x128xf32>
    %150 = arith.addf %99, %149 : vector<128x128xf32>
    %c0_66 = arith.constant 0 : index
    %c0_67 = arith.constant 0 : index
    %151 = vector.load %arg22[%c0_66, %c0_67] : memref<128x128xf32, #tpu.memory_space<vmem>>, vector<128x128xf32>
    tpu.vector_store %arg22[%c0_66, %c0_67], %150 {strides = array<i32>} : memref<128x128xf32, #tpu.memory_space<vmem>>, vector<128x128xf32>,
    %c0_i32_68 = arith.constant 0 : i32
    %152 = arith.cmpi eq, %arg1, %c0_i32_68 : i32
    %153 = arith.extui %152 : i1 to i32
    %c0_i32_69 = arith.constant 0 : i32
    %154 = arith.cmpi ne, %153, %c0_i32_69 : i32
    scf.if %154 {
      %c0_70 = arith.constant 0 : index
      %c0_71 = arith.constant 0 : index
      %155 = vector.load %arg17[%c0_70, %c0_71] : memref<1x128xf32, #tpu.memory_space<vmem>>, vector<1x128xf32>
      %c0_72 = arith.constant 0 : index
      %c0_73 = arith.constant 0 : index
      %156 = vector.load %arg18[%c0_72, %c0_73] : memref<1x128xf32, #tpu.memory_space<vmem>>, vector<1x128xf32>
      %cst_74 = arith.constant dense<0.000000e+00> : vector<128xf32>
      %157 = vector.multi_reduction <add>, %150, %cst_74 [1] : vector<128x128xf32> to vector<128xf32>
      %158 = vector.shape_cast %157 : vector<128xf32> to vector<128x1xf32>
      %cst_75 = arith.constant 1.280000e+02 : f32
      %159 = vector.broadcast %cst_75 : f32 to vector<128x1xf32>
      %160 = arith.divf %158, %159 : vector<128x1xf32>
      %161 = arith.mulf %150, %150 : vector<128x128xf32>
      %cst_76 = arith.constant dense<0.000000e+00> : vector<128xf32>
      %162 = vector.multi_reduction <add>, %161, %cst_76 [1] : vector<128x128xf32> to vector<128xf32>
      %163 = vector.shape_cast %162 : vector<128xf32> to vector<128x1xf32>
      %cst_77 = arith.constant 1.280000e+02 : f32
      %164 = vector.broadcast %cst_77 : f32 to vector<128x1xf32>
      %165 = arith.divf %163, %164 : vector<128x1xf32>
      %166 = arith.mulf %160, %160 : vector<128x1xf32>
      %167 = arith.subf %165, %166 : vector<128x1xf32>
      %168 = vector.broadcast %160 : vector<128x1xf32> to vector<128x128xf32>
      %169 = arith.subf %150, %168 : vector<128x128xf32>
      %cst_78 = arith.constant 9.99999974E-6 : f32
      %170 = vector.broadcast %cst_78 : f32 to vector<128x1xf32>
      %171 = arith.addf %167, %170 : vector<128x1xf32>
      %172 = math.rsqrt %171 : vector<128x1xf32>
      %173 = vector.broadcast %172 : vector<128x1xf32> to vector<128x128xf32>
      %174 = arith.mulf %169, %173 : vector<128x128xf32>
      %175 = vector.broadcast %155 : vector<1x128xf32> to vector<128x128xf32>
      %176 = arith.mulf %174, %175 : vector<128x128xf32>
      %177 = vector.broadcast %156 : vector<1x128xf32> to vector<128x128xf32>
      %178 = arith.addf %176, %177 : vector<128x128xf32>
      %c0_79 = arith.constant 0 : index
      %c0_80 = arith.constant 0 : index
      %c0_81 = arith.constant 0 : index
      %179 = vector.load %arg3[%c0_79, %c0_80, %c0_81] : memref<1x128x1xf32, #tpu.memory_space<vmem>>, vector<1x128x1xf32>
      %180 = vector.shape_cast %179 : vector<1x128x1xf32> to vector<128x1xf32>
      %181 = vector.broadcast %180 : vector<128x1xf32> to vector<128x128xf32>
      %182 = arith.mulf %178, %181 : vector<128x128xf32>
      %c0_82 = arith.constant 0 : index
      %c0_83 = arith.constant 0 : index
      %c0_84 = arith.constant 0 : index
      %183 = vector.load %arg19[%c0_82, %c0_83, %c0_84] : memref<1x128x128xf32, #tpu.memory_space<vmem>>, vector<1x128x128xf32>
      %184 = vector.shape_cast %183 : vector<1x128x128xf32> to vector<128x128xf32>
      %185 = vector.shape_cast %182 : vector<128x128xf32> to vector<1x128x128xf32>
      tpu.vector_store %arg19[%c0_82, %c0_83, %c0_84], %185 {strides = array<i32>} : memref<1x128x128xf32, #tpu.memory_space<vmem>>, vector<1x128x128xf32>,
      %186 = tpu.iota {dimensions = array<i32: 0>} : vector<128x1xi32>
      %c77_i32 = arith.constant 77 : i32
      %187 = vector.broadcast %c77_i32 : i32 to vector<128x1xi32>
      %188 = arith.cmpi slt, %186, %187 : vector<128x1xi32>
      %189 = arith.extui %188 : vector<128x1xi1> to vector<128x1xi32>
      %190 = arith.sitofp %189 : vector<128x1xi32> to vector<128x1xf32>
      %191 = vector.broadcast %190 : vector<128x1xf32> to vector<128x128xf32>
      %192 = arith.mulf %178, %191 : vector<128x128xf32>
      %cst_85 = arith.constant dense<0.000000e+00> : vector<128xf32>
      %193 = vector.multi_reduction <add>, %192, %cst_85 [0] : vector<128x128xf32> to vector<128xf32>
      %194 = vector.shape_cast %193 : vector<128xf32> to vector<1x128xf32>
      %c0_86 = arith.constant 0 : index
      %c0_87 = arith.constant 0 : index
      %c0_88 = arith.constant 0 : index
      %195 = vector.load %arg20[%c0_86, %c0_87, %c0_88] : memref<1x1x128xf32, #tpu.memory_space<vmem>>, vector<1x1x128xf32>
      %196 = vector.shape_cast %195 : vector<1x1x128xf32> to vector<1x128xf32>
      %197 = vector.shape_cast %194 : vector<1x128xf32> to vector<1x1x128xf32>
      tpu.vector_store %arg20[%c0_86, %c0_87, %c0_88], %197 {strides = array<i32>} : memref<1x1x128xf32, #tpu.memory_space<vmem>>, vector<1x1x128xf32>,
      %198 = vector.broadcast %190 : vector<128x1xf32> to vector<128x128xf32>
      %199 = arith.mulf %182, %198 : vector<128x128xf32>
      %cst_89 = arith.constant dense<0.000000e+00> : vector<128xf32>
      %200 = vector.multi_reduction <add>, %199, %cst_89 [0] : vector<128x128xf32> to vector<128xf32>
      %201 = vector.shape_cast %200 : vector<128xf32> to vector<1x128xf32>
      %c0_90 = arith.constant 0 : index
      %c0_91 = arith.constant 0 : index
      %c0_92 = arith.constant 0 : index
      %202 = vector.load %arg21[%c0_90, %c0_91, %c0_92] : memref<1x1x128xf32, #tpu.memory_space<vmem>>, vector<1x1x128xf32>
      %203 = vector.shape_cast %202 : vector<1x1x128xf32> to vector<1x128xf32>
      %204 = vector.shape_cast %201 : vector<1x128xf32> to vector<1x1x128xf32>
      tpu.vector_store %arg21[%c0_90, %c0_91, %c0_92], %204 {strides = array<i32>} : memref<1x1x128xf32, #tpu.memory_space<vmem>>, vector<1x1x128xf32>,
    } else {
    }
    return
  }
  func.func @transform_0(%arg0: i32, %arg1: i32) -> (i32, i32, i32) {
    %c0_i32 = arith.constant 0 : i32
    %c0_i32_0 = arith.constant 0 : i32
    %c0_i32_1 = arith.constant 0 : i32
    return %arg0, %c0_i32, %c0_i32_0 : i32, i32, i32
  }
  func.func @transform_1(%arg0: i32, %arg1: i32) -> (i32, i32, i32) {
    %c0_i32 = arith.constant 0 : i32
    %c0_i32_0 = arith.constant 0 : i32
    %c0_i32_1 = arith.constant 0 : i32
    return %arg0, %c0_i32, %c0_i32_0 : i32, i32, i32
  }
  func.func @transform_2(%arg0: i32, %arg1: i32) -> (i32, i32) {
    %c0_i32 = arith.constant 0 : i32
    %c0_i32_0 = arith.constant 0 : i32
    %c0_i32_1 = arith.constant 0 : i32
    return %c0_i32, %c0_i32_0 : i32, i32
  }
  func.func @transform_3(%arg0: i32, %arg1: i32) -> (i32, i32, i32) {
    %c0_i32 = arith.constant 0 : i32
    %c0_i32_0 = arith.constant 0 : i32
    %c0_i32_1 = arith.constant 0 : i32
    return %arg1, %c0_i32, %c0_i32_0 : i32, i32, i32
  }
  func.func @transform_4(%arg0: i32, %arg1: i32) -> (i32, i32, i32) {
    %c0_i32 = arith.constant 0 : i32
    %c0_i32_0 = arith.constant 0 : i32
    %c0_i32_1 = arith.constant 0 : i32
    return %arg1, %c0_i32, %c0_i32_0 : i32, i32, i32
  }
  func.func @transform_5(%arg0: i32, %arg1: i32) -> (i32, i32, i32) {
    %c0_i32 = arith.constant 0 : i32
    %c0_i32_0 = arith.constant 0 : i32
    %c0_i32_1 = arith.constant 0 : i32
    return %arg1, %c0_i32, %c0_i32_0 : i32, i32, i32
  }
  func.func @transform_6(%arg0: i32, %arg1: i32) -> (i32, i32, i32) {
    %c0_i32 = arith.constant 0 : i32
    %c0_i32_0 = arith.constant 0 : i32
    %c0_i32_1 = arith.constant 0 : i32
    return %arg1, %c0_i32, %c0_i32_0 : i32, i32, i32
  }
  func.func @transform_7(%arg0: i32, %arg1: i32) -> (i32, i32, i32) {
    %c0_i32 = arith.constant 0 : i32
    %c0_i32_0 = arith.constant 0 : i32
    %c0_i32_1 = arith.constant 0 : i32
    return %arg1, %c0_i32, %c0_i32_0 : i32, i32, i32
  }
  func.func @transform_8(%arg0: i32, %arg1: i32) -> (i32, i32, i32) {
    %c0_i32 = arith.constant 0 : i32
    %c0_i32_0 = arith.constant 0 : i32
    %c0_i32_1 = arith.constant 0 : i32
    return %arg1, %c0_i32, %c0_i32_0 : i32, i32, i32
  }
  func.func @transform_9(%arg0: i32, %arg1: i32) -> (i32, i32, i32) {
    %c0_i32 = arith.constant 0 : i32
    %c0_i32_0 = arith.constant 0 : i32
    %c0_i32_1 = arith.constant 0 : i32
    return %arg1, %c0_i32, %c0_i32_0 : i32, i32, i32
  }
  func.func @transform_10(%arg0: i32, %arg1: i32) -> (i32, i32, i32) {
    %c0_i32 = arith.constant 0 : i32
    %c0_i32_0 = arith.constant 0 : i32
    %c0_i32_1 = arith.constant 0 : i32
    return %arg1, %c0_i32, %c0_i32_0 : i32, i32, i32
  }
  func.func @transform_11(%arg0: i32, %arg1: i32) -> (i32, i32, i32) {
    %c0_i32 = arith.constant 0 : i32
    %c0_i32_0 = arith.constant 0 : i32
    %c0_i32_1 = arith.constant 0 : i32
    return %arg1, %c0_i32, %c0_i32_0 : i32, i32, i32
  }
  func.func @transform_12(%arg0: i32, %arg1: i32) -> (i32, i32, i32) {
    %c0_i32 = arith.constant 0 : i32
    %c0_i32_0 = arith.constant 0 : i32
    %c0_i32_1 = arith.constant 0 : i32
    return %arg1, %c0_i32, %c0_i32_0 : i32, i32, i32
  }
  func.func @transform_13(%arg0: i32, %arg1: i32) -> (i32, i32, i32) {
    %c0_i32 = arith.constant 0 : i32
    %c0_i32_0 = arith.constant 0 : i32
    %c0_i32_1 = arith.constant 0 : i32
    return %arg1, %c0_i32, %c0_i32_0 : i32, i32, i32
  }
  func.func @transform_14(%arg0: i32, %arg1: i32) -> (i32, i32, i32) {
    %c0_i32 = arith.constant 0 : i32
    %c0_i32_0 = arith.constant 0 : i32
    %c0_i32_1 = arith.constant 0 : i32
    return %arg1, %c0_i32, %c0_i32_0 : i32, i32, i32
  }
  func.func @transform_15(%arg0: i32, %arg1: i32) -> (i32, i32) {
    %c0_i32 = arith.constant 0 : i32
    %c0_i32_0 = arith.constant 0 : i32
    %c0_i32_1 = arith.constant 0 : i32
    return %c0_i32, %c0_i32_0 : i32, i32
  }
  func.func @transform_16(%arg0: i32, %arg1: i32) -> (i32, i32) {
    %c0_i32 = arith.constant 0 : i32
    %c0_i32_0 = arith.constant 0 : i32
    %c0_i32_1 = arith.constant 0 : i32
    return %c0_i32, %c0_i32_0 : i32, i32
  }
  func.func @transform_17(%arg0: i32, %arg1: i32) -> (i32, i32, i32) {
    %c0_i32 = arith.constant 0 : i32
    %c0_i32_0 = arith.constant 0 : i32
    %c0_i32_1 = arith.constant 0 : i32
    return %arg0, %c0_i32, %c0_i32_0 : i32, i32, i32
  }
  func.func @transform_18(%arg0: i32, %arg1: i32) -> (i32, i32, i32) {
    %c0_i32 = arith.constant 0 : i32
    %c0_i32_0 = arith.constant 0 : i32
    %c0_i32_1 = arith.constant 0 : i32
    return %arg0, %c0_i32, %c0_i32_0 : i32, i32, i32
  }
  func.func @transform_19(%arg0: i32, %arg1: i32) -> (i32, i32, i32) {
    %c0_i32 = arith.constant 0 : i32
    %c0_i32_0 = arith.constant 0 : i32
    %c0_i32_1 = arith.constant 0 : i32
    return %arg0, %c0_i32, %c0_i32_0 : i32, i32, i32
  }
}

</mosaic_0001>

<llo_original>
// kernel: _clip_forward_all.1
$region0: #{_clip_forward_all.1}
  #allocation0 [shape = 'u32[]', space=smem, size = 0x4, offset = 0x4, fixed_abs, tag = 'smem constant byte address 0x4 - core index']
  #allocation1 [shape = 'u32[144,128]{1,0:T(1,128)}', space=vmem, size = 0x12000, scoped, tag = 'internal scratch']
  #allocation2 [shape = 'f32[128,128]{1,0:T(8,128)}', space=vmem, size = 0x10000, scoped, tag = 'scratch operand']
  %s0 = inlined_call_operand.vmem [shape: f32[2,128,128], index: 0, kind: input, shape index: {}]
  %s1 = inlined_call_operand.vmem [shape: f32[2,128,1], index: 1, kind: input, shape index: {}]
  %s2 = inlined_call_operand.vmem [shape: f32[128,128], index: 2, kind: input, shape index: {}]
  %s3 = inlined_call_operand.vmem [shape: f32[1,1,128], index: 3, kind: input, shape index: {}]
  %s4 = inlined_call_operand.vmem [shape: f32[1,1,128], index: 4, kind: input, shape index: {}]
  %s5 = inlined_call_operand.vmem [shape: bf16[1,128,384], index: 5, kind: input, shape index: {}]
  %s6 = inlined_call_operand.vmem [shape: f32[1,1,384], index: 6, kind: input, shape index: {}]
  %s7 = inlined_call_operand.vmem [shape: bf16[1,128,128], index: 7, kind: input, shape index: {}]
  %s8 = inlined_call_operand.vmem [shape: f32[1,1,128], index: 8, kind: input, shape index: {}]
  %s9 = inlined_call_operand.vmem [shape: f32[1,1,128], index: 9, kind: input, shape index: {}]
  %s10 = inlined_call_operand.vmem [shape: f32[1,1,128], index: 10, kind: input, shape index: {}]
  %s11 = inlined_call_operand.vmem [shape: bf16[1,128,512], index: 11, kind: input, shape index: {}]
  %s12 = inlined_call_operand.vmem [shape: f32[1,1,512], index: 12, kind: input, shape index: {}]
  %s13 = inlined_call_operand.vmem [shape: bf16[1,512,128], index: 13, kind: input, shape index: {}]
  %s14 = inlined_call_operand.vmem [shape: f32[1,1,128], index: 14, kind: input, shape index: {}]
  %s15 = inlined_call_operand.vmem [shape: f32[1,128], index: 15, kind: input, shape index: {}]
  %s16 = inlined_call_operand.vmem [shape: f32[1,128], index: 16, kind: input, shape index: {}]
  %s17 = inlined_call_operand.vmem [shape: f32[2,128,128], index: 17, kind: output, shape index: {0}]
  %s18 = inlined_call_operand.vmem [shape: f32[2,1,128], index: 18, kind: output, shape index: {1}]
  %s19 = inlined_call_operand.vmem [shape: f32[2,1,128], index: 19, kind: output, shape index: {2}]
  %20 = xla_tuple %s17, %s18, %s19
  %s21 = sld [smem:[#allocation0]]
  $region125: #{_clip_forward_all.1} parent=0
    _
  %s23 = ssub.s32 1, %s21
  %s24 = scalar_select 0, %s23, %s21
  loop: start=0, step=1, limit=4
  $region2: #{_clip_forward_all.1} parent=0 // loop_pre_header
    _
  $region3: #{_clip_forward_all.1} parent=0 // loop_header
    %s26 = sphi 0, %s30
    %p27 = scmp.ge.s32.totalorder %s26, 4
    %s33 = sphi 0, %s45
    %s34 = sphi 0, %s41
    %s35 = sphi 0, %s33
    %s36 = sphi 0, %s34
    %s37 = sphi 0, %s35
    %s38 = sphi 0, %s36
    %s48 = sphi 0, %s50
    %s51 = sphi 0, %s48
    %s52 = sphi 0, %s51
    %s68 = sphi 0, %s52
    %s74 = sphi 0, %s76
    %s77 = sphi 0, %s74
    %s78 = sphi 0, %s77
    %s94 = sphi 0, %s78
    %s98 = sphi 0, %s98
    %s100 = sphi 0, %s98
    %s101 = sphi 0, %s100
    %s115 = sphi 0, %s101
    %s121 = sphi 0, %s123
    %s124 = sphi 0, %s121
    %s125 = sphi 0, %s124
    %s141 = sphi 0, %s125
    %s147 = sphi 0, %s149
    %s150 = sphi 0, %s147
    %s151 = sphi 0, %s150
    %s167 = sphi 0, %s151
    %s173 = sphi 0, %s175
    %s176 = sphi 0, %s173
    %s177 = sphi 0, %s176
    %s193 = sphi 0, %s177
    %s199 = sphi 0, %s201
    %s202 = sphi 0, %s199
    %s203 = sphi 0, %s202
    %s219 = sphi 0, %s203
    %s225 = sphi 0, %s227
    %s228 = sphi 0, %s225
    %s229 = sphi 0, %s228
    %s245 = sphi 0, %s229
    %s251 = sphi 0, %s253
    %s254 = sphi 0, %s251
    %s255 = sphi 0, %s254
    %s271 = sphi 0, %s255
    %s277 = sphi 0, %s279
    %s280 = sphi 0, %s277
    %s281 = sphi 0, %s280
    %s297 = sphi 0, %s281
    %s303 = sphi 0, %s305
    %s306 = sphi 0, %s303
    %s307 = sphi 0, %s306
    %s323 = sphi 0, %s307
    %s329 = sphi 0, %s331
    %s332 = sphi 0, %s329
    %s333 = sphi 0, %s332
    %s349 = sphi 0, %s333
    %s355 = sphi 0, %s357
    %s358 = sphi 0, %s355
    %s359 = sphi 0, %s358
    %s375 = sphi 0, %s359
    %s381 = sphi 0, %s383
    %s384 = sphi 0, %s381
    %s385 = sphi 0, %s384
    %s401 = sphi 0, %s385
    %s407 = sphi 0, %s409
    %s410 = sphi 0, %s407
    %s411 = sphi 0, %s410
    %s427 = sphi 0, %s411
    %s431 = sphi 0, %s431
    %s433 = sphi 0, %s431
    %s434 = sphi 0, %s433
    %s448 = sphi 0, %s434
    %s452 = sphi 0, %s452
    %s454 = sphi 0, %s452
    %s455 = sphi 0, %s454
    %s469 = sphi 0, %s455
    %s475 = sphi 0, %s477
    %s478 = sphi 0, %s475
    %s479 = sphi 0, %s478
    %s495 = sphi 0, %s479
    %s501 = sphi 0, %s503
    %s504 = sphi 0, %s501
    %s505 = sphi 0, %s504
    %s521 = sphi 0, %s505
    %s527 = sphi 0, %s529
    %s530 = sphi 0, %s527
    %s531 = sphi 0, %s530
    %s547 = sphi 0, %s531
  $region4: #{_clip_forward_all.1} parent=0 // loop_header_branch
    %29 = sbr.rel (%p27) target = $region8
  $region5: #{_clip_forward_all.1} parent=0 // loop_body
    %s31 = ssub.s32 %s26, 1
    %s32 = ssub.s32 %s26, 2
    %s39 = sadd.s32 1, %s34
    %p40 = scmp.ge.s32.totalorder %s39, 1
    %s41 = scalar_select %p40, 0, %s39
    %s42 = sadd.s32 1, %s33
    %s43 = scalar_select %p40, %s42, %s33
    %p44 = scmp.ge.s32.totalorder %s43, 2
    %s45 = scalar_select %p44, 0, %s43
    %s46 = ssub.s32 %s33, %s45
    %p47 = scmp.eq.s32.totalorder %s46, 0
    %s49 = sadd.s32 %s48, 1
    %s50 = scalar_select %p47, %s48, %s49
    %p53 = pneg %p47
    %p54 = scmp.eq.s32.totalorder %s26, 1
    %p55 = por %p53, %p54
    %p56 = scmp.ne.s32.totalorder %s48, %s51
    %p57 = scmp.eq.s32.totalorder %s26, 0
    %p58 = por %p56, %p57
    %p59 = scmp.ne.s32.totalorder %s48, %s51
    %p60 = scmp.eq.s32.totalorder %s31, 1
    %p61 = por %p59, %p60
    %p62 = scmp.ne.s32.totalorder %s51, %s52
    %p63 = scmp.eq.s32.totalorder %s31, 0
    %p64 = por %p62, %p63
    %p65 = scmp.ne.s32.totalorder %s51, %s52
    %p66 = scmp.eq.s32.totalorder %s32, 1
    %p67 = por %p65, %p66
    %p69 = scmp.ne.s32.totalorder %s52, %s68
    %p70 = scmp.eq.s32.totalorder %s32, 0
    %p71 = por %p69, %p70
    %s72 = ssub.s32 %s33, %s45
    %p73 = scmp.eq.s32.totalorder %s72, 0
    %s75 = sadd.s32 %s74, 1
    %s76 = scalar_select %p73, %s74, %s75
    %p79 = pneg %p73
    %p80 = scmp.eq.s32.totalorder %s26, 1
    %p81 = por %p79, %p80
    %p82 = scmp.ne.s32.totalorder %s74, %s77
    %p83 = scmp.eq.s32.totalorder %s26, 0
    %p84 = por %p82, %p83
    %p85 = scmp.ne.s32.totalorder %s74, %s77
    %p86 = scmp.eq.s32.totalorder %s31, 1
    %p87 = por %p85, %p86
    %p88 = scmp.ne.s32.totalorder %s77, %s78
    %p89 = scmp.eq.s32.totalorder %s31, 0
    %p90 = por %p88, %p89
    %p91 = scmp.ne.s32.totalorder %s77, %s78
    %p92 = scmp.eq.s32.totalorder %s32, 1
    %p93 = por %p91, %p92
    %p95 = scmp.ne.s32.totalorder %s78, %s94
    %p96 = scmp.eq.s32.totalorder %s32, 0
    %p97 = por %p95, %p96
    %s99 = sadd.s32 %s98, 1
    %p102 = scmp.eq.s32.totalorder %s26, 1
    %p103 = scmp.ne.s32.totalorder %s98, %s100
    %p104 = scmp.eq.s32.totalorder %s26, 0
    %p105 = por %p103, %p104
    %p106 = scmp.ne.s32.totalorder %s98, %s100
    %p107 = scmp.eq.s32.totalorder %s31, 1
    %p108 = por %p106, %p107
    %p109 = scmp.ne.s32.totalorder %s100, %s101
    %p110 = scmp.eq.s32.totalorder %s31, 0
    %p111 = por %p109, %p110
    %p112 = scmp.ne.s32.totalorder %s100, %s101
    %p113 = scmp.eq.s32.totalorder %s32, 1
    %p114 = por %p112, %p113
    %p116 = scmp.ne.s32.totalorder %s101, %s115
    %p117 = scmp.eq.s32.totalorder %s32, 0
    %p118 = por %p116, %p117
    %s119 = ssub.s32 %s34, %s41
    %p120 = scmp.eq.s32.totalorder %s119, 0
    %s122 = sadd.s32 %s121, 1
    %s123 = scalar_select %p120, %s121, %s122
    %p126 = pneg %p120
    %p127 = scmp.eq.s32.totalorder %s26, 1
    %p128 = por %p126, %p127
    %p129 = scmp.ne.s32.totalorder %s121, %s124
    %p130 = scmp.eq.s32.totalorder %s26, 0
    %p131 = por %p129, %p130
    %p132 = scmp.ne.s32.totalorder %s121, %s124
    %p133 = scmp.eq.s32.totalorder %s31, 1
    %p134 = por %p132, %p133
    %p135 = scmp.ne.s32.totalorder %s124, %s125
    %p136 = scmp.eq.s32.totalorder %s31, 0
    %p137 = por %p135, %p136
    %p138 = scmp.ne.s32.totalorder %s124, %s125
    %p139 = scmp.eq.s32.totalorder %s32, 1
    %p140 = por %p138, %p139
    %p142 = scmp.ne.s32.totalorder %s125, %s141
    %p143 = scmp.eq.s32.totalorder %s32, 0
    %p144 = por %p142, %p143
    %s145 = ssub.s32 %s34, %s41
    %p146 = scmp.eq.s32.totalorder %s145, 0
    %s148 = sadd.s32 %s147, 1
    %s149 = scalar_select %p146, %s147, %s148
    %p152 = pneg %p146
    %p153 = scmp.eq.s32.totalorder %s26, 1
    %p154 = por %p152, %p153
    %p155 = scmp.ne.s32.totalorder %s147, %s150
    %p156 = scmp.eq.s32.totalorder %s26, 0
    %p157 = por %p155, %p156
    %p158 = scmp.ne.s32.totalorder %s147, %s150
    %p159 = scmp.eq.s32.totalorder %s31, 1
    %p160 = por %p158, %p159
    %p161 = scmp.ne.s32.totalorder %s150, %s151
    %p162 = scmp.eq.s32.totalorder %s31, 0
    %p163 = por %p161, %p162
    %p164 = scmp.ne.s32.totalorder %s150, %s151
    %p165 = scmp.eq.s32.totalorder %s32, 1
    %p166 = por %p164, %p165
    %p168 = scmp.ne.s32.totalorder %s151, %s167
    %p169 = scmp.eq.s32.totalorder %s32, 0
    %p170 = por %p168, %p169
    %s171 = ssub.s32 %s34, %s41
    %p172 = scmp.eq.s32.totalorder %s171, 0
    %s174 = sadd.s32 %s173, 1
    %s175 = scalar_select %p172, %s173, %s174
    %p178 = pneg %p172
    %p179 = scmp.eq.s32.totalorder %s26, 1
    %p180 = por %p178, %p179
    %p181 = scmp.ne.s32.totalorder %s173, %s176
    %p182 = scmp.eq.s32.totalorder %s26, 0
    %p183 = por %p181, %p182
    %p184 = scmp.ne.s32.totalorder %s173, %s176
    %p185 = scmp.eq.s32.totalorder %s31, 1
    %p186 = por %p184, %p185
    %p187 = scmp.ne.s32.totalorder %s176, %s177
    %p188 = scmp.eq.s32.totalorder %s31, 0
    %p189 = por %p187, %p188
    %p190 = scmp.ne.s32.totalorder %s176, %s177
    %p191 = scmp.eq.s32.totalorder %s32, 1
    %p192 = por %p190, %p191
    %p194 = scmp.ne.s32.totalorder %s177, %s193
    %p195 = scmp.eq.s32.totalorder %s32, 0
    %p196 = por %p194, %p195
    %s197 = ssub.s32 %s34, %s41
    %p198 = scmp.eq.s32.totalorder %s197, 0
    %s200 = sadd.s32 %s199, 1
    %s201 = scalar_select %p198, %s199, %s200
    %p204 = pneg %p198
    %p205 = scmp.eq.s32.totalorder %s26, 1
    %p206 = por %p204, %p205
    %p207 = scmp.ne.s32.totalorder %s199, %s202
    %p208 = scmp.eq.s32.totalorder %s26, 0
    %p209 = por %p207, %p208
    %p210 = scmp.ne.s32.totalorder %s199, %s202
    %p211 = scmp.eq.s32.totalorder %s31, 1
    %p212 = por %p210, %p211
    %p213 = scmp.ne.s32.totalorder %s202, %s203
    %p214 = scmp.eq.s32.totalorder %s31, 0
    %p215 = por %p213, %p214
    %p216 = scmp.ne.s32.totalorder %s202, %s203
    %p217 = scmp.eq.s32.totalorder %s32, 1
    %p218 = por %p216, %p217
    %p220 = scmp.ne.s32.totalorder %s203, %s219
    %p221 = scmp.eq.s32.totalorder %s32, 0
    %p222 = por %p220, %p221
    %s223 = ssub.s32 %s34, %s41
    %p224 = scmp.eq.s32.totalorder %s223, 0
    %s226 = sadd.s32 %s225, 1
    %s227 = scalar_select %p224, %s225, %s226
    %p230 = pneg %p224
    %p231 = scmp.eq.s32.totalorder %s26, 1
    %p232 = por %p230, %p231
    %p233 = scmp.ne.s32.totalorder %s225, %s228
    %p234 = scmp.eq.s32.totalorder %s26, 0
    %p235 = por %p233, %p234
    %p236 = scmp.ne.s32.totalorder %s225, %s228
    %p237 = scmp.eq.s32.totalorder %s31, 1
    %p238 = por %p236, %p237
    %p239 = scmp.ne.s32.totalorder %s228, %s229
    %p240 = scmp.eq.s32.totalorder %s31, 0
    %p241 = por %p239, %p240
    %p242 = scmp.ne.s32.totalorder %s228, %s229
    %p243 = scmp.eq.s32.totalorder %s32, 1
    %p244 = por %p242, %p243
    %p246 = scmp.ne.s32.totalorder %s229, %s245
    %p247 = scmp.eq.s32.totalorder %s32, 0
    %p248 = por %p246, %p247
    %s249 = ssub.s32 %s34, %s41
    %p250 = scmp.eq.s32.totalorder %s249, 0
    %s252 = sadd.s32 %s251, 1
    %s253 = scalar_select %p250, %s251, %s252
    %p256 = pneg %p250
    %p257 = scmp.eq.s32.totalorder %s26, 1
    %p258 = por %p256, %p257
    %p259 = scmp.ne.s32.totalorder %s251, %s254
    %p260 = scmp.eq.s32.totalorder %s26, 0
    %p261 = por %p259, %p260
    %p262 = scmp.ne.s32.totalorder %s251, %s254
    %p263 = scmp.eq.s32.totalorder %s31, 1
    %p264 = por %p262, %p263
    %p265 = scmp.ne.s32.totalorder %s254, %s255
    %p266 = scmp.eq.s32.totalorder %s31, 0
    %p267 = por %p265, %p266
    %p268 = scmp.ne.s32.totalorder %s254, %s255
    %p269 = scmp.eq.s32.totalorder %s32, 1
    %p270 = por %p268, %p269
    %p272 = scmp.ne.s32.totalorder %s255, %s271
    %p273 = scmp.eq.s32.totalorder %s32, 0
    %p274 = por %p272, %p273
    %s275 = ssub.s32 %s34, %s41
    %p276 = scmp.eq.s32.totalorder %s275, 0
    %s278 = sadd.s32 %s277, 1
    %s279 = scalar_select %p276, %s277, %s278
    %p282 = pneg %p276
    %p283 = scmp.eq.s32.totalorder %s26, 1
    %p284 = por %p282, %p283
    %p285 = scmp.ne.s32.totalorder %s277, %s280
    %p286 = scmp.eq.s32.totalorder %s26, 0
    %p287 = por %p285, %p286
    %p288 = scmp.ne.s32.totalorder %s277, %s280
    %p289 = scmp.eq.s32.totalorder %s31, 1
    %p290 = por %p288, %p289
    %p291 = scmp.ne.s32.totalorder %s280, %s281
    %p292 = scmp.eq.s32.totalorder %s31, 0
    %p293 = por %p291, %p292
    %p294 = scmp.ne.s32.totalorder %s280, %s281
    %p295 = scmp.eq.s32.totalorder %s32, 1
    %p296 = por %p294, %p295
    %p298 = scmp.ne.s32.totalorder %s281, %s297
    %p299 = scmp.eq.s32.totalorder %s32, 0
    %p300 = por %p298, %p299
    %s301 = ssub.s32 %s34, %s41
    %p302 = scmp.eq.s32.totalorder %s301, 0
    %s304 = sadd.s32 %s303, 1
    %s305 = scalar_select %p302, %s303, %s304
    %p308 = pneg %p302
    %p309 = scmp.eq.s32.totalorder %s26, 1
    %p310 = por %p308, %p309
    %p311 = scmp.ne.s32.totalorder %s303, %s306
    %p312 = scmp.eq.s32.totalorder %s26, 0
    %p313 = por %p311, %p312
    %p314 = scmp.ne.s32.totalorder %s303, %s306
    %p315 = scmp.eq.s32.totalorder %s31, 1
    %p316 = por %p314, %p315
    %p317 = scmp.ne.s32.totalorder %s306, %s307
    %p318 = scmp.eq.s32.totalorder %s31, 0
    %p319 = por %p317, %p318
    %p320 = scmp.ne.s32.totalorder %s306, %s307
    %p321 = scmp.eq.s32.totalorder %s32, 1
    %p322 = por %p320, %p321
    %p324 = scmp.ne.s32.totalorder %s307, %s323
    %p325 = scmp.eq.s32.totalorder %s32, 0
    %p326 = por %p324, %p325
    %s327 = ssub.s32 %s34, %s41
    %p328 = scmp.eq.s32.totalorder %s327, 0
    %s330 = sadd.s32 %s329, 1
    %s331 = scalar_select %p328, %s329, %s330
    %p334 = pneg %p328
    %p335 = scmp.eq.s32.totalorder %s26, 1
    %p336 = por %p334, %p335
    %p337 = scmp.ne.s32.totalorder %s329, %s332
    %p338 = scmp.eq.s32.totalorder %s26, 0
    %p339 = por %p337, %p338
    %p340 = scmp.ne.s32.totalorder %s329, %s332
    %p341 = scmp.eq.s32.totalorder %s31, 1
    %p342 = por %p340, %p341
    %p343 = scmp.ne.s32.totalorder %s332, %s333
    %p344 = scmp.eq.s32.totalorder %s31, 0
    %p345 = por %p343, %p344
    %p346 = scmp.ne.s32.totalorder %s332, %s333
    %p347 = scmp.eq.s32.totalorder %s32, 1
    %p348 = por %p346, %p347
    %p350 = scmp.ne.s32.totalorder %s333, %s349
    %p351 = scmp.eq.s32.totalorder %s32, 0
    %p352 = por %p350, %p351
    %s353 = ssub.s32 %s34, %s41
    %p354 = scmp.eq.s32.totalorder %s353, 0
    %s356 = sadd.s32 %s355, 1
    %s357 = scalar_select %p354, %s355, %s356
    %p360 = pneg %p354
    %p361 = scmp.eq.s32.totalorder %s26, 1
    %p362 = por %p360, %p361
    %p363 = scmp.ne.s32.totalorder %s355, %s358
    %p364 = scmp.eq.s32.totalorder %s26, 0
    %p365 = por %p363, %p364
    %p366 = scmp.ne.s32.totalorder %s355, %s358
    %p367 = scmp.eq.s32.totalorder %s31, 1
    %p368 = por %p366, %p367
    %p369 = scmp.ne.s32.totalorder %s358, %s359
    %p370 = scmp.eq.s32.totalorder %s31, 0
    %p371 = por %p369, %p370
    %p372 = scmp.ne.s32.totalorder %s358, %s359
    %p373 = scmp.eq.s32.totalorder %s32, 1
    %p374 = por %p372, %p373
    %p376 = scmp.ne.s32.totalorder %s359, %s375
    %p377 = scmp.eq.s32.totalorder %s32, 0
    %p378 = por %p376, %p377
    %s379 = ssub.s32 %s34, %s41
    %p380 = scmp.eq.s32.totalorder %s379, 0
    %s382 = sadd.s32 %s381, 1
    %s383 = scalar_select %p380, %s381, %s382
    %p386 = pneg %p380
    %p387 = scmp.eq.s32.totalorder %s26, 1
    %p388 = por %p386, %p387
    %p389 = scmp.ne.s32.totalorder %s381, %s384
    %p390 = scmp.eq.s32.totalorder %s26, 0
    %p391 = por %p389, %p390
    %p392 = scmp.ne.s32.totalorder %s381, %s384
    %p393 = scmp.eq.s32.totalorder %s31, 1
    %p394 = por %p392, %p393
    %p395 = scmp.ne.s32.totalorder %s384, %s385
    %p396 = scmp.eq.s32.totalorder %s31, 0
    %p397 = por %p395, %p396
    %p398 = scmp.ne.s32.totalorder %s384, %s385
    %p399 = scmp.eq.s32.totalorder %s32, 1
    %p400 = por %p398, %p399
    %p402 = scmp.ne.s32.totalorder %s385, %s401
    %p403 = scmp.eq.s32.totalorder %s32, 0
    %p404 = por %p402, %p403
    %s405 = ssub.s32 %s34, %s41
    %p406 = scmp.eq.s32.totalorder %s405, 0
    %s408 = sadd.s32 %s407, 1
    %s409 = scalar_select %p406, %s407, %s408
    %p412 = pneg %p406
    %p413 = scmp.eq.s32.totalorder %s26, 1
    %p414 = por %p412, %p413
    %p415 = scmp.ne.s32.totalorder %s407, %s410
    %p416 = scmp.eq.s32.totalorder %s26, 0
    %p417 = por %p415, %p416
    %p418 = scmp.ne.s32.totalorder %s407, %s410
    %p419 = scmp.eq.s32.totalorder %s31, 1
    %p420 = por %p418, %p419
    %p421 = scmp.ne.s32.totalorder %s410, %s411
    %p422 = scmp.eq.s32.totalorder %s31, 0
    %p423 = por %p421, %p422
    %p424 = scmp.ne.s32.totalorder %s410, %s411
    %p425 = scmp.eq.s32.totalorder %s32, 1
    %p426 = por %p424, %p425
    %p428 = scmp.ne.s32.totalorder %s411, %s427
    %p429 = scmp.eq.s32.totalorder %s32, 0
    %p430 = por %p428, %p429
    %s432 = sadd.s32 %s431, 1
    %p435 = scmp.eq.s32.totalorder %s26, 1
    %p436 = scmp.ne.s32.totalorder %s431, %s433
    %p437 = scmp.eq.s32.totalorder %s26, 0
    %p438 = por %p436, %p437
    %p439 = scmp.ne.s32.totalorder %s431, %s433
    %p440 = scmp.eq.s32.totalorder %s31, 1
    %p441 = por %p439, %p440
    %p442 = scmp.ne.s32.totalorder %s433, %s434
    %p443 = scmp.eq.s32.totalorder %s31, 0
    %p444 = por %p442, %p443
    %p445 = scmp.ne.s32.totalorder %s433, %s434
    %p446 = scmp.eq.s32.totalorder %s32, 1
    %p447 = por %p445, %p446
    %p449 = scmp.ne.s32.totalorder %s434, %s448
    %p450 = scmp.eq.s32.totalorder %s32, 0
    %p451 = por %p449, %p450
    %s453 = sadd.s32 %s452, 1
    %p456 = scmp.eq.s32.totalorder %s26, 1
    %p457 = scmp.ne.s32.totalorder %s452, %s454
    %p458 = scmp.eq.s32.totalorder %s26, 0
    %p459 = por %p457, %p458
    %p460 = scmp.ne.s32.totalorder %s452, %s454
    %p461 = scmp.eq.s32.totalorder %s31, 1
    %p462 = por %p460, %p461
    %p463 = scmp.ne.s32.totalorder %s454, %s455
    %p464 = scmp.eq.s32.totalorder %s31, 0
    %p465 = por %p463, %p464
    %p466 = scmp.ne.s32.totalorder %s454, %s455
    %p467 = scmp.eq.s32.totalorder %s32, 1
    %p468 = por %p466, %p467
    %p470 = scmp.ne.s32.totalorder %s455, %s469
    %p471 = scmp.eq.s32.totalorder %s32, 0
    %p472 = por %p470, %p471
    %s473 = ssub.s32 %s33, %s45
    %p474 = scmp.eq.s32.totalorder %s473, 0
    %s476 = sadd.s32 %s475, 1
    %s477 = scalar_select %p474, %s475, %s476
    %p480 = pneg %p474
    %p481 = scmp.eq.s32.totalorder %s26, 1
    %p482 = por %p480, %p481
    %p483 = scmp.ne.s32.totalorder %s475, %s478
    %p484 = scmp.eq.s32.totalorder %s26, 0
    %p485 = por %p483, %p484
    %p486 = scmp.ne.s32.totalorder %s475, %s478
    %p487 = scmp.eq.s32.totalorder %s31, 1
    %p488 = por %p486, %p487
    %p489 = scmp.ne.s32.totalorder %s478, %s479
    %p490 = scmp.eq.s32.totalorder %s31, 0
    %p491 = por %p489, %p490
    %p492 = scmp.ne.s32.totalorder %s478, %s479
    %p493 = scmp.eq.s32.totalorder %s32, 1
    %p494 = por %p492, %p493
    %p496 = scmp.ne.s32.totalorder %s479, %s495
    %p497 = scmp.eq.s32.totalorder %s32, 0
    %p498 = por %p496, %p497
    %s499 = ssub.s32 %s33, %s45
    %p500 = scmp.eq.s32.totalorder %s499, 0
    %s502 = sadd.s32 %s501, 1
    %s503 = scalar_select %p500, %s501, %s502
    %p506 = pneg %p500
    %p507 = scmp.eq.s32.totalorder %s26, 1
    %p508 = por %p506, %p507
    %p509 = scmp.ne.s32.totalorder %s501, %s504
    %p510 = scmp.eq.s32.totalorder %s26, 0
    %p511 = por %p509, %p510
    %p512 = scmp.ne.s32.totalorder %s501, %s504
    %p513 = scmp.eq.s32.totalorder %s31, 1
    %p514 = por %p512, %p513
    %p515 = scmp.ne.s32.totalorder %s504, %s505
    %p516 = scmp.eq.s32.totalorder %s31, 0
    %p517 = por %p515, %p516
    %p518 = scmp.ne.s32.totalorder %s504, %s505
    %p519 = scmp.eq.s32.totalorder %s32, 1
    %p520 = por %p518, %p519
    %p522 = scmp.ne.s32.totalorder %s505, %s521
    %p523 = scmp.eq.s32.totalorder %s32, 0
    %p524 = por %p522, %p523
    %s525 = ssub.s32 %s33, %s45
    %p526 = scmp.eq.s32.totalorder %s525, 0
    %s528 = sadd.s32 %s527, 1
    %s529 = scalar_select %p526, %s527, %s528
    %p532 = pneg %p526
    %p533 = scmp.eq.s32.totalorder %s26, 1
    %p534 = por %p532, %p533
    %p535 = scmp.ne.s32.totalorder %s527, %s530
    %p536 = scmp.eq.s32.totalorder %s26, 0
    %p537 = por %p535, %p536
    %p538 = scmp.ne.s32.totalorder %s527, %s530
    %p539 = scmp.eq.s32.totalorder %s31, 1
    %p540 = por %p538, %p539
    %p541 = scmp.ne.s32.totalorder %s530, %s531
    %p542 = scmp.eq.s32.totalorder %s31, 0
    %p543 = por %p541, %p542
    %p544 = scmp.ne.s32.totalorder %s530, %s531
    %p545 = scmp.eq.s32.totalorder %s32, 1
    %p546 = por %p544, %p545
    %p548 = scmp.ne.s32.totalorder %s531, %s547
    %p549 = scmp.eq.s32.totalorder %s32, 0
    %p550 = por %p548, %p549
    %p551 = scmp.le.s32.totalorder 1, %s26
    %p552 = scmp.lt.s32.totalorder %s26, 3
    %p553 = pnand %p551, %p552
    %p554 = pneg %p553
    // Predicated region
    $region9: #{_clip_forward_all.1} parent=5 // pred_check
      _
    $region10: #{_clip_forward_all.1} parent=5 // pred_check_branch
      %556 = sbr.rel (%p553) target = $region12
    $region11: #{_clip_forward_all.1} parent=5 // pred_region
      %s557 = ssub.s32 %s26, 1
      // Predicated region
      $region13: #{_clip_forward_all.1} parent=11 // pred_check
        %p558 = pneg %p111
      $region14: #{_clip_forward_all.1} parent=11 // pred_check_branch
        %560 = sbr.rel (%p558) target = $region16
      $region15: #{_clip_forward_all.1} parent=11 // pred_region
        _
      $region16: #{_clip_forward_all.1} parent=11 // pred_fallthru
        _
      // Predicated region
      $region17: #{_clip_forward_all.1} parent=11 // pred_check
        %p561 = pneg %p137
      $region18: #{_clip_forward_all.1} parent=11 // pred_check_branch
        %563 = sbr.rel (%p561) target = $region20
      $region19: #{_clip_forward_all.1} parent=11 // pred_region
        %p564 = scmp.lt.s32.totalorder %s36, 0
        %s565 = scalar_select %p564, %s36, 0
        %s566 = scalar_lea.vmem %s3, %s565
      $region20: #{_clip_forward_all.1} parent=11 // pred_fallthru
        _
      // Predicated region
      $region21: #{_clip_forward_all.1} parent=11 // pred_check
        %p567 = pneg %p163
      $region22: #{_clip_forward_all.1} parent=11 // pred_check_branch
        %569 = sbr.rel (%p567) target = $region24
      $region23: #{_clip_forward_all.1} parent=11 // pred_region
        %p570 = scmp.lt.s32.totalorder %s36, 0
        %s571 = scalar_select %p570, %s36, 0
        %s572 = scalar_lea.vmem %s4, %s571
      $region24: #{_clip_forward_all.1} parent=11 // pred_fallthru
        _
      // Predicated region
      $region25: #{_clip_forward_all.1} parent=11 // pred_check
        %p573 = pneg %p189
      $region26: #{_clip_forward_all.1} parent=11 // pred_check_branch
        %575 = sbr.rel (%p573) target = $region28
      $region27: #{_clip_forward_all.1} parent=11 // pred_region
        %p576 = scmp.lt.s32.totalorder %s36, 0
        %s577 = scalar_select %p576, %s36, 0
        %s578 = smul.addr %s577, 48
        %s579 = smul.addr %s578, 4
        %s580 = scalar_lea.vmem %s5, %s579
      $region28: #{_clip_forward_all.1} parent=11 // pred_fallthru
        _
      // Predicated region
      $region29: #{_clip_forward_all.1} parent=11 // pred_check
        %p581 = pneg %p215
      $region30: #{_clip_forward_all.1} parent=11 // pred_check_branch
        %583 = sbr.rel (%p581) target = $region32
      $region31: #{_clip_forward_all.1} parent=11 // pred_region
        %p584 = scmp.lt.s32.totalorder %s36, 0
        %s585 = scalar_select %p584, %s36, 0
        %s586 = smul.addr %s585, 3
        %s587 = scalar_lea.vmem %s6, %s586
      $region32: #{_clip_forward_all.1} parent=11 // pred_fallthru
        _
      // Predicated region
      $region33: #{_clip_forward_all.1} parent=11 // pred_check
        %p588 = pneg %p241
      $region34: #{_clip_forward_all.1} parent=11 // pred_check_branch
        %590 = sbr.rel (%p588) target = $region36
      $region35: #{_clip_forward_all.1} parent=11 // pred_region
        %p591 = scmp.lt.s32.totalorder %s36, 0
        %s592 = scalar_select %p591, %s36, 0
        %s593 = smul.addr %s592, 16
        %s594 = smul.addr %s593, 4
        %s595 = scalar_lea.vmem %s7, %s594
      $region36: #{_clip_forward_all.1} parent=11 // pred_fallthru
        _
      // Predicated region
      $region37: #{_clip_forward_all.1} parent=11 // pred_check
        %p596 = pneg %p267
      $region38: #{_clip_forward_all.1} parent=11 // pred_check_branch
        %598 = sbr.rel (%p596) target = $region40
      $region39: #{_clip_forward_all.1} parent=11 // pred_region
        %p599 = scmp.lt.s32.totalorder %s36, 0
        %s600 = scalar_select %p599, %s36, 0
        %s601 = scalar_lea.vmem %s8, %s600
      $region40: #{_clip_forward_all.1} parent=11 // pred_fallthru
        _
      // Predicated region
      $region41: #{_clip_forward_all.1} parent=11 // pred_check
        %p602 = pneg %p293
      $region42: #{_clip_forward_all.1} parent=11 // pred_check_branch
        %604 = sbr.rel (%p602) target = $region44
      $region43: #{_clip_forward_all.1} parent=11 // pred_region
        %p605 = scmp.lt.s32.totalorder %s36, 0
        %s606 = scalar_select %p605, %s36, 0
        %s607 = scalar_lea.vmem %s9, %s606
      $region44: #{_clip_forward_all.1} parent=11 // pred_fallthru
        _
      // Predicated region
      $region45: #{_clip_forward_all.1} parent=11 // pred_check
        %p608 = pneg %p319
      $region46: #{_clip_forward_all.1} parent=11 // pred_check_branch
        %610 = sbr.rel (%p608) target = $region48
      $region47: #{_clip_forward_all.1} parent=11 // pred_region
        %p611 = scmp.lt.s32.totalorder %s36, 0
        %s612 = scalar_select %p611, %s36, 0
        %s613 = scalar_lea.vmem %s10, %s612
      $region48: #{_clip_forward_all.1} parent=11 // pred_fallthru
        _
      // Predicated region
      $region49: #{_clip_forward_all.1} parent=11 // pred_check
        %p614 = pneg %p345
      $region50: #{_clip_forward_all.1} parent=11 // pred_check_branch
        %616 = sbr.rel (%p614) target = $region52
      $region51: #{_clip_forward_all.1} parent=11 // pred_region
        %p617 = scmp.lt.s32.totalorder %s36, 0
        %s618 = scalar_select %p617, %s36, 0
        %s619 = smul.addr %s618, 64
        %s620 = smul.addr %s619, 4
        %s621 = scalar_lea.vmem %s11, %s620
      $region52: #{_clip_forward_all.1} parent=11 // pred_fallthru
        _
      // Predicated region
      $region53: #{_clip_forward_all.1} parent=11 // pred_check
        %p622 = pneg %p371
      $region54: #{_clip_forward_all.1} parent=11 // pred_check_branch
        %624 = sbr.rel (%p622) target = $region56
      $region55: #{_clip_forward_all.1} parent=11 // pred_region
        %p625 = scmp.lt.s32.totalorder %s36, 0
        %s626 = scalar_select %p625, %s36, 0
        %s627 = smul.addr %s626, 4
        %s628 = scalar_lea.vmem %s12, %s627
      $region56: #{_clip_forward_all.1} parent=11 // pred_fallthru
        _
      // Predicated region
      $region57: #{_clip_forward_all.1} parent=11 // pred_check
        %p629 = pneg %p397
      $region58: #{_clip_forward_all.1} parent=11 // pred_check_branch
        %631 = sbr.rel (%p629) target = $region60
      $region59: #{_clip_forward_all.1} parent=11 // pred_region
        %p632 = scmp.lt.s32.totalorder %s36, 0
        %s633 = scalar_select %p632, %s36, 0
        %s634 = smul.addr %s633, 64
        %s635 = smul.addr %s634, 4
        %s636 = scalar_lea.vmem %s13, %s635
      $region60: #{_clip_forward_all.1} parent=11 // pred_fallthru
        _
      // Predicated region
      $region61: #{_clip_forward_all.1} parent=11 // pred_check
        %p637 = pneg %p423
      $region62: #{_clip_forward_all.1} parent=11 // pred_check_branch
        %639 = sbr.rel (%p637) target = $region64
      $region63: #{_clip_forward_all.1} parent=11 // pred_region
        %p640 = scmp.lt.s32.totalorder %s36, 0
        %s641 = scalar_select %p640, %s36, 0
        %s642 = scalar_lea.vmem %s14, %s641
      $region64: #{_clip_forward_all.1} parent=11 // pred_fallthru
        _
      // Predicated region
      $region65: #{_clip_forward_all.1} parent=11 // pred_check
        %p643 = pneg %p444
      $region66: #{_clip_forward_all.1} parent=11 // pred_check_branch
        %645 = sbr.rel (%p643) target = $region68
      $region67: #{_clip_forward_all.1} parent=11 // pred_region
        _
      $region68: #{_clip_forward_all.1} parent=11 // pred_fallthru
        _
      // Predicated region
      $region69: #{_clip_forward_all.1} parent=11 // pred_check
        %p646 = pneg %p465
      $region70: #{_clip_forward_all.1} parent=11 // pred_check_branch
        %648 = sbr.rel (%p646) target = $region72
      $region71: #{_clip_forward_all.1} parent=11 // pred_region
        _
      $region72: #{_clip_forward_all.1} parent=11 // pred_fallthru
        _
    $region12: #{_clip_forward_all.1} parent=5 // pred_fallthru
      _
    %p649 = scmp.lt.s32.totalorder %s26, 2
    // Predicated region
    $region73: #{_clip_forward_all.1} parent=5 // pred_check
      %p650 = pneg %p649
    $region74: #{_clip_forward_all.1} parent=5 // pred_check_branch
      %652 = sbr.rel (%p650) target = $region76
    $region75: #{_clip_forward_all.1} parent=5 // pred_region
      // Predicated region
      $region77: #{_clip_forward_all.1} parent=75 // pred_check
        %p653 = pneg %p58
      $region78: #{_clip_forward_all.1} parent=75 // pred_check_branch
        %655 = sbr.rel (%p653) target = $region80
      $region79: #{_clip_forward_all.1} parent=75 // pred_region
        %p656 = scmp.lt.s32.totalorder %s33, 1
        %s657 = scalar_select %p656, %s33, 1
        %s658 = smul.addr %s657, 16
        %s659 = smul.addr %s658, 8
        %s660 = scalar_lea.vmem %s0, %s659
      $region80: #{_clip_forward_all.1} parent=75 // pred_fallthru
        _
      // Predicated region
      $region81: #{_clip_forward_all.1} parent=75 // pred_check
        %p661 = pneg %p84
      $region82: #{_clip_forward_all.1} parent=75 // pred_check_branch
        %663 = sbr.rel (%p661) target = $region84
      $region83: #{_clip_forward_all.1} parent=75 // pred_region
        %p664 = scmp.lt.s32.totalorder %s33, 1
        %s665 = scalar_select %p664, %s33, 1
        %s666 = smul.addr %s665, 16
        %s667 = smul.addr %s666, 8
        %s668 = scalar_lea.vmem %s1, %s667
      $region84: #{_clip_forward_all.1} parent=75 // pred_fallthru
        _
    $region76: #{_clip_forward_all.1} parent=5 // pred_fallthru
      _
    %p669 = scmp.le.s32.totalorder 1, %s26
    %p670 = scmp.lt.s32.totalorder %s26, 3
    %p671 = pnand %p669, %p670
    %p672 = pneg %p671
    // Predicated region
    $region85: #{_clip_forward_all.1} parent=5 // pred_check
      _
    $region86: #{_clip_forward_all.1} parent=5 // pred_check_branch
      %674 = sbr.rel (%p671) target = $region88
    $region87: #{_clip_forward_all.1} parent=5 // pred_region
      %s675 = ssub.s32 %s26, 1
      %p676 = scmp.lt.s32.totalorder %s35, 1
      %s677 = scalar_select %p676, %s35, 1
      %s678 = smul.addr %s677, 16
      %s679 = smul.addr %s678, 8
      %s680 = scalar_lea.vmem %s0, %s679
      %p681 = pneg %p64
      %p682 = pneg %p61
      %p683 = scmp.lt.s32.totalorder %s35, 1
      %s684 = scalar_select %p683, %s35, 1
      %s685 = smul.addr %s684, 16
      %s686 = smul.addr %s685, 8
      %s687 = scalar_lea.vmem %s1, %s686
      %p688 = pneg %p90
      %p689 = pneg %p87
      %p690 = pneg %p111
      %p691 = pneg %p108
      %p692 = scmp.lt.s32.totalorder %s36, 0
      %s693 = scalar_select %p692, %s36, 0
      %s694 = scalar_lea.vmem %s3, %s693
      %p695 = pneg %p137
      %p696 = pneg %p134
      %p697 = scmp.lt.s32.totalorder %s36, 0
      %s698 = scalar_select %p697, %s36, 0
      %s699 = scalar_lea.vmem %s4, %s698
      %p700 = pneg %p163
      %p701 = pneg %p160
      %p702 = scmp.lt.s32.totalorder %s36, 0
      %s703 = scalar_select %p702, %s36, 0
      %s704 = smul.addr %s703, 48
      %s705 = smul.addr %s704, 4
      %s706 = scalar_lea.vmem %s5, %s705
      %p707 = pneg %p189
      %p708 = pneg %p186
      %p709 = scmp.lt.s32.totalorder %s36, 0
      %s710 = scalar_select %p709, %s36, 0
      %s711 = smul.addr %s710, 3
      %s712 = scalar_lea.vmem %s6, %s711
      %p713 = pneg %p215
      %p714 = pneg %p212
      %p715 = scmp.lt.s32.totalorder %s36, 0
      %s716 = scalar_select %p715, %s36, 0
      %s717 = smul.addr %s716, 16
      %s718 = smul.addr %s717, 4
      %s719 = scalar_lea.vmem %s7, %s718
      %p720 = pneg %p241
      %p721 = pneg %p238
      %p722 = scmp.lt.s32.totalorder %s36, 0
      %s723 = scalar_select %p722, %s36, 0
      %s724 = scalar_lea.vmem %s8, %s723
      %p725 = pneg %p267
      %p726 = pneg %p264
      %p727 = scmp.lt.s32.totalorder %s36, 0
      %s728 = scalar_select %p727, %s36, 0
      %s729 = scalar_lea.vmem %s9, %s728
      %p730 = pneg %p293
      %p731 = pneg %p290
      %p732 = scmp.lt.s32.totalorder %s36, 0
      %s733 = scalar_select %p732, %s36, 0
      %s734 = scalar_lea.vmem %s10, %s733
      %p735 = pneg %p319
      %p736 = pneg %p316
      %p737 = scmp.lt.s32.totalorder %s36, 0
      %s738 = scalar_select %p737, %s36, 0
      %s739 = smul.addr %s738, 64
      %s740 = smul.addr %s739, 4
      %s741 = scalar_lea.vmem %s11, %s740
      %p742 = pneg %p345
      %p743 = pneg %p342
      %p744 = scmp.lt.s32.totalorder %s36, 0
      %s745 = scalar_select %p744, %s36, 0
      %s746 = smul.addr %s745, 4
      %s747 = scalar_lea.vmem %s12, %s746
      %p748 = pneg %p371
      %p749 = pneg %p368
      %p750 = scmp.lt.s32.totalorder %s36, 0
      %s751 = scalar_select %p750, %s36, 0
      %s752 = smul.addr %s751, 64
      %s753 = smul.addr %s752, 4
      %s754 = scalar_lea.vmem %s13, %s753
      %p755 = pneg %p397
      %p756 = pneg %p394
      %p757 = scmp.lt.s32.totalorder %s36, 0
      %s758 = scalar_select %p757, %s36, 0
      %s759 = scalar_lea.vmem %s14, %s758
      %p760 = pneg %p423
      %p761 = pneg %p420
      %p762 = pneg %p444
      %p763 = pneg %p441
      %p764 = pneg %p465
      %p765 = pneg %p462
      %p766 = pneg %p491
      %p767 = pneg %p488
      %p768 = scmp.lt.s32.totalorder %s35, 1
      %s769 = scalar_select %p768, %s35, 1
      %s770 = smul.addr %s769, 16
      %s771 = smul.addr %s770, 8
      %s772 = scalar_lea.vmem %s17, %s771
      %p773 = pneg %p517
      %p774 = pneg %p514
      %p775 = scmp.lt.s32.totalorder %s35, 1
      %s776 = scalar_select %p775, %s35, 1
      %s777 = scalar_lea.vmem %s18, %s776
      %p778 = pneg %p543
      %p779 = pneg %p540
      %p780 = scmp.lt.s32.totalorder %s35, 1
      %s781 = scalar_select %p780, %s35, 1
      %s782 = scalar_lea.vmem %s19, %s781
      %p783 = scmp.lt.s32.totalorder %s35, 1
      %s784 = scalar_select %p783, %s35, 1
      %s785 = smul.addr %s784, 16
      %s786 = smul.addr %s785, 8
      %s787 = scalar_lea.vmem %s0, %s786
      %p788 = scmp.lt.s32.totalorder %s35, 1
      %s789 = scalar_select %p788, %s35, 1
      %s790 = smul.addr %s789, 16
      %s791 = smul.addr %s790, 8
      %s792 = scalar_lea.vmem %s1, %s791
      %p793 = scmp.lt.s32.totalorder %s36, 0
      %s794 = scalar_select %p793, %s36, 0
      %s795 = scalar_lea.vmem %s3, %s794
      %p796 = scmp.lt.s32.totalorder %s36, 0
      %s797 = scalar_select %p796, %s36, 0
      %s798 = scalar_lea.vmem %s4, %s797
      %p799 = scmp.lt.s32.totalorder %s36, 0
      %s800 = scalar_select %p799, %s36, 0
      %s801 = smul.addr %s800, 48
      %s802 = smul.addr %s801, 4
      %s803 = scalar_lea.vmem %s5, %s802
      %p804 = scmp.lt.s32.totalorder %s36, 0
      %s805 = scalar_select %p804, %s36, 0
      %s806 = smul.addr %s805, 3
      %s807 = scalar_lea.vmem %s6, %s806
      %p808 = scmp.lt.s32.totalorder %s36, 0
      %s809 = scalar_select %p808, %s36, 0
      %s810 = smul.addr %s809, 16
      %s811 = smul.addr %s810, 4
      %s812 = scalar_lea.vmem %s7, %s811
      %p813 = scmp.lt.s32.totalorder %s36, 0
      %s814 = scalar_select %p813, %s36, 0
      %s815 = scalar_lea.vmem %s8, %s814
      %p816 = scmp.lt.s32.totalorder %s36, 0
      %s817 = scalar_select %p816, %s36, 0
      %s818 = scalar_lea.vmem %s9, %s817
      %p819 = scmp.lt.s32.totalorder %s36, 0
      %s820 = scalar_select %p819, %s36, 0
      %s821 = scalar_lea.vmem %s10, %s820
      %p822 = scmp.lt.s32.totalorder %s36, 0
      %s823 = scalar_select %p822, %s36, 0
      %s824 = smul.addr %s823, 64
      %s825 = smul.addr %s824, 4
      %s826 = scalar_lea.vmem %s11, %s825
      %p827 = scmp.lt.s32.totalorder %s36, 0
      %s828 = scalar_select %p827, %s36, 0
      %s829 = smul.addr %s828, 4
      %s830 = scalar_lea.vmem %s12, %s829
      %p831 = scmp.lt.s32.totalorder %s36, 0
      %s832 = scalar_select %p831, %s36, 0
      %s833 = smul.addr %s832, 64
      %s834 = smul.addr %s833, 4
      %s835 = scalar_lea.vmem %s13, %s834
      %p836 = scmp.lt.s32.totalorder %s36, 0
      %s837 = scalar_select %p836, %s36, 0
      %s838 = scalar_lea.vmem %s14, %s837
      %p839 = scmp.lt.s32.totalorder %s35, 1
      %s840 = scalar_select %p839, %s35, 1
      %s841 = smul.addr %s840, 16
      %s842 = smul.addr %s841, 8
      %s843 = scalar_lea.vmem %s17, %s842
      %p844 = scmp.lt.s32.totalorder %s35, 1
      %s845 = scalar_select %p844, %s35, 1
      %s846 = scalar_lea.vmem %s18, %s845
      %p847 = scmp.lt.s32.totalorder %s35, 1
      %s848 = scalar_select %p847, %s35, 1
      %s849 = scalar_lea.vmem %s19, %s848
      %p851 = scmp.eq.s32.totalorder %s36, 0
      // Predicated region
      $region89: #{_clip_forward_all.1} parent=87 // pred_check
        %p852 = pneg %p851
      $region90: #{_clip_forward_all.1} parent=87 // pred_check_branch
        %854 = sbr.rel (%p852) target = $region92
      $region91: #{_clip_forward_all.1} parent=87 // pred_region
        %v855 = vld [vmem:[%s787] sm:$0xff]
        %v856 = vld [vmem:[%s787 + $0x8] sm:$0xff]
        %v857 = vld [vmem:[%s787 + $0x10] sm:$0xff]
        %v858 = vld [vmem:[%s787 + $0x18] sm:$0xff]
        %v859 = vld [vmem:[%s787 + $0x20] sm:$0xff]
        %v860 = vld [vmem:[%s787 + $0x28] sm:$0xff]
        %v861 = vld [vmem:[%s787 + $0x30] sm:$0xff]
        %v862 = vld [vmem:[%s787 + $0x38] sm:$0xff]
        %v863 = vld [vmem:[%s787 + $0x40] sm:$0xff]
        %v864 = vld [vmem:[%s787 + $0x48] sm:$0xff]
        %v865 = vld [vmem:[%s787 + $0x50] sm:$0xff]
        %v866 = vld [vmem:[%s787 + $0x58] sm:$0xff]
        %v867 = vld [vmem:[%s787 + $0x60] sm:$0xff]
        %v868 = vld [vmem:[%s787 + $0x68] sm:$0xff]
        %v869 = vld [vmem:[%s787 + $0x70] sm:$0xff]
        %v870 = vld [vmem:[%s787 + $0x78] sm:$0xff]
        %871 = vst [vmem:[#allocation2] sm:$0xff] %v855
        %872 = vst [vmem:[#allocation2 + $0x8] sm:$0xff] %v856
        %873 = vst [vmem:[#allocation2 + $0x10] sm:$0xff] %v857
        %874 = vst [vmem:[#allocation2 + $0x18] sm:$0xff] %v858
        %875 = vst [vmem:[#allocation2 + $0x20] sm:$0xff] %v859
        %876 = vst [vmem:[#allocation2 + $0x28] sm:$0xff] %v860
        %877 = vst [vmem:[#allocation2 + $0x30] sm:$0xff] %v861
        %878 = vst [vmem:[#allocation2 + $0x38] sm:$0xff] %v862
        %879 = vst [vmem:[#allocation2 + $0x40] sm:$0xff] %v863
        %880 = vst [vmem:[#allocation2 + $0x48] sm:$0xff] %v864
        %881 = vst [vmem:[#allocation2 + $0x50] sm:$0xff] %v865
        %882 = vst [vmem:[#allocation2 + $0x58] sm:$0xff] %v866
        %883 = vst [vmem:[#allocation2 + $0x60] sm:$0xff] %v867
        %884 = vst [vmem:[#allocation2 + $0x68] sm:$0xff] %v868
        %885 = vst [vmem:[#allocation2 + $0x70] sm:$0xff] %v869
        %886 = vst [vmem:[#allocation2 + $0x78] sm:$0xff] %v870
      $region92: #{_clip_forward_all.1} parent=87 // pred_fallthru
        _
      %v887 = vld [vmem:[#allocation2] sm:$0xff]
      %v888 = vld [vmem:[#allocation2 + $0x8] sm:$0xff]
      %v889 = vld [vmem:[#allocation2 + $0x10] sm:$0xff]
      %v890 = vld [vmem:[#allocation2 + $0x18] sm:$0xff]
      %v891 = vld [vmem:[#allocation2 + $0x20] sm:$0xff]
      %v892 = vld [vmem:[#allocation2 + $0x28] sm:$0xff]
      %v893 = vld [vmem:[#allocation2 + $0x30] sm:$0xff]
      %v894 = vld [vmem:[#allocation2 + $0x38] sm:$0xff]
      %v895 = vld [vmem:[#allocation2 + $0x40] sm:$0xff]
      %v896 = vld [vmem:[#allocation2 + $0x48] sm:$0xff]
      %v897 = vld [vmem:[#allocation2 + $0x50] sm:$0xff]
      %v898 = vld [vmem:[#allocation2 + $0x58] sm:$0xff]
      %v899 = vld [vmem:[#allocation2 + $0x60] sm:$0xff]
      %v900 = vld [vmem:[#allocation2 + $0x68] sm:$0xff]
      %v901 = vld [vmem:[#allocation2 + $0x70] sm:$0xff]
      %v902 = vld [vmem:[#allocation2 + $0x78] sm:$0xff]
      %v903 = vld [vmem:[%s2] sm:$0xff]
      %v904 = vld [vmem:[%s2 + $0x8] sm:$0xff]
      %v905 = vld [vmem:[%s2 + $0x10] sm:$0xff]
      %v906 = vld [vmem:[%s2 + $0x18] sm:$0xff]
      %v907 = vld [vmem:[%s2 + $0x20] sm:$0xff]
      %v908 = vld [vmem:[%s2 + $0x28] sm:$0xff]
      %v909 = vld [vmem:[%s2 + $0x30] sm:$0xff]
      %v910 = vld [vmem:[%s2 + $0x38] sm:$0xff]
      %v911 = vld [vmem:[%s2 + $0x40] sm:$0xff]
      %v912 = vld [vmem:[%s2 + $0x48] sm:$0xff]
      %v913 = vld [vmem:[%s2 + $0x50] sm:$0xff]
      %v914 = vld [vmem:[%s2 + $0x58] sm:$0xff]
      %v915 = vld [vmem:[%s2 + $0x60] sm:$0xff]
      %v916 = vld [vmem:[%s2 + $0x68] sm:$0xff]
      %v917 = vld [vmem:[%s2 + $0x70] sm:$0xff]
      %v918 = vld [vmem:[%s2 + $0x78] sm:$0xff]
      %v919 = vld [vmem:[%s795] sm:$0x1]
      %v920 = vld [vmem:[%s798] sm:$0x1]
      %921 = vadd.xlane.f32.xlu0 %v887
      %v922 = vpop.xlane.xlu0 %921
      %923 = vadd.xlane.f32.xlu0 %v888
      %v924 = vpop.xlane.xlu0 %923
      %925 = vadd.xlane.f32.xlu0 %v889
      %v926 = vpop.xlane.xlu0 %925
      %927 = vadd.xlane.f32.xlu0 %v890
      %v928 = vpop.xlane.xlu0 %927
      %929 = vadd.xlane.f32.xlu0 %v891
      %v930 = vpop.xlane.xlu0 %929
      %931 = vadd.xlane.f32.xlu0 %v892
      %v932 = vpop.xlane.xlu0 %931
      %933 = vadd.xlane.f32.xlu0 %v893
      %v934 = vpop.xlane.xlu0 %933
      %935 = vadd.xlane.f32.xlu0 %v894
      %v936 = vpop.xlane.xlu0 %935
      %937 = vadd.xlane.f32.xlu0 %v895
      %v938 = vpop.xlane.xlu0 %937
      %939 = vadd.xlane.f32.xlu0 %v896
      %v940 = vpop.xlane.xlu0 %939
      %941 = vadd.xlane.f32.xlu0 %v897
      %v942 = vpop.xlane.xlu0 %941
      %943 = vadd.xlane.f32.xlu0 %v898
      %v944 = vpop.xlane.xlu0 %943
      %945 = vadd.xlane.f32.xlu0 %v899
      %v946 = vpop.xlane.xlu0 %945
      %947 = vadd.xlane.f32.xlu0 %v900
      %v948 = vpop.xlane.xlu0 %947
      %949 = vadd.xlane.f32.xlu0 %v901
      %v950 = vpop.xlane.xlu0 %949
      %951 = vadd.xlane.f32.xlu0 %v902
      %v952 = vpop.xlane.xlu0 %951
      %v953 = vrcp.pop 128.0
      %v954 = vmul.f32 %v922, %v953
      %v955 = vmul.f32 %v924, %v953
      %v956 = vmul.f32 %v926, %v953
      %v957 = vmul.f32 %v928, %v953
      %v958 = vmul.f32 %v930, %v953
      %v959 = vmul.f32 %v932, %v953
      %v960 = vmul.f32 %v934, %v953
      %v961 = vmul.f32 %v936, %v953
      %v962 = vmul.f32 %v938, %v953
      %v963 = vmul.f32 %v940, %v953
      %v964 = vmul.f32 %v942, %v953
      %v965 = vmul.f32 %v944, %v953
      %v966 = vmul.f32 %v946, %v953
      %v967 = vmul.f32 %v948, %v953
      %v968 = vmul.f32 %v950, %v953
      %v969 = vmul.f32 %v952, %v953
      %v970 = vmul.f32 %v887, %v887
      %v971 = vmul.f32 %v888, %v888
      %v972 = vmul.f32 %v889, %v889
      %v973 = vmul.f32 %v890, %v890
      %v974 = vmul.f32 %v891, %v891
      %v975 = vmul.f32 %v892, %v892
      %v976 = vmul.f32 %v893, %v893
      %v977 = vmul.f32 %v894, %v894
      %v978 = vmul.f32 %v895, %v895
      %v979 = vmul.f32 %v896, %v896
      %v980 = vmul.f32 %v897, %v897
      %v981 = vmul.f32 %v898, %v898
      %v982 = vmul.f32 %v899, %v899
      %v983 = vmul.f32 %v900, %v900
      %v984 = vmul.f32 %v901, %v901
      %v985 = vmul.f32 %v902, %v902
      %986 = vadd.xlane.f32.xlu0 %v970
      %v987 = vpop.xlane.xlu0 %986
      %988 = vadd.xlane.f32.xlu0 %v971
      %v989 = vpop.xlane.xlu0 %988
      %990 = vadd.xlane.f32.xlu0 %v972
      %v991 = vpop.xlane.xlu0 %990
      %992 = vadd.xlane.f32.xlu0 %v973
      %v993 = vpop.xlane.xlu0 %992
      %994 = vadd.xlane.f32.xlu0 %v974
      %v995 = vpop.xlane.xlu0 %994
      %996 = vadd.xlane.f32.xlu0 %v975
      %v997 = vpop.xlane.xlu0 %996
      %998 = vadd.xlane.f32.xlu0 %v976
      %v999 = vpop.xlane.xlu0 %998
      %1000 = vadd.xlane.f32.xlu0 %v977
      %v1001 = vpop.xlane.xlu0 %1000
      %1002 = vadd.xlane.f32.xlu0 %v978
      %v1003 = vpop.xlane.xlu0 %1002
      %1004 = vadd.xlane.f32.xlu0 %v979
      %v1005 = vpop.xlane.xlu0 %1004
      %1006 = vadd.xlane.f32.xlu0 %v980
      %v1007 = vpop.xlane.xlu0 %1006
      %1008 = vadd.xlane.f32.xlu0 %v981
      %v1009 = vpop.xlane.xlu0 %1008
      %1010 = vadd.xlane.f32.xlu0 %v982
      %v1011 = vpop.xlane.xlu0 %1010
      %1012 = vadd.xlane.f32.xlu0 %v983
      %v1013 = vpop.xlane.xlu0 %1012
      %1014 = vadd.xlane.f32.xlu0 %v984
      %v1015 = vpop.xlane.xlu0 %1014
      %1016 = vadd.xlane.f32.xlu0 %v985
      %v1017 = vpop.xlane.xlu0 %1016
      %v1018 = vmul.f32 %v987, %v953
      %v1019 = vmul.f32 %v989, %v953
      %v1020 = vmul.f32 %v991, %v953
      %v1021 = vmul.f32 %v993, %v953
      %v1022 = vmul.f32 %v995, %v953
      %v1023 = vmul.f32 %v997, %v953
      %v1024 = vmul.f32 %v999, %v953
      %v1025 = vmul.f32 %v1001, %v953
      %v1026 = vmul.f32 %v1003, %v953
      %v1027 = vmul.f32 %v1005, %v953
      %v1028 = vmul.f32 %v1007, %v953
      %v1029 = vmul.f32 %v1009, %v953
      %v1030 = vmul.f32 %v1011, %v953
      %v1031 = vmul.f32 %v1013, %v953
      %v1032 = vmul.f32 %v1015, %v953
      %v1033 = vmul.f32 %v1017, %v953
      %v1034 = vmul.f32 %v954, %v954
      %v1035 = vmul.f32 %v955, %v955
      %v1036 = vmul.f32 %v956, %v956
      %v1037 = vmul.f32 %v957, %v957
      %v1038 = vmul.f32 %v958, %v958
      %v1039 = vmul.f32 %v959, %v959
      %v1040 = vmul.f32 %v960, %v960
      %v1041 = vmul.f32 %v961, %v961
      %v1042 = vmul.f32 %v962, %v962
      %v1043 = vmul.f32 %v963, %v963
      %v1044 = vmul.f32 %v964, %v964
      %v1045 = vmul.f32 %v965, %v965
      %v1046 = vmul.f32 %v966, %v966
      %v1047 = vmul.f32 %v967, %v967
      %v1048 = vmul.f32 %v968, %v968
      %v1049 = vmul.f32 %v969, %v969
      %v1050 = vsub.f32 %v1018, %v1034
      %v1051 = vsub.f32 %v1019, %v1035
      %v1052 = vsub.f32 %v1020, %v1036
      %v1053 = vsub.f32 %v1021, %v1037
      %v1054 = vsub.f32 %v1022, %v1038
      %v1055 = vsub.f32 %v1023, %v1039
      %v1056 = vsub.f32 %v1024, %v1040
      %v1057 = vsub.f32 %v1025, %v1041
      %v1058 = vsub.f32 %v1026, %v1042
      %v1059 = vsub.f32 %v1027, %v1043
      %v1060 = vsub.f32 %v1028, %v1044
      %v1061 = vsub.f32 %v1029, %v1045
      %v1062 = vsub.f32 %v1030, %v1046
      %v1063 = vsub.f32 %v1031, %v1047
      %v1064 = vsub.f32 %v1032, %v1048
      %v1065 = vsub.f32 %v1033, %v1049
      %v1066 = vsub.f32 %v887, %v954
      %v1067 = vsub.f32 %v888, %v955
      %v1068 = vsub.f32 %v889, %v956
      %v1069 = vsub.f32 %v890, %v957
      %v1070 = vsub.f32 %v891, %v958
      %v1071 = vsub.f32 %v892, %v959
      %v1072 = vsub.f32 %v893, %v960
      %v1073 = vsub.f32 %v894, %v961
      %v1074 = vsub.f32 %v895, %v962
      %v1075 = vsub.f32 %v896, %v963
      %v1076 = vsub.f32 %v897, %v964
      %v1077 = vsub.f32 %v898, %v965
      %v1078 = vsub.f32 %v899, %v966
      %v1079 = vsub.f32 %v900, %v967
      %v1080 = vsub.f32 %v901, %v968
      %v1081 = vsub.f32 %v902, %v969
      %v1082 = vadd.f32 %v1050, 1e-05
      %v1083 = vadd.f32 %v1051, 1e-05
      %v1084 = vadd.f32 %v1052, 1e-05
      %v1085 = vadd.f32 %v1053, 1e-05
      %v1086 = vadd.f32 %v1054, 1e-05
      %v1087 = vadd.f32 %v1055, 1e-05
      %v1088 = vadd.f32 %v1056, 1e-05
      %v1089 = vadd.f32 %v1057, 1e-05
      %v1090 = vadd.f32 %v1058, 1e-05
      %v1091 = vadd.f32 %v1059, 1e-05
      %v1092 = vadd.f32 %v1060, 1e-05
      %v1093 = vadd.f32 %v1061, 1e-05
      %v1094 = vadd.f32 %v1062, 1e-05
      %v1095 = vadd.f32 %v1063, 1e-05
      %v1096 = vadd.f32 %v1064, 1e-05
      %v1097 = vadd.f32 %v1065, 1e-05
      %v1098 = vrsqrt.pop %v1082
      %v1099 = vrsqrt.pop %v1083
      %v1100 = vrsqrt.pop %v1084
      %v1101 = vrsqrt.pop %v1085
      %v1102 = vrsqrt.pop %v1086
      %v1103 = vrsqrt.pop %v1087
      %v1104 = vrsqrt.pop %v1088
      %v1105 = vrsqrt.pop %v1089
      %v1106 = vrsqrt.pop %v1090
      %v1107 = vrsqrt.pop %v1091
      %v1108 = vrsqrt.pop %v1092
      %v1109 = vrsqrt.pop %v1093
      %v1110 = vrsqrt.pop %v1094
      %v1111 = vrsqrt.pop %v1095
      %v1112 = vrsqrt.pop %v1096
      %v1113 = vrsqrt.pop %v1097
      %v1114 = vmul.f32 %v1066, %v1098
      %v1115 = vmul.f32 %v1067, %v1099
      %v1116 = vmul.f32 %v1068, %v1100
      %v1117 = vmul.f32 %v1069, %v1101
      %v1118 = vmul.f32 %v1070, %v1102
      %v1119 = vmul.f32 %v1071, %v1103
      %v1120 = vmul.f32 %v1072, %v1104
      %v1121 = vmul.f32 %v1073, %v1105
      %v1122 = vmul.f32 %v1074, %v1106
      %v1123 = vmul.f32 %v1075, %v1107
      %v1124 = vmul.f32 %v1076, %v1108
      %v1125 = vmul.f32 %v1077, %v1109
      %v1126 = vmul.f32 %v1078, %v1110
      %v1127 = vmul.f32 %v1079, %v1111
      %v1128 = vmul.f32 %v1080, %v1112
      %v1129 = vmul.f32 %v1081, %v1113
      %v1131 = vlaneseq
      %v1132 = vshrl.u32 %v1131, 7
      %v1133 = vsub.s32 0, %v1132
      %v1134 = vrot.slane %v919, %v1133
      %v1136 = vmul.f32 %v1114, %v1134
      %v1137 = vmul.f32 %v1115, %v1134
      %v1138 = vmul.f32 %v1116, %v1134
      %v1139 = vmul.f32 %v1117, %v1134
      %v1140 = vmul.f32 %v1118, %v1134
      %v1141 = vmul.f32 %v1119, %v1134
      %v1142 = vmul.f32 %v1120, %v1134
      %v1143 = vmul.f32 %v1121, %v1134
      %v1144 = vmul.f32 %v1122, %v1134
      %v1145 = vmul.f32 %v1123, %v1134
      %v1146 = vmul.f32 %v1124, %v1134
      %v1147 = vmul.f32 %v1125, %v1134
      %v1148 = vmul.f32 %v1126, %v1134
      %v1149 = vmul.f32 %v1127, %v1134
      %v1150 = vmul.f32 %v1128, %v1134
      %v1151 = vmul.f32 %v1129, %v1134
      %v1153 = vlaneseq
      %v1154 = vshrl.u32 %v1153, 7
      %v1155 = vsub.s32 0, %v1154
      %v1156 = vrot.slane %v920, %v1155
      %v1158 = vadd.f32 %v1136, %v1156
      %v1159 = vadd.f32 %v1137, %v1156
      %v1160 = vadd.f32 %v1138, %v1156
      %v1161 = vadd.f32 %v1139, %v1156
      %v1162 = vadd.f32 %v1140, %v1156
      %v1163 = vadd.f32 %v1141, %v1156
      %v1164 = vadd.f32 %v1142, %v1156
      %v1165 = vadd.f32 %v1143, %v1156
      %v1166 = vadd.f32 %v1144, %v1156
      %v1167 = vadd.f32 %v1145, %v1156
      %v1168 = vadd.f32 %v1146, %v1156
      %v1169 = vadd.f32 %v1147, %v1156
      %v1170 = vadd.f32 %v1148, %v1156
      %v1171 = vadd.f32 %v1149, %v1156
      %v1172 = vadd.f32 %v1150, %v1156
      %v1173 = vadd.f32 %v1151, %v1156
      %v1174 = vpack.c.bf16 %v1159, %v1158
      %v1175 = vpack.c.bf16 %v1161, %v1160
      %v1176 = vpack.c.bf16 %v1163, %v1162
      %v1177 = vpack.c.bf16 %v1165, %v1164
      %v1178 = vpack.c.bf16 %v1167, %v1166
      %v1179 = vpack.c.bf16 %v1169, %v1168
      %v1180 = vpack.c.bf16 %v1171, %v1170
      %v1181 = vpack.c.bf16 %v1173, %v1172
      %v1182 = vld [vmem:[%s803] sm:$0xff]
      %v1183 = vld [vmem:[%s803 + $0x8] sm:$0xf]
      %v1184 = vld [vmem:[%s803 + $0xc] sm:$0xff]
      %v1185 = vld [vmem:[%s803 + $0x14] sm:$0xf]
      %v1186 = vld [vmem:[%s803 + $0x18] sm:$0xff]
      %v1187 = vld [vmem:[%s803 + $0x20] sm:$0xf]
      %v1188 = vld [vmem:[%s803 + $0x24] sm:$0xff]
      %v1189 = vld [vmem:[%s803 + $0x2c] sm:$0xf]
      %v1190 = vld [vmem:[%s803 + $0x30] sm:$0xff]
      %v1191 = vld [vmem:[%s803 + $0x38] sm:$0xf]
      %v1192 = vld [vmem:[%s803 + $0x3c] sm:$0xff]
      %v1193 = vld [vmem:[%s803 + $0x44] sm:$0xf]
      %v1194 = vld [vmem:[%s803 + $0x48] sm:$0xff]
      %v1195 = vld [vmem:[%s803 + $0x50] sm:$0xf]
      %v1196 = vld [vmem:[%s803 + $0x54] sm:$0xff]
      %v1197 = vld [vmem:[%s803 + $0x5c] sm:$0xf]
      %v1198 = vld [vmem:[%s803 + $0x60] sm:$0xff]
      %v1199 = vld [vmem:[%s803 + $0x68] sm:$0xf]
      %v1200 = vld [vmem:[%s803 + $0x6c] sm:$0xff]
      %v1201 = vld [vmem:[%s803 + $0x74] sm:$0xf]
      %v1202 = vld [vmem:[%s803 + $0x78] sm:$0xff]
      %v1203 = vld [vmem:[%s803 + $0x80] sm:$0xf]
      %v1204 = vld [vmem:[%s803 + $0x84] sm:$0xff]
      %v1205 = vld [vmem:[%s803 + $0x8c] sm:$0xf]
      %v1206 = vld [vmem:[%s803 + $0x90] sm:$0xff]
      %v1207 = vld [vmem:[%s803 + $0x98] sm:$0xf]
      %v1208 = vld [vmem:[%s803 + $0x9c] sm:$0xff]
      %v1209 = vld [vmem:[%s803 + $0xa4] sm:$0xf]
      %v1210 = vld [vmem:[%s803 + $0xa8] sm:$0xff]
      %v1211 = vld [vmem:[%s803 + $0xb0] sm:$0xf]
      %v1212 = vld [vmem:[%s803 + $0xb4] sm:$0xff]
      %v1213 = vld [vmem:[%s803 + $0xbc] sm:$0xf]
      %v1214 = vld [vmem:[%s807] sm:$0x7]
      %v1216 = vlaneseq
      %v1217 = vshrl.u32 %v1216, 7
      %v1218 = vsub.s32 0, %v1217
      %v1219 = vrot.slane %v1214, %v1218
      %v1220 = vlaneseq
      %v1221 = vshrl.u32 %v1220, 7
      %v1222 = vsub.s32 1, %v1221
      %v1223 = vrot.slane %v1214, %v1222
      %v1224 = vlaneseq
      %v1225 = vshrl.u32 %v1224, 7
      %v1226 = vsub.s32 2, %v1225
      %v1227 = vrot.slane %v1214, %v1226
      %v1263 = vunpack.c.l.b16 %v1182
      %v1264 = vunpack.c.h.b16 %v1182
      %v1265 = vunpack.c.l.b16 %v1183
      %v1266 = vunpack.c.l.b16 %v1184
      %v1267 = vunpack.c.h.b16 %v1184
      %v1268 = vunpack.c.l.b16 %v1185
      %v1269 = vunpack.c.l.b16 %v1186
      %v1270 = vunpack.c.h.b16 %v1186
      %v1271 = vunpack.c.l.b16 %v1187
      %v1272 = vunpack.c.l.b16 %v1188
      %v1273 = vunpack.c.h.b16 %v1188
      %v1274 = vunpack.c.l.b16 %v1189
      %v1275 = vunpack.c.l.b16 %v1190
      %v1276 = vunpack.c.h.b16 %v1190
      %v1277 = vunpack.c.l.b16 %v1191
      %v1278 = vunpack.c.l.b16 %v1192
      %v1279 = vunpack.c.h.b16 %v1192
      %v1280 = vunpack.c.l.b16 %v1193
      %v1281 = vunpack.c.l.b16 %v1194
      %v1282 = vunpack.c.h.b16 %v1194
      %v1283 = vunpack.c.l.b16 %v1195
      %v1284 = vunpack.c.l.b16 %v1196
      %v1285 = vunpack.c.h.b16 %v1196
      %v1286 = vunpack.c.l.b16 %v1197
      %v1287 = vunpack.c.l.b16 %v1198
      %v1288 = vunpack.c.h.b16 %v1198
      %v1289 = vunpack.c.l.b16 %v1199
      %v1290 = vunpack.c.l.b16 %v1200
      %v1291 = vunpack.c.h.b16 %v1200
      %v1292 = vunpack.c.l.b16 %v1201
      %v1293 = vunpack.c.l.b16 %v1202
      %v1294 = vunpack.c.h.b16 %v1202
      %v1295 = vunpack.c.l.b16 %v1203
      %v1296 = vunpack.c.l.b16 %v1204
      %v1297 = vunpack.c.h.b16 %v1204
      %v1298 = vunpack.c.l.b16 %v1205
      %v1299 = vunpack.c.l.b16 %v1206
      %v1300 = vunpack.c.h.b16 %v1206
      %v1301 = vunpack.c.l.b16 %v1207
      %v1302 = vunpack.c.l.b16 %v1208
      %v1303 = vunpack.c.h.b16 %v1208
      %v1304 = vunpack.c.l.b16 %v1209
      %v1305 = vunpack.c.l.b16 %v1210
      %v1306 = vunpack.c.h.b16 %v1210
      %v1307 = vunpack.c.l.b16 %v1211
      %v1308 = vunpack.c.l.b16 %v1212
      %v1309 = vunpack.c.h.b16 %v1212
      %v1310 = vunpack.c.l.b16 %v1213
      %v1311 = vpack.c.b16 %v1266, %v1263
      %v1312 = vpack.c.b16 %v1267, %v1264
      %v1313 = vpack.c.b16 %v1268, %v1265
      %v1314 = vpack.c.b16 %v1272, %v1269
      %v1315 = vpack.c.b16 %v1273, %v1270
      %v1316 = vpack.c.b16 %v1274, %v1271
      %v1317 = vpack.c.b16 %v1278, %v1275
      %v1318 = vpack.c.b16 %v1279, %v1276
      %v1319 = vpack.c.b16 %v1280, %v1277
      %v1320 = vpack.c.b16 %v1284, %v1281
      %v1321 = vpack.c.b16 %v1285, %v1282
      %v1322 = vpack.c.b16 %v1286, %v1283
      %v1323 = vpack.c.b16 %v1290, %v1287
      %v1324 = vpack.c.b16 %v1291, %v1288
      %v1325 = vpack.c.b16 %v1292, %v1289
      %v1326 = vpack.c.b16 %v1296, %v1293
      %v1327 = vpack.c.b16 %v1297, %v1294
      %v1328 = vpack.c.b16 %v1298, %v1295
      %v1329 = vpack.c.b16 %v1302, %v1299
      %v1330 = vpack.c.b16 %v1303, %v1300
      %v1331 = vpack.c.b16 %v1304, %v1301
      %v1332 = vpack.c.b16 %v1308, %v1305
      %v1333 = vpack.c.b16 %v1309, %v1306
      %v1334 = vpack.c.b16 %v1310, %v1307
      %1359 = vmatprep.subr.bf16.mxu0 %v1312
      %1360 = vmatpush1.bf16.msra.mxu0 %v1311
      %1361 = vmatprep.subr.bf16.mxu0 %v1315
      %1362 = vmatpush1.bf16.msra.mxu0 %v1314
      %1363 = vmatprep.subr.bf16.mxu0 %v1318
      %1364 = vmatpush1.bf16.msra.mxu0 %v1317
      %1365 = vmatprep.subr.bf16.mxu0 %v1321
      %1366 = vmatpush1.bf16.msra.mxu0 %v1320
      %1367 = vmatprep.subr.bf16.mxu0 %v1324
      %1368 = vmatpush1.bf16.msra.mxu0 %v1323
      %1369 = vmatprep.subr.bf16.mxu0 %v1327
      %1370 = vmatpush1.bf16.msra.mxu0 %v1326
      %1371 = vmatprep.subr.bf16.mxu0 %v1330
      %1372 = vmatpush1.bf16.msra.mxu0 %v1329
      %1373 = vmatprep.subr.bf16.mxu0 %v1333
      %1374 = vmatpush1.bf16.msra.mxu0 %v1332
      %1375 = vmatprep.subr.bf16.mxu0 0
      %1376 = vmatpush1.bf16.msra.mxu0 0
      %1377 = vmatprep.subr.bf16.mxu0 0
      %1378 = vmatpush1.bf16.msra.mxu0 0
      %1379 = vmatprep.subr.bf16.mxu0 0
      %1380 = vmatpush1.bf16.msra.mxu0 0
      %1381 = vmatprep.subr.bf16.mxu0 0
      %1382 = vmatpush1.bf16.msra.mxu0 0
      %1383 = vmatprep.subr.bf16.mxu0 0
      %1384 = vmatpush1.bf16.msra.mxu0 0
      %1385 = vmatprep.subr.bf16.mxu0 0
      %1386 = vmatpush1.bf16.msra.mxu0 0
      %1387 = vmatprep.subr.bf16.mxu0 0
      %1388 = vmatpush1.bf16.msra.mxu0 0
      %1389 = vmatprep.subr.bf16.mxu0 0
      %1390 = vmatpush1.bf16.msra.mxu0 0
      %1391 = vmatprep.mubr.bf16.mxu0 0
      %1392 = vmatmul.mubr.bf16.gmra.mrb[0].mxu0 %v1174
      %v1393 = vpop.f32.mrb[0].mxu0
      %v1394 = vadd.f32 %v1219, %v1393
      %v1395 = vpop.f32.mrb[0].mxu0
      %v1396 = vadd.f32 %v1223, %v1395
      %v1397 = vpop.f32.mrb[0].mxu0
      %v1398 = vadd.f32 %v1219, %v1397
      %v1399 = vpop.f32.mrb[0].mxu0
      %v1400 = vadd.f32 %v1223, %v1399
      %1401 = vmatprep.mubr.bf16.mxu0 0
      %1402 = vmatmul.mubr.bf16.gmra.mrb[0].mxu0 %v1175
      %v1403 = vpop.f32.mrb[0].mxu0
      %v1404 = vadd.f32 %v1219, %v1403
      %v1405 = vpop.f32.mrb[0].mxu0
      %v1406 = vadd.f32 %v1223, %v1405
      %v1407 = vpop.f32.mrb[0].mxu0
      %v1408 = vadd.f32 %v1219, %v1407
      %v1409 = vpop.f32.mrb[0].mxu0
      %v1410 = vadd.f32 %v1223, %v1409
      %1411 = vmatprep.mubr.bf16.mxu0 0
      %1412 = vmatmul.mubr.bf16.gmra.mrb[0].mxu0 %v1176
      %v1413 = vpop.f32.mrb[0].mxu0
      %v1414 = vadd.f32 %v1219, %v1413
      %v1415 = vpop.f32.mrb[0].mxu0
      %v1416 = vadd.f32 %v1223, %v1415
      %v1417 = vpop.f32.mrb[0].mxu0
      %v1418 = vadd.f32 %v1219, %v1417
      %v1419 = vpop.f32.mrb[0].mxu0
      %v1420 = vadd.f32 %v1223, %v1419
      %1421 = vmatprep.mubr.bf16.mxu0 0
      %1422 = vmatmul.mubr.bf16.gmra.mrb[0].mxu0 %v1177
      %v1423 = vpop.f32.mrb[0].mxu0
      %v1424 = vadd.f32 %v1219, %v1423
      %v1425 = vpop.f32.mrb[0].mxu0
      %v1426 = vadd.f32 %v1223, %v1425
      %v1427 = vpop.f32.mrb[0].mxu0
      %v1428 = vadd.f32 %v1219, %v1427
      %v1429 = vpop.f32.mrb[0].mxu0
      %v1430 = vadd.f32 %v1223, %v1429
      %1431 = vmatprep.mubr.bf16.mxu0 0
      %1432 = vmatmul.mubr.bf16.gmra.mrb[0].mxu0 %v1178
      %v1433 = vpop.f32.mrb[0].mxu0
      %v1434 = vadd.f32 %v1219, %v1433
      %v1435 = vpop.f32.mrb[0].mxu0
      %v1436 = vadd.f32 %v1223, %v1435
      %v1437 = vpop.f32.mrb[0].mxu0
      %v1438 = vadd.f32 %v1219, %v1437
      %v1439 = vpop.f32.mrb[0].mxu0
      %v1440 = vadd.f32 %v1223, %v1439
      %1441 = vmatprep.mubr.bf16.mxu0 0
      %1442 = vmatmul.mubr.bf16.gmra.mrb[0].mxu0 %v1179
      %v1443 = vpop.f32.mrb[0].mxu0
      %v1444 = vadd.f32 %v1219, %v1443
      %v1445 = vpop.f32.mrb[0].mxu0
      %v1446 = vadd.f32 %v1223, %v1445
      %v1447 = vpop.f32.mrb[0].mxu0
      %v1448 = vadd.f32 %v1219, %v1447
      %v1449 = vpop.f32.mrb[0].mxu0
      %v1450 = vadd.f32 %v1223, %v1449
      %1451 = vmatprep.mubr.bf16.mxu0 0
      %1452 = vmatmul.mubr.bf16.gmra.mrb[0].mxu0 %v1180
      %v1453 = vpop.f32.mrb[0].mxu0
      %v1454 = vadd.f32 %v1219, %v1453
      %v1455 = vpop.f32.mrb[0].mxu0
      %v1456 = vadd.f32 %v1223, %v1455
      %v1457 = vpop.f32.mrb[0].mxu0
      %v1458 = vadd.f32 %v1219, %v1457
      %v1459 = vpop.f32.mrb[0].mxu0
      %v1460 = vadd.f32 %v1223, %v1459
      %1461 = vmatprep.mubr.bf16.mxu0 0
      %1462 = vmatmul.mubr.bf16.gmra.mrb[0].mxu0 %v1181
      %v1463 = vpop.f32.mrb[0].mxu0
      %v1464 = vadd.f32 %v1219, %v1463
      %v1465 = vpop.f32.mrb[0].mxu0
      %v1466 = vadd.f32 %v1223, %v1465
      %v1467 = vpop.f32.mrb[0].mxu0
      %v1468 = vadd.f32 %v1219, %v1467
      %v1469 = vpop.f32.mrb[0].mxu0
      %v1470 = vadd.f32 %v1223, %v1469
      %1471 = vdwg.mxu0
      %1472 = vmatprep.subr.bf16.mxu0 0
      %1473 = vmatpush1.bf16.msra.mxu0 %v1313
      %1474 = vmatprep.subr.bf16.mxu0 0
      %1475 = vmatpush1.bf16.msra.mxu0 %v1316
      %1476 = vmatprep.subr.bf16.mxu0 0
      %1477 = vmatpush1.bf16.msra.mxu0 %v1319
      %1478 = vmatprep.subr.bf16.mxu0 0
      %1479 = vmatpush1.bf16.msra.mxu0 %v1322
      %1480 = vmatprep.subr.bf16.mxu0 0
      %1481 = vmatpush1.bf16.msra.mxu0 %v1325
      %1482 = vmatprep.subr.bf16.mxu0 0
      %1483 = vmatpush1.bf16.msra.mxu0 %v1328
      %1484 = vmatprep.subr.bf16.mxu0 0
      %1485 = vmatpush1.bf16.msra.mxu0 %v1331
      %1486 = vmatprep.subr.bf16.mxu0 0
      %1487 = vmatpush1.bf16.msra.mxu0 %v1334
      %1488 = vmatprep.subr.bf16.mxu0 0
      %1489 = vmatpush1.bf16.msra.mxu0 0
      %1490 = vmatprep.subr.bf16.mxu0 0
      %1491 = vmatpush1.bf16.msra.mxu0 0
      %1492 = vmatprep.subr.bf16.mxu0 0
      %1493 = vmatpush1.bf16.msra.mxu0 0
      %1494 = vmatprep.subr.bf16.mxu0 0
      %1495 = vmatpush1.bf16.msra.mxu0 0
      %1496 = vmatprep.subr.bf16.mxu0 0
      %1497 = vmatpush1.bf16.msra.mxu0 0
      %1498 = vmatprep.subr.bf16.mxu0 0
      %1499 = vmatpush1.bf16.msra.mxu0 0
      %1500 = vmatprep.subr.bf16.mxu0 0
      %1501 = vmatpush1.bf16.msra.mxu0 0
      %1502 = vmatprep.subr.bf16.mxu0 0
      %1503 = vmatpush1.bf16.msra.mxu0 0
      %1504 = vmatprep.mubr.bf16.mxu0 0
      %1505 = vmatmul.mubr.bf16.gmra.mrb[0].mxu0 %v1174
      %v1506 = vpop.f32.mrb[0].mxu0
      %v1507 = vadd.f32 %v1227, %v1506
      %v1508 = vpop.f32.mrb[0].mxu0
      %v1509 = vpop.f32.mrb[0].mxu0
      %v1510 = vadd.f32 %v1227, %v1509
      %v1511 = vpop.f32.mrb[0].mxu0
      %1512 = vmatprep.mubr.bf16.mxu0 0
      %1513 = vmatmul.mubr.bf16.gmra.mrb[0].mxu0 %v1175
      %v1514 = vpop.f32.mrb[0].mxu0
      %v1515 = vadd.f32 %v1227, %v1514
      %v1516 = vpop.f32.mrb[0].mxu0
      %v1517 = vpop.f32.mrb[0].mxu0
      %v1518 = vadd.f32 %v1227, %v1517
      %v1519 = vpop.f32.mrb[0].mxu0
      %1520 = vmatprep.mubr.bf16.mxu0 0
      %1521 = vmatmul.mubr.bf16.gmra.mrb[0].mxu0 %v1176
      %v1522 = vpop.f32.mrb[0].mxu0
      %v1523 = vadd.f32 %v1227, %v1522
      %v1524 = vpop.f32.mrb[0].mxu0
      %v1525 = vpop.f32.mrb[0].mxu0
      %v1526 = vadd.f32 %v1227, %v1525
      %v1527 = vpop.f32.mrb[0].mxu0
      %1528 = vmatprep.mubr.bf16.mxu0 0
      %1529 = vmatmul.mubr.bf16.gmra.mrb[0].mxu0 %v1177
      %v1530 = vpop.f32.mrb[0].mxu0
      %v1531 = vadd.f32 %v1227, %v1530
      %v1532 = vpop.f32.mrb[0].mxu0
      %v1533 = vpop.f32.mrb[0].mxu0
      %v1534 = vadd.f32 %v1227, %v1533
      %v1535 = vpop.f32.mrb[0].mxu0
      %1536 = vmatprep.mubr.bf16.mxu0 0
      %1537 = vmatmul.mubr.bf16.gmra.mrb[0].mxu0 %v1178
      %v1538 = vpop.f32.mrb[0].mxu0
      %v1539 = vadd.f32 %v1227, %v1538
      %v1540 = vpop.f32.mrb[0].mxu0
      %v1541 = vpop.f32.mrb[0].mxu0
      %v1542 = vadd.f32 %v1227, %v1541
      %v1543 = vpop.f32.mrb[0].mxu0
      %1544 = vmatprep.mubr.bf16.mxu0 0
      %1545 = vmatmul.mubr.bf16.gmra.mrb[0].mxu0 %v1179
      %v1546 = vpop.f32.mrb[0].mxu0
      %v1547 = vadd.f32 %v1227, %v1546
      %v1548 = vpop.f32.mrb[0].mxu0
      %v1549 = vpop.f32.mrb[0].mxu0
      %v1550 = vadd.f32 %v1227, %v1549
      %v1551 = vpop.f32.mrb[0].mxu0
      %1552 = vmatprep.mubr.bf16.mxu0 0
      %1553 = vmatmul.mubr.bf16.gmra.mrb[0].mxu0 %v1180
      %v1554 = vpop.f32.mrb[0].mxu0
      %v1555 = vadd.f32 %v1227, %v1554
      %v1556 = vpop.f32.mrb[0].mxu0
      %v1557 = vpop.f32.mrb[0].mxu0
      %v1558 = vadd.f32 %v1227, %v1557
      %v1559 = vpop.f32.mrb[0].mxu0
      %1560 = vmatprep.mubr.bf16.mxu0 0
      %1561 = vmatmul.mubr.bf16.gmra.mrb[0].mxu0 %v1181
      %v1562 = vpop.f32.mrb[0].mxu0
      %v1563 = vadd.f32 %v1227, %v1562
      %v1564 = vpop.f32.mrb[0].mxu0
      %v1565 = vpop.f32.mrb[0].mxu0
      %v1566 = vadd.f32 %v1227, %v1565
      %v1567 = vpop.f32.mrb[0].mxu0
      %1568 = vdwg.mxu0
      %v1569 = vmul.f32 %v1394, 0.125
      %v1570 = vmul.f32 %v1398, 0.125
      %v1571 = vmul.f32 %v1404, 0.125
      %v1572 = vmul.f32 %v1408, 0.125
      %v1573 = vmul.f32 %v1414, 0.125
      %v1574 = vmul.f32 %v1418, 0.125
      %v1575 = vmul.f32 %v1424, 0.125
      %v1576 = vmul.f32 %v1428, 0.125
      %v1577 = vmul.f32 %v1434, 0.125
      %v1578 = vmul.f32 %v1438, 0.125
      %v1579 = vmul.f32 %v1444, 0.125
      %v1580 = vmul.f32 %v1448, 0.125
      %v1581 = vmul.f32 %v1454, 0.125
      %v1582 = vmul.f32 %v1458, 0.125
      %v1583 = vmul.f32 %v1464, 0.125
      %v1584 = vmul.f32 %v1468, 0.125
      %v1585 = vld [vmem:[%s812] sm:$0xf]
      %v1586 = vld [vmem:[%s812 + $0x4] sm:$0xf]
      %v1587 = vld [vmem:[%s812 + $0x8] sm:$0xf]
      %v1588 = vld [vmem:[%s812 + $0xc] sm:$0xf]
      %v1589 = vld [vmem:[%s812 + $0x10] sm:$0xf]
      %v1590 = vld [vmem:[%s812 + $0x14] sm:$0xf]
      %v1591 = vld [vmem:[%s812 + $0x18] sm:$0xf]
      %v1592 = vld [vmem:[%s812 + $0x1c] sm:$0xf]
      %v1593 = vld [vmem:[%s812 + $0x20] sm:$0xf]
      %v1594 = vld [vmem:[%s812 + $0x24] sm:$0xf]
      %v1595 = vld [vmem:[%s812 + $0x28] sm:$0xf]
      %v1596 = vld [vmem:[%s812 + $0x2c] sm:$0xf]
      %v1597 = vld [vmem:[%s812 + $0x30] sm:$0xf]
      %v1598 = vld [vmem:[%s812 + $0x34] sm:$0xf]
      %v1599 = vld [vmem:[%s812 + $0x38] sm:$0xf]
      %v1600 = vld [vmem:[%s812 + $0x3c] sm:$0xf]
      %v1601 = vpack.c.bf16 %v1570, %v1569
      %v1602 = vpack.c.bf16 %v1572, %v1571
      %v1603 = vpack.c.bf16 %v1574, %v1573
      %v1604 = vpack.c.bf16 %v1576, %v1575
      %v1605 = vpack.c.bf16 %v1578, %v1577
      %v1606 = vpack.c.bf16 %v1580, %v1579
      %v1607 = vpack.c.bf16 %v1582, %v1581
      %v1608 = vpack.c.bf16 %v1584, %v1583
      %v1609 = vpack.c.bf16 %v1400, %v1396
      %v1610 = vpack.c.bf16 %v1410, %v1406
      %v1611 = vpack.c.bf16 %v1420, %v1416
      %v1612 = vpack.c.bf16 %v1430, %v1426
      %v1613 = vpack.c.bf16 %v1440, %v1436
      %v1614 = vpack.c.bf16 %v1450, %v1446
      %v1615 = vpack.c.bf16 %v1460, %v1456
      %v1616 = vpack.c.bf16 %v1470, %v1466
      %v1617 = vpack.c.bf16 %v1510, %v1507
      %v1618 = vpack.c.bf16 %v1518, %v1515
      %v1619 = vpack.c.bf16 %v1526, %v1523
      %v1620 = vpack.c.bf16 %v1534, %v1531
      %v1621 = vpack.c.bf16 %v1542, %v1539
      %v1622 = vpack.c.bf16 %v1550, %v1547
      %v1623 = vpack.c.bf16 %v1558, %v1555
      %v1624 = vpack.c.bf16 %v1566, %v1563
      %vm1625 = vcmask 523264
      %v1627 = vsel %vm1625, %v1601, 0
      %v1630 = vsel %vm1625, %v1602, 0
      %v1633 = vsel %vm1625, %v1603, 0
      %v1636 = vsel %vm1625, %v1604, 0
      %v1639 = vsel %vm1625, %v1605, 0
      %v1642 = vsel %vm1625, %v1606, 0
      %v1645 = vsel %vm1625, %v1607, 0
      %v1648 = vsel %vm1625, %v1608, 0
      %v1651 = vsel %vm1625, %v1609, 0
      %v1654 = vsel %vm1625, %v1610, 0
      %v1657 = vsel %vm1625, %v1611, 0
      %v1660 = vsel %vm1625, %v1612, 0
      %v1663 = vsel %vm1625, %v1613, 0
      %v1666 = vsel %vm1625, %v1614, 0
      %v1669 = vsel %vm1625, %v1615, 0
      %v1672 = vsel %vm1625, %v1616, 0
      %1674 = vmatprep.subr.bf16.mxu0 0
      %1675 = vmatpush1.bf16.xpose.msra.mxu0 %v1651
      %1676 = vmatprep.subr.bf16.mxu0 0
      %1677 = vmatpush1.bf16.xpose.msra.mxu0 %v1654
      %1678 = vmatprep.subr.bf16.mxu0 0
      %1679 = vmatpush1.bf16.xpose.msra.mxu0 %v1657
      %1680 = vmatprep.subr.bf16.mxu0 0
      %1681 = vmatpush1.bf16.xpose.msra.mxu0 %v1660
      %1682 = vmatprep.subr.bf16.mxu0 0
      %1683 = vmatpush1.bf16.xpose.msra.mxu0 %v1663
      %1684 = vmatprep.subr.bf16.mxu0 0
      %1685 = vmatpush1.bf16.xpose.msra.mxu0 %v1666
      %1686 = vmatprep.subr.bf16.mxu0 0
      %1687 = vmatpush1.bf16.xpose.msra.mxu0 %v1669
      %1688 = vmatprep.subr.bf16.mxu0 0
      %1689 = vmatpush1.bf16.xpose.msra.mxu0 %v1672
      %1690 = vmatprep.subr.bf16.mxu0 0
      %1691 = vmatpush1.bf16.xpose.msra.mxu0 0
      %1692 = vmatprep.subr.bf16.mxu0 0
      %1693 = vmatpush1.bf16.xpose.msra.mxu0 0
      %1694 = vmatprep.subr.bf16.mxu0 0
      %1695 = vmatpush1.bf16.xpose.msra.mxu0 0
      %1696 = vmatprep.subr.bf16.mxu0 0
      %1697 = vmatpush1.bf16.xpose.msra.mxu0 0
      %1698 = vmatprep.subr.bf16.mxu0 0
      %1699 = vmatpush1.bf16.xpose.msra.mxu0 0
      %1700 = vmatprep.subr.bf16.mxu0 0
      %1701 = vmatpush1.bf16.xpose.msra.mxu0 0
      %1702 = vmatprep.subr.bf16.mxu0 0
      %1703 = vmatpush1.bf16.xpose.msra.mxu0 0
      %1704 = vmatprep.subr.bf16.mxu0 0
      %1705 = vmatpush1.bf16.xpose.msra.mxu0 0
      %1706 = vmatprep.mubr.bf16.mxu0 0
      %1707 = vmatmul.mubr.bf16.gmra.mrb[0].mxu0 %v1627
      %v1708 = vpop.f32.mrb[0].mxu0
      %v1709 = vadd.f32 %v903, %v1708
      %v1710 = vpop.f32.mrb[0].mxu0
      %v1711 = vpop.f32.mrb[0].mxu0
      %v1712 = vadd.f32 %v904, %v1711
      %v1713 = vpop.f32.mrb[0].mxu0
      %1714 = vmatprep.mubr.bf16.mxu0 0
      %1715 = vmatmul.mubr.bf16.gmra.mrb[0].mxu0 %v1630
      %v1716 = vpop.f32.mrb[0].mxu0
      %v1717 = vadd.f32 %v905, %v1716
      %v1718 = vpop.f32.mrb[0].mxu0
      %v1719 = vpop.f32.mrb[0].mxu0
      %v1720 = vadd.f32 %v906, %v1719
      %v1721 = vpop.f32.mrb[0].mxu0
      %1722 = vmatprep.mubr.bf16.mxu0 0
      %1723 = vmatmul.mubr.bf16.gmra.mrb[0].mxu0 %v1633
      %v1724 = vpop.f32.mrb[0].mxu0
      %v1725 = vadd.f32 %v907, %v1724
      %v1726 = vpop.f32.mrb[0].mxu0
      %v1727 = vpop.f32.mrb[0].mxu0
      %v1728 = vadd.f32 %v908, %v1727
      %v1729 = vpop.f32.mrb[0].mxu0
      %1730 = vmatprep.mubr.bf16.mxu0 0
      %1731 = vmatmul.mubr.bf16.gmra.mrb[0].mxu0 %v1636
      %v1732 = vpop.f32.mrb[0].mxu0
      %v1733 = vadd.f32 %v909, %v1732
      %v1734 = vpop.f32.mrb[0].mxu0
      %v1735 = vpop.f32.mrb[0].mxu0
      %v1736 = vadd.f32 %v910, %v1735
      %v1737 = vpop.f32.mrb[0].mxu0
      %1738 = vmatprep.mubr.bf16.mxu0 0
      %1739 = vmatmul.mubr.bf16.gmra.mrb[0].mxu0 %v1639
      %v1740 = vpop.f32.mrb[0].mxu0
      %v1741 = vadd.f32 %v911, %v1740
      %v1742 = vpop.f32.mrb[0].mxu0
      %v1743 = vpop.f32.mrb[0].mxu0
      %v1744 = vadd.f32 %v912, %v1743
      %v1745 = vpop.f32.mrb[0].mxu0
      %1746 = vmatprep.mubr.bf16.mxu0 0
      %1747 = vmatmul.mubr.bf16.gmra.mrb[0].mxu0 %v1642
      %v1748 = vpop.f32.mrb[0].mxu0
      %v1749 = vadd.f32 %v913, %v1748
      %v1750 = vpop.f32.mrb[0].mxu0
      %v1751 = vpop.f32.mrb[0].mxu0
      %v1752 = vadd.f32 %v914, %v1751
      %v1753 = vpop.f32.mrb[0].mxu0
      %1754 = vmatprep.mubr.bf16.mxu0 0
      %1755 = vmatmul.mubr.bf16.gmra.mrb[0].mxu0 %v1645
      %v1756 = vpop.f32.mrb[0].mxu0
      %v1757 = vadd.f32 %v915, %v1756
      %v1758 = vpop.f32.mrb[0].mxu0
      %v1759 = vpop.f32.mrb[0].mxu0
      %v1760 = vadd.f32 %v916, %v1759
      %v1761 = vpop.f32.mrb[0].mxu0
      %1762 = vmatprep.mubr.bf16.mxu0 0
      %1763 = vmatmul.mubr.bf16.gmra.mrb[0].mxu0 %v1648
      %v1764 = vpop.f32.mrb[0].mxu0
      %v1765 = vadd.f32 %v917, %v1764
      %v1766 = vpop.f32.mrb[0].mxu0
      %v1767 = vpop.f32.mrb[0].mxu0
      %v1768 = vadd.f32 %v918, %v1767
      %v1769 = vpop.f32.mrb[0].mxu0
      %1770 = vdwg.mxu0
      %1771 = vmax.xlane.f32.xlu0 %v1709
      %v1772 = vpop.xlane.xlu0 %1771
      %1773 = vmax.xlane.f32.xlu0 %v1712
      %v1774 = vpop.xlane.xlu0 %1773
      %1775 = vmax.xlane.f32.xlu0 %v1717
      %v1776 = vpop.xlane.xlu0 %1775
      %1777 = vmax.xlane.f32.xlu0 %v1720
      %v1778 = vpop.xlane.xlu0 %1777
      %1779 = vmax.xlane.f32.xlu0 %v1725
      %v1780 = vpop.xlane.xlu0 %1779
      %1781 = vmax.xlane.f32.xlu0 %v1728
      %v1782 = vpop.xlane.xlu0 %1781
      %1783 = vmax.xlane.f32.xlu0 %v1733
      %v1784 = vpop.xlane.xlu0 %1783
      %1785 = vmax.xlane.f32.xlu0 %v1736
      %v1786 = vpop.xlane.xlu0 %1785
      %1787 = vmax.xlane.f32.xlu0 %v1741
      %v1788 = vpop.xlane.xlu0 %1787
      %1789 = vmax.xlane.f32.xlu0 %v1744
      %v1790 = vpop.xlane.xlu0 %1789
      %1791 = vmax.xlane.f32.xlu0 %v1749
      %v1792 = vpop.xlane.xlu0 %1791
      %1793 = vmax.xlane.f32.xlu0 %v1752
      %v1794 = vpop.xlane.xlu0 %1793
      %1795 = vmax.xlane.f32.xlu0 %v1757
      %v1796 = vpop.xlane.xlu0 %1795
      %1797 = vmax.xlane.f32.xlu0 %v1760
      %v1798 = vpop.xlane.xlu0 %1797
      %1799 = vmax.xlane.f32.xlu0 %v1765
      %v1800 = vpop.xlane.xlu0 %1799
      %1801 = vmax.xlane.f32.xlu0 %v1768
      %v1802 = vpop.xlane.xlu0 %1801
      %v1803 = vsub.f32 %v1709, %v1772
      %v1804 = vsub.f32 %v1712, %v1774
      %v1805 = vsub.f32 %v1717, %v1776
      %v1806 = vsub.f32 %v1720, %v1778
      %v1807 = vsub.f32 %v1725, %v1780
      %v1808 = vsub.f32 %v1728, %v1782
      %v1809 = vsub.f32 %v1733, %v1784
      %v1810 = vsub.f32 %v1736, %v1786
      %v1811 = vsub.f32 %v1741, %v1788
      %v1812 = vsub.f32 %v1744, %v1790
      %v1813 = vsub.f32 %v1749, %v1792
      %v1814 = vsub.f32 %v1752, %v1794
      %v1815 = vsub.f32 %v1757, %v1796
      %v1816 = vsub.f32 %v1760, %v1798
      %v1817 = vsub.f32 %v1765, %v1800
      %v1818 = vsub.f32 %v1768, %v1802
      %v1819 = vmul.f32 %v1803, 1.442695
      %v1820 = vpow.pop %v1819
      %v1821 = vmul.f32 %v1804, 1.442695
      %v1822 = vpow.pop %v1821
      %v1823 = vmul.f32 %v1805, 1.442695
      %v1824 = vpow.pop %v1823
      %v1825 = vmul.f32 %v1806, 1.442695
      %v1826 = vpow.pop %v1825
      %v1827 = vmul.f32 %v1807, 1.442695
      %v1828 = vpow.pop %v1827
      %v1829 = vmul.f32 %v1808, 1.442695
      %v1830 = vpow.pop %v1829
      %v1831 = vmul.f32 %v1809, 1.442695
      %v1832 = vpow.pop %v1831
      %v1833 = vmul.f32 %v1810, 1.442695
      %v1834 = vpow.pop %v1833
      %v1835 = vmul.f32 %v1811, 1.442695
      %v1836 = vpow.pop %v1835
      %v1837 = vmul.f32 %v1812, 1.442695
      %v1838 = vpow.pop %v1837
      %v1839 = vmul.f32 %v1813, 1.442695
      %v1840 = vpow.pop %v1839
      %v1841 = vmul.f32 %v1814, 1.442695
      %v1842 = vpow.pop %v1841
      %v1843 = vmul.f32 %v1815, 1.442695
      %v1844 = vpow.pop %v1843
      %v1845 = vmul.f32 %v1816, 1.442695
      %v1846 = vpow.pop %v1845
      %v1847 = vmul.f32 %v1817, 1.442695
      %v1848 = vpow.pop %v1847
      %v1849 = vmul.f32 %v1818, 1.442695
      %v1850 = vpow.pop %v1849
      %1851 = vadd.xlane.f32.xlu0 %v1820
      %v1852 = vpop.xlane.xlu0 %1851
      %1853 = vadd.xlane.f32.xlu0 %v1822
      %v1854 = vpop.xlane.xlu0 %1853
      %1855 = vadd.xlane.f32.xlu0 %v1824
      %v1856 = vpop.xlane.xlu0 %1855
      %1857 = vadd.xlane.f32.xlu0 %v1826
      %v1858 = vpop.xlane.xlu0 %1857
      %1859 = vadd.xlane.f32.xlu0 %v1828
      %v1860 = vpop.xlane.xlu0 %1859
      %1861 = vadd.xlane.f32.xlu0 %v1830
      %v1862 = vpop.xlane.xlu0 %1861
      %1863 = vadd.xlane.f32.xlu0 %v1832
      %v1864 = vpop.xlane.xlu0 %1863
      %1865 = vadd.xlane.f32.xlu0 %v1834
      %v1866 = vpop.xlane.xlu0 %1865
      %1867 = vadd.xlane.f32.xlu0 %v1836
      %v1868 = vpop.xlane.xlu0 %1867
      %1869 = vadd.xlane.f32.xlu0 %v1838
      %v1870 = vpop.xlane.xlu0 %1869
      %1871 = vadd.xlane.f32.xlu0 %v1840
      %v1872 = vpop.xlane.xlu0 %1871
      %1873 = vadd.xlane.f32.xlu0 %v1842
      %v1874 = vpop.xlane.xlu0 %1873
      %1875 = vadd.xlane.f32.xlu0 %v1844
      %v1876 = vpop.xlane.xlu0 %1875
      %1877 = vadd.xlane.f32.xlu0 %v1846
      %v1878 = vpop.xlane.xlu0 %1877
      %1879 = vadd.xlane.f32.xlu0 %v1848
      %v1880 = vpop.xlane.xlu0 %1879
      %1881 = vadd.xlane.f32.xlu0 %v1850
      %v1882 = vpop.xlane.xlu0 %1881
      %v1883 = vrcp.pop %v1852
      %v1884 = vrcp.pop %v1854
      %v1885 = vrcp.pop %v1856
      %v1886 = vrcp.pop %v1858
      %v1887 = vrcp.pop %v1860
      %v1888 = vrcp.pop %v1862
      %v1889 = vrcp.pop %v1864
      %v1890 = vrcp.pop %v1866
      %v1891 = vrcp.pop %v1868
      %v1892 = vrcp.pop %v1870
      %v1893 = vrcp.pop %v1872
      %v1894 = vrcp.pop %v1874
      %v1895 = vrcp.pop %v1876
      %v1896 = vrcp.pop %v1878
      %v1897 = vrcp.pop %v1880
      %v1898 = vrcp.pop %v1882
      %v1899 = vmul.f32 %v1820, %v1883
      %v1900 = vmul.f32 %v1822, %v1884
      %v1901 = vmul.f32 %v1824, %v1885
      %v1902 = vmul.f32 %v1826, %v1886
      %v1903 = vmul.f32 %v1828, %v1887
      %v1904 = vmul.f32 %v1830, %v1888
      %v1905 = vmul.f32 %v1832, %v1889
      %v1906 = vmul.f32 %v1834, %v1890
      %v1907 = vmul.f32 %v1836, %v1891
      %v1908 = vmul.f32 %v1838, %v1892
      %v1909 = vmul.f32 %v1840, %v1893
      %v1910 = vmul.f32 %v1842, %v1894
      %v1911 = vmul.f32 %v1844, %v1895
      %v1912 = vmul.f32 %v1846, %v1896
      %v1913 = vmul.f32 %v1848, %v1897
      %v1914 = vmul.f32 %v1850, %v1898
      %v1915 = vpack.c.bf16 %v1900, %v1899
      %v1916 = vpack.c.bf16 %v1902, %v1901
      %v1917 = vpack.c.bf16 %v1904, %v1903
      %v1918 = vpack.c.bf16 %v1906, %v1905
      %v1919 = vpack.c.bf16 %v1908, %v1907
      %v1920 = vpack.c.bf16 %v1910, %v1909
      %v1921 = vpack.c.bf16 %v1912, %v1911
      %v1922 = vpack.c.bf16 %v1914, %v1913
      %1923 = vmatprep.subr.bf16.mxu0 0
      %1924 = vmatpush1.bf16.msra.mxu0 %v1617
      %1925 = vmatprep.subr.bf16.mxu0 0
      %1926 = vmatpush1.bf16.msra.mxu0 %v1618
      %1927 = vmatprep.subr.bf16.mxu0 0
      %1928 = vmatpush1.bf16.msra.mxu0 %v1619
      %1929 = vmatprep.subr.bf16.mxu0 0
      %1930 = vmatpush1.bf16.msra.mxu0 %v1620
      %1931 = vmatprep.subr.bf16.mxu0 0
      %1932 = vmatpush1.bf16.msra.mxu0 %v1621
      %1933 = vmatprep.subr.bf16.mxu0 0
      %1934 = vmatpush1.bf16.msra.mxu0 %v1622
      %1935 = vmatprep.subr.bf16.mxu0 0
      %1936 = vmatpush1.bf16.msra.mxu0 %v1623
      %1937 = vmatprep.subr.bf16.mxu0 0
      %1938 = vmatpush1.bf16.msra.mxu0 %v1624
      %1939 = vmatprep.subr.bf16.mxu0 0
      %1940 = vmatpush1.bf16.msra.mxu0 0
      %1941 = vmatprep.subr.bf16.mxu0 0
      %1942 = vmatpush1.bf16.msra.mxu0 0
      %1943 = vmatprep.subr.bf16.mxu0 0
      %1944 = vmatpush1.bf16.msra.mxu0 0
      %1945 = vmatprep.subr.bf16.mxu0 0
      %1946 = vmatpush1.bf16.msra.mxu0 0
      %1947 = vmatprep.subr.bf16.mxu0 0
      %1948 = vmatpush1.bf16.msra.mxu0 0
      %1949 = vmatprep.subr.bf16.mxu0 0
      %1950 = vmatpush1.bf16.msra.mxu0 0
      %1951 = vmatprep.subr.bf16.mxu0 0
      %1952 = vmatpush1.bf16.msra.mxu0 0
      %1953 = vmatprep.subr.bf16.mxu0 0
      %1954 = vmatpush1.bf16.msra.mxu0 0
      %1955 = vmatprep.mubr.bf16.mxu0 0
      %1956 = vmatmul.mubr.bf16.gmra.mrb[0].mxu0 %v1915
      %v1957 = vpop.f32.mrb[0].mxu0
      %v1958 = vadd.f32 0.0, %v1957
      %v1959 = vpop.f32.mrb[0].mxu0
      %v1960 = vpop.f32.mrb[0].mxu0
      %v1961 = vadd.f32 0.0, %v1960
      %v1962 = vpop.f32.mrb[0].mxu0
      %1963 = vmatprep.mubr.bf16.mxu0 0
      %1964 = vmatmul.mubr.bf16.gmra.mrb[0].mxu0 %v1916
      %v1965 = vpop.f32.mrb[0].mxu0
      %v1966 = vadd.f32 0.0, %v1965
      %v1967 = vpop.f32.mrb[0].mxu0
      %v1968 = vpop.f32.mrb[0].mxu0
      %v1969 = vadd.f32 0.0, %v1968
      %v1970 = vpop.f32.mrb[0].mxu0
      %1971 = vmatprep.mubr.bf16.mxu0 0
      %1972 = vmatmul.mubr.bf16.gmra.mrb[0].mxu0 %v1917
      %v1973 = vpop.f32.mrb[0].mxu0
      %v1974 = vadd.f32 0.0, %v1973
      %v1975 = vpop.f32.mrb[0].mxu0
      %v1976 = vpop.f32.mrb[0].mxu0
      %v1977 = vadd.f32 0.0, %v1976
      %v1978 = vpop.f32.mrb[0].mxu0
      %1979 = vmatprep.mubr.bf16.mxu0 0
      %1980 = vmatmul.mubr.bf16.gmra.mrb[0].mxu0 %v1918
      %v1981 = vpop.f32.mrb[0].mxu0
      %v1982 = vadd.f32 0.0, %v1981
      %v1983 = vpop.f32.mrb[0].mxu0
      %v1984 = vpop.f32.mrb[0].mxu0
      %v1985 = vadd.f32 0.0, %v1984
      %v1986 = vpop.f32.mrb[0].mxu0
      %1987 = vmatprep.mubr.bf16.mxu0 0
      %1988 = vmatmul.mubr.bf16.gmra.mrb[0].mxu0 %v1919
      %v1989 = vpop.f32.mrb[0].mxu0
      %v1990 = vadd.f32 0.0, %v1989
      %v1991 = vpop.f32.mrb[0].mxu0
      %v1992 = vpop.f32.mrb[0].mxu0
      %v1993 = vadd.f32 0.0, %v1992
      %v1994 = vpop.f32.mrb[0].mxu0
      %1995 = vmatprep.mubr.bf16.mxu0 0
      %1996 = vmatmul.mubr.bf16.gmra.mrb[0].mxu0 %v1920
      %v1997 = vpop.f32.mrb[0].mxu0
      %v1998 = vadd.f32 0.0, %v1997
      %v1999 = vpop.f32.mrb[0].mxu0
      %v2000 = vpop.f32.mrb[0].mxu0
      %v2001 = vadd.f32 0.0, %v2000
      %v2002 = vpop.f32.mrb[0].mxu0
      %2003 = vmatprep.mubr.bf16.mxu0 0
      %2004 = vmatmul.mubr.bf16.gmra.mrb[0].mxu0 %v1921
      %v2005 = vpop.f32.mrb[0].mxu0
      %v2006 = vadd.f32 0.0, %v2005
      %v2007 = vpop.f32.mrb[0].mxu0
      %v2008 = vpop.f32.mrb[0].mxu0
      %v2009 = vadd.f32 0.0, %v2008
      %v2010 = vpop.f32.mrb[0].mxu0
      %2011 = vmatprep.mubr.bf16.mxu0 0
      %2012 = vmatmul.mubr.bf16.gmra.mrb[0].mxu0 %v1922
      %v2013 = vpop.f32.mrb[0].mxu0
      %v2014 = vadd.f32 0.0, %v2013
      %v2015 = vpop.f32.mrb[0].mxu0
      %v2016 = vpop.f32.mrb[0].mxu0
      %v2017 = vadd.f32 0.0, %v2016
      %v2018 = vpop.f32.mrb[0].mxu0
      %2019 = vdwg.mxu0
      %v2020 = vpack.c.bf16 %v1961, %v1958
      %v2021 = vpack.c.bf16 %v1969, %v1966
      %v2022 = vpack.c.bf16 %v1977, %v1974
      %v2023 = vpack.c.bf16 %v1985, %v1982
      %v2024 = vpack.c.bf16 %v1993, %v1990
      %v2025 = vpack.c.bf16 %v2001, %v1998
      %v2026 = vpack.c.bf16 %v2009, %v2006
      %v2027 = vpack.c.bf16 %v2017, %v2014
      %2036 = vrot.lane.b32.xlu0 %v1601, 64
      %v2037 = vpop.permute.xlu0 %2036
      %2038 = vrot.lane.b32.xlu0 %v1602, 64
      %v2039 = vpop.permute.xlu0 %2038
      %2040 = vrot.lane.b32.xlu0 %v1603, 64
      %v2041 = vpop.permute.xlu0 %2040
      %2042 = vrot.lane.b32.xlu0 %v1604, 64
      %v2043 = vpop.permute.xlu0 %2042
      %2044 = vrot.lane.b32.xlu0 %v1605, 64
      %v2045 = vpop.permute.xlu0 %2044
      %2046 = vrot.lane.b32.xlu0 %v1606, 64
      %v2047 = vpop.permute.xlu0 %2046
      %2048 = vrot.lane.b32.xlu0 %v1607, 64
      %v2049 = vpop.permute.xlu0 %2048
      %2050 = vrot.lane.b32.xlu0 %v1608, 64
      %v2051 = vpop.permute.xlu0 %2050
      %2060 = vrot.lane.b32.xlu0 %v1609, 64
      %v2061 = vpop.permute.xlu0 %2060
      %2062 = vrot.lane.b32.xlu0 %v1610, 64
      %v2063 = vpop.permute.xlu0 %2062
      %2064 = vrot.lane.b32.xlu0 %v1611, 64
      %v2065 = vpop.permute.xlu0 %2064
      %2066 = vrot.lane.b32.xlu0 %v1612, 64
      %v2067 = vpop.permute.xlu0 %2066
      %2068 = vrot.lane.b32.xlu0 %v1613, 64
      %v2069 = vpop.permute.xlu0 %2068
      %2070 = vrot.lane.b32.xlu0 %v1614, 64
      %v2071 = vpop.permute.xlu0 %2070
      %2072 = vrot.lane.b32.xlu0 %v1615, 64
      %v2073 = vpop.permute.xlu0 %2072
      %2074 = vrot.lane.b32.xlu0 %v1616, 64
      %v2075 = vpop.permute.xlu0 %2074
      %v2077 = vsel %vm1625, %v2037, 0
      %v2080 = vsel %vm1625, %v2039, 0
      %v2083 = vsel %vm1625, %v2041, 0
      %v2086 = vsel %vm1625, %v2043, 0
      %v2089 = vsel %vm1625, %v2045, 0
      %v2092 = vsel %vm1625, %v2047, 0
      %v2095 = vsel %vm1625, %v2049, 0
      %v2098 = vsel %vm1625, %v2051, 0
      %v2101 = vsel %vm1625, %v2061, 0
      %v2104 = vsel %vm1625, %v2063, 0
      %v2107 = vsel %vm1625, %v2065, 0
      %v2110 = vsel %vm1625, %v2067, 0
      %v2113 = vsel %vm1625, %v2069, 0
      %v2116 = vsel %vm1625, %v2071, 0
      %v2119 = vsel %vm1625, %v2073, 0
      %v2122 = vsel %vm1625, %v2075, 0
      %2124 = vmatprep.subr.bf16.mxu0 0
      %2125 = vmatpush1.bf16.xpose.msra.mxu0 %v2101
      %2126 = vmatprep.subr.bf16.mxu0 0
      %2127 = vmatpush1.bf16.xpose.msra.mxu0 %v2104
      %2128 = vmatprep.subr.bf16.mxu0 0
      %2129 = vmatpush1.bf16.xpose.msra.mxu0 %v2107
      %2130 = vmatprep.subr.bf16.mxu0 0
      %2131 = vmatpush1.bf16.xpose.msra.mxu0 %v2110
      %2132 = vmatprep.subr.bf16.mxu0 0
      %2133 = vmatpush1.bf16.xpose.msra.mxu0 %v2113
      %2134 = vmatprep.subr.bf16.mxu0 0
      %2135 = vmatpush1.bf16.xpose.msra.mxu0 %v2116
      %2136 = vmatprep.subr.bf16.mxu0 0
      %2137 = vmatpush1.bf16.xpose.msra.mxu0 %v2119
      %2138 = vmatprep.subr.bf16.mxu0 0
      %2139 = vmatpush1.bf16.xpose.msra.mxu0 %v2122
      %2140 = vmatprep.subr.bf16.mxu0 0
      %2141 = vmatpush1.bf16.xpose.msra.mxu0 0
      %2142 = vmatprep.subr.bf16.mxu0 0
      %2143 = vmatpush1.bf16.xpose.msra.mxu0 0
      %2144 = vmatprep.subr.bf16.mxu0 0
      %2145 = vmatpush1.bf16.xpose.msra.mxu0 0
      %2146 = vmatprep.subr.bf16.mxu0 0
      %2147 = vmatpush1.bf16.xpose.msra.mxu0 0
      %2148 = vmatprep.subr.bf16.mxu0 0
      %2149 = vmatpush1.bf16.xpose.msra.mxu0 0
      %2150 = vmatprep.subr.bf16.mxu0 0
      %2151 = vmatpush1.bf16.xpose.msra.mxu0 0
      %2152 = vmatprep.subr.bf16.mxu0 0
      %2153 = vmatpush1.bf16.xpose.msra.mxu0 0
      %2154 = vmatprep.subr.bf16.mxu0 0
      %2155 = vmatpush1.bf16.xpose.msra.mxu0 0
      %2156 = vmatprep.mubr.bf16.mxu0 0
      %2157 = vmatmul.mubr.bf16.gmra.mrb[0].mxu0 %v2077
      %v2158 = vpop.f32.mrb[0].mxu0
      %v2159 = vadd.f32 %v903, %v2158
      %v2160 = vpop.f32.mrb[0].mxu0
      %v2161 = vpop.f32.mrb[0].mxu0
      %v2162 = vadd.f32 %v904, %v2161
      %v2163 = vpop.f32.mrb[0].mxu0
      %2164 = vmatprep.mubr.bf16.mxu0 0
      %2165 = vmatmul.mubr.bf16.gmra.mrb[0].mxu0 %v2080
      %v2166 = vpop.f32.mrb[0].mxu0
      %v2167 = vadd.f32 %v905, %v2166
      %v2168 = vpop.f32.mrb[0].mxu0
      %v2169 = vpop.f32.mrb[0].mxu0
      %v2170 = vadd.f32 %v906, %v2169
      %v2171 = vpop.f32.mrb[0].mxu0
      %2172 = vmatprep.mubr.bf16.mxu0 0
      %2173 = vmatmul.mubr.bf16.gmra.mrb[0].mxu0 %v2083
      %v2174 = vpop.f32.mrb[0].mxu0
      %v2175 = vadd.f32 %v907, %v2174
      %v2176 = vpop.f32.mrb[0].mxu0
      %v2177 = vpop.f32.mrb[0].mxu0
      %v2178 = vadd.f32 %v908, %v2177
      %v2179 = vpop.f32.mrb[0].mxu0
      %2180 = vmatprep.mubr.bf16.mxu0 0
      %2181 = vmatmul.mubr.bf16.gmra.mrb[0].mxu0 %v2086
      %v2182 = vpop.f32.mrb[0].mxu0
      %v2183 = vadd.f32 %v909, %v2182
      %v2184 = vpop.f32.mrb[0].mxu0
      %v2185 = vpop.f32.mrb[0].mxu0
      %v2186 = vadd.f32 %v910, %v2185
      %v2187 = vpop.f32.mrb[0].mxu0
      %2188 = vmatprep.mubr.bf16.mxu0 0
      %2189 = vmatmul.mubr.bf16.gmra.mrb[0].mxu0 %v2089
      %v2190 = vpop.f32.mrb[0].mxu0
      %v2191 = vadd.f32 %v911, %v2190
      %v2192 = vpop.f32.mrb[0].mxu0
      %v2193 = vpop.f32.mrb[0].mxu0
      %v2194 = vadd.f32 %v912, %v2193
      %v2195 = vpop.f32.mrb[0].mxu0
      %2196 = vmatprep.mubr.bf16.mxu0 0
      %2197 = vmatmul.mubr.bf16.gmra.mrb[0].mxu0 %v2092
      %v2198 = vpop.f32.mrb[0].mxu0
      %v2199 = vadd.f32 %v913, %v2198
      %v2200 = vpop.f32.mrb[0].mxu0
      %v2201 = vpop.f32.mrb[0].mxu0
      %v2202 = vadd.f32 %v914, %v2201
      %v2203 = vpop.f32.mrb[0].mxu0
      %2204 = vmatprep.mubr.bf16.mxu0 0
      %2205 = vmatmul.mubr.bf16.gmra.mrb[0].mxu0 %v2095
      %v2206 = vpop.f32.mrb[0].mxu0
      %v2207 = vadd.f32 %v915, %v2206
      %v2208 = vpop.f32.mrb[0].mxu0
      %v2209 = vpop.f32.mrb[0].mxu0
      %v2210 = vadd.f32 %v916, %v2209
      %v2211 = vpop.f32.mrb[0].mxu0
      %2212 = vmatprep.mubr.bf16.mxu0 0
      %2213 = vmatmul.mubr.bf16.gmra.mrb[0].mxu0 %v2098
      %v2214 = vpop.f32.mrb[0].mxu0
      %v2215 = vadd.f32 %v917, %v2214
      %v2216 = vpop.f32.mrb[0].mxu0
      %v2217 = vpop.f32.mrb[0].mxu0
      %v2218 = vadd.f32 %v918, %v2217
      %v2219 = vpop.f32.mrb[0].mxu0
      %2220 = vdwg.mxu0
      %2221 = vmax.xlane.f32.xlu0 %v2159
      %v2222 = vpop.xlane.xlu0 %2221
      %2223 = vmax.xlane.f32.xlu0 %v2162
      %v2224 = vpop.xlane.xlu0 %2223
      %2225 = vmax.xlane.f32.xlu0 %v2167
      %v2226 = vpop.xlane.xlu0 %2225
      %2227 = vmax.xlane.f32.xlu0 %v2170
      %v2228 = vpop.xlane.xlu0 %2227
      %2229 = vmax.xlane.f32.xlu0 %v2175
      %v2230 = vpop.xlane.xlu0 %2229
      %2231 = vmax.xlane.f32.xlu0 %v2178
      %v2232 = vpop.xlane.xlu0 %2231
      %2233 = vmax.xlane.f32.xlu0 %v2183
      %v2234 = vpop.xlane.xlu0 %2233
      %2235 = vmax.xlane.f32.xlu0 %v2186
      %v2236 = vpop.xlane.xlu0 %2235
      %2237 = vmax.xlane.f32.xlu0 %v2191
      %v2238 = vpop.xlane.xlu0 %2237
      %2239 = vmax.xlane.f32.xlu0 %v2194
      %v2240 = vpop.xlane.xlu0 %2239
      %2241 = vmax.xlane.f32.xlu0 %v2199
      %v2242 = vpop.xlane.xlu0 %2241
      %2243 = vmax.xlane.f32.xlu0 %v2202
      %v2244 = vpop.xlane.xlu0 %2243
      %2245 = vmax.xlane.f32.xlu0 %v2207
      %v2246 = vpop.xlane.xlu0 %2245
      %2247 = vmax.xlane.f32.xlu0 %v2210
      %v2248 = vpop.xlane.xlu0 %2247
      %2249 = vmax.xlane.f32.xlu0 %v2215
      %v2250 = vpop.xlane.xlu0 %2249
      %2251 = vmax.xlane.f32.xlu0 %v2218
      %v2252 = vpop.xlane.xlu0 %2251
      %v2253 = vsub.f32 %v2159, %v2222
      %v2254 = vsub.f32 %v2162, %v2224
      %v2255 = vsub.f32 %v2167, %v2226
      %v2256 = vsub.f32 %v2170, %v2228
      %v2257 = vsub.f32 %v2175, %v2230
      %v2258 = vsub.f32 %v2178, %v2232
      %v2259 = vsub.f32 %v2183, %v2234
      %v2260 = vsub.f32 %v2186, %v2236
      %v2261 = vsub.f32 %v2191, %v2238
      %v2262 = vsub.f32 %v2194, %v2240
      %v2263 = vsub.f32 %v2199, %v2242
      %v2264 = vsub.f32 %v2202, %v2244
      %v2265 = vsub.f32 %v2207, %v2246
      %v2266 = vsub.f32 %v2210, %v2248
      %v2267 = vsub.f32 %v2215, %v2250
      %v2268 = vsub.f32 %v2218, %v2252
      %v2269 = vmul.f32 %v2253, 1.442695
      %v2270 = vpow.pop %v2269
      %v2271 = vmul.f32 %v2254, 1.442695
      %v2272 = vpow.pop %v2271
      %v2273 = vmul.f32 %v2255, 1.442695
      %v2274 = vpow.pop %v2273
      %v2275 = vmul.f32 %v2256, 1.442695
      %v2276 = vpow.pop %v2275
      %v2277 = vmul.f32 %v2257, 1.442695
      %v2278 = vpow.pop %v2277
      %v2279 = vmul.f32 %v2258, 1.442695
      %v2280 = vpow.pop %v2279
      %v2281 = vmul.f32 %v2259, 1.442695
      %v2282 = vpow.pop %v2281
      %v2283 = vmul.f32 %v2260, 1.442695
      %v2284 = vpow.pop %v2283
      %v2285 = vmul.f32 %v2261, 1.442695
      %v2286 = vpow.pop %v2285
      %v2287 = vmul.f32 %v2262, 1.442695
      %v2288 = vpow.pop %v2287
      %v2289 = vmul.f32 %v2263, 1.442695
      %v2290 = vpow.pop %v2289
      %v2291 = vmul.f32 %v2264, 1.442695
      %v2292 = vpow.pop %v2291
      %v2293 = vmul.f32 %v2265, 1.442695
      %v2294 = vpow.pop %v2293
      %v2295 = vmul.f32 %v2266, 1.442695
      %v2296 = vpow.pop %v2295
      %v2297 = vmul.f32 %v2267, 1.442695
      %v2298 = vpow.pop %v2297
      %v2299 = vmul.f32 %v2268, 1.442695
      %v2300 = vpow.pop %v2299
      %2301 = vadd.xlane.f32.xlu0 %v2270
      %v2302 = vpop.xlane.xlu0 %2301
      %2303 = vadd.xlane.f32.xlu0 %v2272
      %v2304 = vpop.xlane.xlu0 %2303
      %2305 = vadd.xlane.f32.xlu0 %v2274
      %v2306 = vpop.xlane.xlu0 %2305
      %2307 = vadd.xlane.f32.xlu0 %v2276
      %v2308 = vpop.xlane.xlu0 %2307
      %2309 = vadd.xlane.f32.xlu0 %v2278
      %v2310 = vpop.xlane.xlu0 %2309
      %2311 = vadd.xlane.f32.xlu0 %v2280
      %v2312 = vpop.xlane.xlu0 %2311
      %2313 = vadd.xlane.f32.xlu0 %v2282
      %v2314 = vpop.xlane.xlu0 %2313
      %2315 = vadd.xlane.f32.xlu0 %v2284
      %v2316 = vpop.xlane.xlu0 %2315
      %2317 = vadd.xlane.f32.xlu0 %v2286
      %v2318 = vpop.xlane.xlu0 %2317
      %2319 = vadd.xlane.f32.xlu0 %v2288
      %v2320 = vpop.xlane.xlu0 %2319
      %2321 = vadd.xlane.f32.xlu0 %v2290
      %v2322 = vpop.xlane.xlu0 %2321
      %2323 = vadd.xlane.f32.xlu0 %v2292
      %v2324 = vpop.xlane.xlu0 %2323
      %2325 = vadd.xlane.f32.xlu0 %v2294
      %v2326 = vpop.xlane.xlu0 %2325
      %2327 = vadd.xlane.f32.xlu0 %v2296
      %v2328 = vpop.xlane.xlu0 %2327
      %2329 = vadd.xlane.f32.xlu0 %v2298
      %v2330 = vpop.xlane.xlu0 %2329
      %2331 = vadd.xlane.f32.xlu0 %v2300
      %v2332 = vpop.xlane.xlu0 %2331
      %v2333 = vrcp.pop %v2302
      %v2334 = vrcp.pop %v2304
      %v2335 = vrcp.pop %v2306
      %v2336 = vrcp.pop %v2308
      %v2337 = vrcp.pop %v2310
      %v2338 = vrcp.pop %v2312
      %v2339 = vrcp.pop %v2314
      %v2340 = vrcp.pop %v2316
      %v2341 = vrcp.pop %v2318
      %v2342 = vrcp.pop %v2320
      %v2343 = vrcp.pop %v2322
      %v2344 = vrcp.pop %v2324
      %v2345 = vrcp.pop %v2326
      %v2346 = vrcp.pop %v2328
      %v2347 = vrcp.pop %v2330
      %v2348 = vrcp.pop %v2332
      %v2349 = vmul.f32 %v2270, %v2333
      %v2350 = vmul.f32 %v2272, %v2334
      %v2351 = vmul.f32 %v2274, %v2335
      %v2352 = vmul.f32 %v2276, %v2336
      %v2353 = vmul.f32 %v2278, %v2337
      %v2354 = vmul.f32 %v2280, %v2338
      %v2355 = vmul.f32 %v2282, %v2339
      %v2356 = vmul.f32 %v2284, %v2340
      %v2357 = vmul.f32 %v2286, %v2341
      %v2358 = vmul.f32 %v2288, %v2342
      %v2359 = vmul.f32 %v2290, %v2343
      %v2360 = vmul.f32 %v2292, %v2344
      %v2361 = vmul.f32 %v2294, %v2345
      %v2362 = vmul.f32 %v2296, %v2346
      %v2363 = vmul.f32 %v2298, %v2347
      %v2364 = vmul.f32 %v2300, %v2348
      %v2365 = vpack.c.bf16 %v2350, %v2349
      %v2366 = vpack.c.bf16 %v2352, %v2351
      %v2367 = vpack.c.bf16 %v2354, %v2353
      %v2368 = vpack.c.bf16 %v2356, %v2355
      %v2369 = vpack.c.bf16 %v2358, %v2357
      %v2370 = vpack.c.bf16 %v2360, %v2359
      %v2371 = vpack.c.bf16 %v2362, %v2361
      %v2372 = vpack.c.bf16 %v2364, %v2363
      %2381 = vrot.lane.b32.xlu0 %v1617, 64
      %v2382 = vpop.permute.xlu0 %2381
      %2383 = vrot.lane.b32.xlu0 %v1618, 64
      %v2384 = vpop.permute.xlu0 %2383
      %2385 = vrot.lane.b32.xlu0 %v1619, 64
      %v2386 = vpop.permute.xlu0 %2385
      %2387 = vrot.lane.b32.xlu0 %v1620, 64
      %v2388 = vpop.permute.xlu0 %2387
      %2389 = vrot.lane.b32.xlu0 %v1621, 64
      %v2390 = vpop.permute.xlu0 %2389
      %2391 = vrot.lane.b32.xlu0 %v1622, 64
      %v2392 = vpop.permute.xlu0 %2391
      %2393 = vrot.lane.b32.xlu0 %v1623, 64
      %v2394 = vpop.permute.xlu0 %2393
      %2395 = vrot.lane.b32.xlu0 %v1624, 64
      %v2396 = vpop.permute.xlu0 %2395
      %2405 = vmatprep.subr.bf16.mxu0 0
      %2406 = vmatpush1.bf16.msra.mxu0 %v2382
      %2407 = vmatprep.subr.bf16.mxu0 0
      %2408 = vmatpush1.bf16.msra.mxu0 %v2384
      %2409 = vmatprep.subr.bf16.mxu0 0
      %2410 = vmatpush1.bf16.msra.mxu0 %v2386
      %2411 = vmatprep.subr.bf16.mxu0 0
      %2412 = vmatpush1.bf16.msra.mxu0 %v2388
      %2413 = vmatprep.subr.bf16.mxu0 0
      %2414 = vmatpush1.bf16.msra.mxu0 %v2390
      %2415 = vmatprep.subr.bf16.mxu0 0
      %2416 = vmatpush1.bf16.msra.mxu0 %v2392
      %2417 = vmatprep.subr.bf16.mxu0 0
      %2418 = vmatpush1.bf16.msra.mxu0 %v2394
      %2419 = vmatprep.subr.bf16.mxu0 0
      %2420 = vmatpush1.bf16.msra.mxu0 %v2396
      %2421 = vmatprep.subr.bf16.mxu0 0
      %2422 = vmatpush1.bf16.msra.mxu0 0
      %2423 = vmatprep.subr.bf16.mxu0 0
      %2424 = vmatpush1.bf16.msra.mxu0 0
      %2425 = vmatprep.subr.bf16.mxu0 0
      %2426 = vmatpush1.bf16.msra.mxu0 0
      %2427 = vmatprep.subr.bf16.mxu0 0
      %2428 = vmatpush1.bf16.msra.mxu0 0
      %2429 = vmatprep.subr.bf16.mxu0 0
      %2430 = vmatpush1.bf16.msra.mxu0 0
      %2431 = vmatprep.subr.bf16.mxu0 0
      %2432 = vmatpush1.bf16.msra.mxu0 0
      %2433 = vmatprep.subr.bf16.mxu0 0
      %2434 = vmatpush1.bf16.msra.mxu0 0
      %2435 = vmatprep.subr.bf16.mxu0 0
      %2436 = vmatpush1.bf16.msra.mxu0 0
      %2437 = vmatprep.mubr.bf16.mxu0 0
      %2438 = vmatmul.mubr.bf16.gmra.mrb[0].mxu0 %v2365
      %v2439 = vpop.f32.mrb[0].mxu0
      %v2440 = vadd.f32 0.0, %v2439
      %v2441 = vpop.f32.mrb[0].mxu0
      %v2442 = vpop.f32.mrb[0].mxu0
      %v2443 = vadd.f32 0.0, %v2442
      %v2444 = vpop.f32.mrb[0].mxu0
      %2445 = vmatprep.mubr.bf16.mxu0 0
      %2446 = vmatmul.mubr.bf16.gmra.mrb[0].mxu0 %v2366
      %v2447 = vpop.f32.mrb[0].mxu0
      %v2448 = vadd.f32 0.0, %v2447
      %v2449 = vpop.f32.mrb[0].mxu0
      %v2450 = vpop.f32.mrb[0].mxu0
      %v2451 = vadd.f32 0.0, %v2450
      %v2452 = vpop.f32.mrb[0].mxu0
      %2453 = vmatprep.mubr.bf16.mxu0 0
      %2454 = vmatmul.mubr.bf16.gmra.mrb[0].mxu0 %v2367
      %v2455 = vpop.f32.mrb[0].mxu0
      %v2456 = vadd.f32 0.0, %v2455
      %v2457 = vpop.f32.mrb[0].mxu0
      %v2458 = vpop.f32.mrb[0].mxu0
      %v2459 = vadd.f32 0.0, %v2458
      %v2460 = vpop.f32.mrb[0].mxu0
      %2461 = vmatprep.mubr.bf16.mxu0 0
      %2462 = vmatmul.mubr.bf16.gmra.mrb[0].mxu0 %v2368
      %v2463 = vpop.f32.mrb[0].mxu0
      %v2464 = vadd.f32 0.0, %v2463
      %v2465 = vpop.f32.mrb[0].mxu0
      %v2466 = vpop.f32.mrb[0].mxu0
      %v2467 = vadd.f32 0.0, %v2466
      %v2468 = vpop.f32.mrb[0].mxu0
      %2469 = vmatprep.mubr.bf16.mxu0 0
      %2470 = vmatmul.mubr.bf16.gmra.mrb[0].mxu0 %v2369
      %v2471 = vpop.f32.mrb[0].mxu0
      %v2472 = vadd.f32 0.0, %v2471
      %v2473 = vpop.f32.mrb[0].mxu0
      %v2474 = vpop.f32.mrb[0].mxu0
      %v2475 = vadd.f32 0.0, %v2474
      %v2476 = vpop.f32.mrb[0].mxu0
      %2477 = vmatprep.mubr.bf16.mxu0 0
      %2478 = vmatmul.mubr.bf16.gmra.mrb[0].mxu0 %v2370
      %v2479 = vpop.f32.mrb[0].mxu0
      %v2480 = vadd.f32 0.0, %v2479
      %v2481 = vpop.f32.mrb[0].mxu0
      %v2482 = vpop.f32.mrb[0].mxu0
      %v2483 = vadd.f32 0.0, %v2482
      %v2484 = vpop.f32.mrb[0].mxu0
      %2485 = vmatprep.mubr.bf16.mxu0 0
      %2486 = vmatmul.mubr.bf16.gmra.mrb[0].mxu0 %v2371
      %v2487 = vpop.f32.mrb[0].mxu0
      %v2488 = vadd.f32 0.0, %v2487
      %v2489 = vpop.f32.mrb[0].mxu0
      %v2490 = vpop.f32.mrb[0].mxu0
      %v2491 = vadd.f32 0.0, %v2490
      %v2492 = vpop.f32.mrb[0].mxu0
      %2493 = vmatprep.mubr.bf16.mxu0 0
      %2494 = vmatmul.mubr.bf16.gmra.mrb[0].mxu0 %v2372
      %v2495 = vpop.f32.mrb[0].mxu0
      %v2496 = vadd.f32 0.0, %v2495
      %v2497 = vpop.f32.mrb[0].mxu0
      %v2498 = vpop.f32.mrb[0].mxu0
      %v2499 = vadd.f32 0.0, %v2498
      %v2500 = vpop.f32.mrb[0].mxu0
      %2501 = vdwg.mxu0
      %v2502 = vpack.c.bf16 %v2443, %v2440
      %v2503 = vpack.c.bf16 %v2451, %v2448
      %v2504 = vpack.c.bf16 %v2459, %v2456
      %v2505 = vpack.c.bf16 %v2467, %v2464
      %v2506 = vpack.c.bf16 %v2475, %v2472
      %v2507 = vpack.c.bf16 %v2483, %v2480
      %v2508 = vpack.c.bf16 %v2491, %v2488
      %v2509 = vpack.c.bf16 %v2499, %v2496
      %v2518 = vunpack.c.l.b16 %v1593
      %v2519 = vunpack.c.l.b16 %v1594
      %v2520 = vunpack.c.l.b16 %v1595
      %v2521 = vunpack.c.l.b16 %v1596
      %v2522 = vunpack.c.l.b16 %v1597
      %v2523 = vunpack.c.l.b16 %v1598
      %v2524 = vunpack.c.l.b16 %v1599
      %v2525 = vunpack.c.l.b16 %v1600
      %v2526 = vpack.c.b16 %v2519, %v2518
      %v2527 = vpack.c.b16 %v2521, %v2520
      %v2528 = vpack.c.b16 %v2523, %v2522
      %v2529 = vpack.c.b16 %v2525, %v2524
      %v2535 = vsel %vm1625, %v2502, 0
      %v2538 = vsel %vm1625, %v2503, 0
      %v2541 = vsel %vm1625, %v2504, 0
      %v2544 = vsel %vm1625, %v2505, 0
      %v2547 = vsel %vm1625, %v2506, 0
      %v2550 = vsel %vm1625, %v2507, 0
      %v2553 = vsel %vm1625, %v2508, 0
      %v2556 = vsel %vm1625, %v2509, 0
      %2558 = vmatprep.subr.bf16.mxu0 0
      %2559 = vmatpush1.bf16.msra.mxu0 %v2526
      %2560 = vmatprep.subr.bf16.mxu0 0
      %2561 = vmatpush1.bf16.msra.mxu0 %v2527
      %2562 = vmatprep.subr.bf16.mxu0 0
      %2563 = vmatpush1.bf16.msra.mxu0 %v2528
      %2564 = vmatprep.subr.bf16.mxu0 0
      %2565 = vmatpush1.bf16.msra.mxu0 %v2529
      %2566 = vmatprep.subr.bf16.mxu0 0
      %2567 = vmatpush1.bf16.msra.mxu0 0
      %2568 = vmatprep.subr.bf16.mxu0 0
      %2569 = vmatpush1.bf16.msra.mxu0 0
      %2570 = vmatprep.subr.bf16.mxu0 0
      %2571 = vmatpush1.bf16.msra.mxu0 0
      %2572 = vmatprep.subr.bf16.mxu0 0
      %2573 = vmatpush1.bf16.msra.mxu0 0
      %2574 = vmatprep.subr.bf16.mxu0 0
      %2575 = vmatpush1.bf16.msra.mxu0 0
      %2576 = vmatprep.subr.bf16.mxu0 0
      %2577 = vmatpush1.bf16.msra.mxu0 0
      %2578 = vmatprep.subr.bf16.mxu0 0
      %2579 = vmatpush1.bf16.msra.mxu0 0
      %2580 = vmatprep.subr.bf16.mxu0 0
      %2581 = vmatpush1.bf16.msra.mxu0 0
      %2582 = vmatprep.subr.bf16.mxu0 0
      %2583 = vmatpush1.bf16.msra.mxu0 0
      %2584 = vmatprep.subr.bf16.mxu0 0
      %2585 = vmatpush1.bf16.msra.mxu0 0
      %2586 = vmatprep.subr.bf16.mxu0 0
      %2587 = vmatpush1.bf16.msra.mxu0 0
      %2588 = vmatprep.subr.bf16.mxu0 0
      %2589 = vmatpush1.bf16.msra.mxu0 0
      %2590 = vmatprep.mubr.bf16.mxu0 0
      %2591 = vmatmul.mubr.bf16.gmra.mrb[0].mxu0 %v2535
      %v2592 = vpop.f32.mrb[0].mxu0
      %v2593 = vadd.f32 0.0, %v2592
      %v2594 = vpop.f32.mrb[0].mxu0
      %v2595 = vpop.f32.mrb[0].mxu0
      %v2596 = vadd.f32 0.0, %v2595
      %v2597 = vpop.f32.mrb[0].mxu0
      %2598 = vmatprep.mubr.bf16.mxu0 0
      %2599 = vmatmul.mubr.bf16.gmra.mrb[0].mxu0 %v2538
      %v2600 = vpop.f32.mrb[0].mxu0
      %v2601 = vadd.f32 0.0, %v2600
      %v2602 = vpop.f32.mrb[0].mxu0
      %v2603 = vpop.f32.mrb[0].mxu0
      %v2604 = vadd.f32 0.0, %v2603
      %v2605 = vpop.f32.mrb[0].mxu0
      %2606 = vmatprep.mubr.bf16.mxu0 0
      %2607 = vmatmul.mubr.bf16.gmra.mrb[0].mxu0 %v2541
      %v2608 = vpop.f32.mrb[0].mxu0
      %v2609 = vadd.f32 0.0, %v2608
      %v2610 = vpop.f32.mrb[0].mxu0
      %v2611 = vpop.f32.mrb[0].mxu0
      %v2612 = vadd.f32 0.0, %v2611
      %v2613 = vpop.f32.mrb[0].mxu0
      %2614 = vmatprep.mubr.bf16.mxu0 0
      %2615 = vmatmul.mubr.bf16.gmra.mrb[0].mxu0 %v2544
      %v2616 = vpop.f32.mrb[0].mxu0
      %v2617 = vadd.f32 0.0, %v2616
      %v2618 = vpop.f32.mrb[0].mxu0
      %v2619 = vpop.f32.mrb[0].mxu0
      %v2620 = vadd.f32 0.0, %v2619
      %v2621 = vpop.f32.mrb[0].mxu0
      %2622 = vmatprep.mubr.bf16.mxu0 0
      %2623 = vmatmul.mubr.bf16.gmra.mrb[0].mxu0 %v2547
      %v2624 = vpop.f32.mrb[0].mxu0
      %v2625 = vadd.f32 0.0, %v2624
      %v2626 = vpop.f32.mrb[0].mxu0
      %v2627 = vpop.f32.mrb[0].mxu0
      %v2628 = vadd.f32 0.0, %v2627
      %v2629 = vpop.f32.mrb[0].mxu0
      %2630 = vmatprep.mubr.bf16.mxu0 0
      %2631 = vmatmul.mubr.bf16.gmra.mrb[0].mxu0 %v2550
      %v2632 = vpop.f32.mrb[0].mxu0
      %v2633 = vadd.f32 0.0, %v2632
      %v2634 = vpop.f32.mrb[0].mxu0
      %v2635 = vpop.f32.mrb[0].mxu0
      %v2636 = vadd.f32 0.0, %v2635
      %v2637 = vpop.f32.mrb[0].mxu0
      %2638 = vmatprep.mubr.bf16.mxu0 0
      %2639 = vmatmul.mubr.bf16.gmra.mrb[0].mxu0 %v2553
      %v2640 = vpop.f32.mrb[0].mxu0
      %v2641 = vadd.f32 0.0, %v2640
      %v2642 = vpop.f32.mrb[0].mxu0
      %v2643 = vpop.f32.mrb[0].mxu0
      %v2644 = vadd.f32 0.0, %v2643
      %v2645 = vpop.f32.mrb[0].mxu0
      %2646 = vmatprep.mubr.bf16.mxu0 0
      %2647 = vmatmul.mubr.bf16.gmra.mrb[0].mxu0 %v2556
      %v2648 = vpop.f32.mrb[0].mxu0
      %v2649 = vadd.f32 0.0, %v2648
      %v2650 = vpop.f32.mrb[0].mxu0
      %v2651 = vpop.f32.mrb[0].mxu0
      %v2652 = vadd.f32 0.0, %v2651
      %v2653 = vpop.f32.mrb[0].mxu0
      %2654 = vdwg.mxu0
      %v2663 = vunpack.c.l.b16 %v1585
      %v2664 = vunpack.c.l.b16 %v1586
      %v2665 = vunpack.c.l.b16 %v1587
      %v2666 = vunpack.c.l.b16 %v1588
      %v2667 = vunpack.c.l.b16 %v1589
      %v2668 = vunpack.c.l.b16 %v1590
      %v2669 = vunpack.c.l.b16 %v1591
      %v2670 = vunpack.c.l.b16 %v1592
      %v2671 = vpack.c.b16 %v2664, %v2663
      %v2672 = vpack.c.b16 %v2666, %v2665
      %v2673 = vpack.c.b16 %v2668, %v2667
      %v2674 = vpack.c.b16 %v2670, %v2669
      %v2680 = vsel %vm1625, %v2020, 0
      %v2683 = vsel %vm1625, %v2021, 0
      %v2686 = vsel %vm1625, %v2022, 0
      %v2689 = vsel %vm1625, %v2023, 0
      %v2692 = vsel %vm1625, %v2024, 0
      %v2695 = vsel %vm1625, %v2025, 0
      %v2698 = vsel %vm1625, %v2026, 0
      %v2701 = vsel %vm1625, %v2027, 0
      %2703 = vmatprep.subr.bf16.mxu0 0
      %2704 = vmatpush1.bf16.msra.mxu0 %v2671
      %2705 = vmatprep.subr.bf16.mxu0 0
      %2706 = vmatpush1.bf16.msra.mxu0 %v2672
      %2707 = vmatprep.subr.bf16.mxu0 0
      %2708 = vmatpush1.bf16.msra.mxu0 %v2673
      %2709 = vmatprep.subr.bf16.mxu0 0
      %2710 = vmatpush1.bf16.msra.mxu0 %v2674
      %2711 = vmatprep.subr.bf16.mxu0 0
      %2712 = vmatpush1.bf16.msra.mxu0 0
      %2713 = vmatprep.subr.bf16.mxu0 0
      %2714 = vmatpush1.bf16.msra.mxu0 0
      %2715 = vmatprep.subr.bf16.mxu0 0
      %2716 = vmatpush1.bf16.msra.mxu0 0
      %2717 = vmatprep.subr.bf16.mxu0 0
      %2718 = vmatpush1.bf16.msra.mxu0 0
      %2719 = vmatprep.subr.bf16.mxu0 0
      %2720 = vmatpush1.bf16.msra.mxu0 0
      %2721 = vmatprep.subr.bf16.mxu0 0
      %2722 = vmatpush1.bf16.msra.mxu0 0
      %2723 = vmatprep.subr.bf16.mxu0 0
      %2724 = vmatpush1.bf16.msra.mxu0 0
      %2725 = vmatprep.subr.bf16.mxu0 0
      %2726 = vmatpush1.bf16.msra.mxu0 0
      %2727 = vmatprep.subr.bf16.mxu0 0
      %2728 = vmatpush1.bf16.msra.mxu0 0
      %2729 = vmatprep.subr.bf16.mxu0 0
      %2730 = vmatpush1.bf16.msra.mxu0 0
      %2731 = vmatprep.subr.bf16.mxu0 0
      %2732 = vmatpush1.bf16.msra.mxu0 0
      %2733 = vmatprep.subr.bf16.mxu0 0
      %2734 = vmatpush1.bf16.msra.mxu0 0
      %2735 = vmatprep.mubr.bf16.mxu0 0
      %2736 = vmatmul.mubr.bf16.gmra.mrb[0].mxu0 %v2680
      %v2737 = vpop.f32.mrb[0].mxu0
      %v2738 = vadd.f32 %v2593, %v2737
      %v2739 = vpop.f32.mrb[0].mxu0
      %v2740 = vpop.f32.mrb[0].mxu0
      %v2741 = vadd.f32 %v2596, %v2740
      %v2742 = vpop.f32.mrb[0].mxu0
      %2743 = vmatprep.mubr.bf16.mxu0 0
      %2744 = vmatmul.mubr.bf16.gmra.mrb[0].mxu0 %v2683
      %v2745 = vpop.f32.mrb[0].mxu0
      %v2746 = vadd.f32 %v2601, %v2745
      %v2747 = vpop.f32.mrb[0].mxu0
      %v2748 = vpop.f32.mrb[0].mxu0
      %v2749 = vadd.f32 %v2604, %v2748
      %v2750 = vpop.f32.mrb[0].mxu0
      %2751 = vmatprep.mubr.bf16.mxu0 0
      %2752 = vmatmul.mubr.bf16.gmra.mrb[0].mxu0 %v2686
      %v2753 = vpop.f32.mrb[0].mxu0
      %v2754 = vadd.f32 %v2609, %v2753
      %v2755 = vpop.f32.mrb[0].mxu0
      %v2756 = vpop.f32.mrb[0].mxu0
      %v2757 = vadd.f32 %v2612, %v2756
      %v2758 = vpop.f32.mrb[0].mxu0
      %2759 = vmatprep.mubr.bf16.mxu0 0
      %2760 = vmatmul.mubr.bf16.gmra.mrb[0].mxu0 %v2689
      %v2761 = vpop.f32.mrb[0].mxu0
      %v2762 = vadd.f32 %v2617, %v2761
      %v2763 = vpop.f32.mrb[0].mxu0
      %v2764 = vpop.f32.mrb[0].mxu0
      %v2765 = vadd.f32 %v2620, %v2764
      %v2766 = vpop.f32.mrb[0].mxu0
      %2767 = vmatprep.mubr.bf16.mxu0 0
      %2768 = vmatmul.mubr.bf16.gmra.mrb[0].mxu0 %v2692
      %v2769 = vpop.f32.mrb[0].mxu0
      %v2770 = vadd.f32 %v2625, %v2769
      %v2771 = vpop.f32.mrb[0].mxu0
      %v2772 = vpop.f32.mrb[0].mxu0
      %v2773 = vadd.f32 %v2628, %v2772
      %v2774 = vpop.f32.mrb[0].mxu0
      %2775 = vmatprep.mubr.bf16.mxu0 0
      %2776 = vmatmul.mubr.bf16.gmra.mrb[0].mxu0 %v2695
      %v2777 = vpop.f32.mrb[0].mxu0
      %v2778 = vadd.f32 %v2633, %v2777
      %v2779 = vpop.f32.mrb[0].mxu0
      %v2780 = vpop.f32.mrb[0].mxu0
      %v2781 = vadd.f32 %v2636, %v2780
      %v2782 = vpop.f32.mrb[0].mxu0
      %2783 = vmatprep.mubr.bf16.mxu0 0
      %2784 = vmatmul.mubr.bf16.gmra.mrb[0].mxu0 %v2698
      %v2785 = vpop.f32.mrb[0].mxu0
      %v2786 = vadd.f32 %v2641, %v2785
      %v2787 = vpop.f32.mrb[0].mxu0
      %v2788 = vpop.f32.mrb[0].mxu0
      %v2789 = vadd.f32 %v2644, %v2788
      %v2790 = vpop.f32.mrb[0].mxu0
      %2791 = vmatprep.mubr.bf16.mxu0 0
      %2792 = vmatmul.mubr.bf16.gmra.mrb[0].mxu0 %v2701
      %v2793 = vpop.f32.mrb[0].mxu0
      %v2794 = vadd.f32 %v2649, %v2793
      %v2795 = vpop.f32.mrb[0].mxu0
      %v2796 = vpop.f32.mrb[0].mxu0
      %v2797 = vadd.f32 %v2652, %v2796
      %v2798 = vpop.f32.mrb[0].mxu0
      %2799 = vdwg.mxu0
      %v2800 = vadd.f32 %v887, %v2738
      %v2801 = vadd.f32 %v888, %v2741
      %v2802 = vadd.f32 %v889, %v2746
      %v2803 = vadd.f32 %v890, %v2749
      %v2804 = vadd.f32 %v891, %v2754
      %v2805 = vadd.f32 %v892, %v2757
      %v2806 = vadd.f32 %v893, %v2762
      %v2807 = vadd.f32 %v894, %v2765
      %v2808 = vadd.f32 %v895, %v2770
      %v2809 = vadd.f32 %v896, %v2773
      %v2810 = vadd.f32 %v897, %v2778
      %v2811 = vadd.f32 %v898, %v2781
      %v2812 = vadd.f32 %v899, %v2786
      %v2813 = vadd.f32 %v900, %v2789
      %v2814 = vadd.f32 %v901, %v2794
      %v2815 = vadd.f32 %v902, %v2797
      %v2816 = vld [vmem:[%s815] sm:$0x1]
      %v2818 = vlaneseq
      %v2819 = vshrl.u32 %v2818, 7
      %v2820 = vsub.s32 0, %v2819
      %v2821 = vrot.slane %v2816, %v2820
      %v2823 = vadd.f32 %v2800, %v2821
      %v2824 = vadd.f32 %v2801, %v2821
      %v2825 = vadd.f32 %v2802, %v2821
      %v2826 = vadd.f32 %v2803, %v2821
      %v2827 = vadd.f32 %v2804, %v2821
      %v2828 = vadd.f32 %v2805, %v2821
      %v2829 = vadd.f32 %v2806, %v2821
      %v2830 = vadd.f32 %v2807, %v2821
      %v2831 = vadd.f32 %v2808, %v2821
      %v2832 = vadd.f32 %v2809, %v2821
      %v2833 = vadd.f32 %v2810, %v2821
      %v2834 = vadd.f32 %v2811, %v2821
      %v2835 = vadd.f32 %v2812, %v2821
      %v2836 = vadd.f32 %v2813, %v2821
      %v2837 = vadd.f32 %v2814, %v2821
      %v2838 = vadd.f32 %v2815, %v2821
      %v2839 = vld [vmem:[%s818] sm:$0x1]
      %v2840 = vld [vmem:[%s821] sm:$0x1]
      %2841 = vadd.xlane.f32.xlu0 %v2823
      %v2842 = vpop.xlane.xlu0 %2841
      %2843 = vadd.xlane.f32.xlu0 %v2824
      %v2844 = vpop.xlane.xlu0 %2843
      %2845 = vadd.xlane.f32.xlu0 %v2825
      %v2846 = vpop.xlane.xlu0 %2845
      %2847 = vadd.xlane.f32.xlu0 %v2826
      %v2848 = vpop.xlane.xlu0 %2847
      %2849 = vadd.xlane.f32.xlu0 %v2827
      %v2850 = vpop.xlane.xlu0 %2849
      %2851 = vadd.xlane.f32.xlu0 %v2828
      %v2852 = vpop.xlane.xlu0 %2851
      %2853 = vadd.xlane.f32.xlu0 %v2829
      %v2854 = vpop.xlane.xlu0 %2853
      %2855 = vadd.xlane.f32.xlu0 %v2830
      %v2856 = vpop.xlane.xlu0 %2855
      %2857 = vadd.xlane.f32.xlu0 %v2831
      %v2858 = vpop.xlane.xlu0 %2857
      %2859 = vadd.xlane.f32.xlu0 %v2832
      %v2860 = vpop.xlane.xlu0 %2859
      %2861 = vadd.xlane.f32.xlu0 %v2833
      %v2862 = vpop.xlane.xlu0 %2861
      %2863 = vadd.xlane.f32.xlu0 %v2834
      %v2864 = vpop.xlane.xlu0 %2863
      %2865 = vadd.xlane.f32.xlu0 %v2835
      %v2866 = vpop.xlane.xlu0 %2865
      %2867 = vadd.xlane.f32.xlu0 %v2836
      %v2868 = vpop.xlane.xlu0 %2867
      %2869 = vadd.xlane.f32.xlu0 %v2837
      %v2870 = vpop.xlane.xlu0 %2869
      %2871 = vadd.xlane.f32.xlu0 %v2838
      %v2872 = vpop.xlane.xlu0 %2871
      %v2873 = vmul.f32 %v2842, %v953
      %v2874 = vmul.f32 %v2844, %v953
      %v2875 = vmul.f32 %v2846, %v953
      %v2876 = vmul.f32 %v2848, %v953
      %v2877 = vmul.f32 %v2850, %v953
      %v2878 = vmul.f32 %v2852, %v953
      %v2879 = vmul.f32 %v2854, %v953
      %v2880 = vmul.f32 %v2856, %v953
      %v2881 = vmul.f32 %v2858, %v953
      %v2882 = vmul.f32 %v2860, %v953
      %v2883 = vmul.f32 %v2862, %v953
      %v2884 = vmul.f32 %v2864, %v953
      %v2885 = vmul.f32 %v2866, %v953
      %v2886 = vmul.f32 %v2868, %v953
      %v2887 = vmul.f32 %v2870, %v953
      %v2888 = vmul.f32 %v2872, %v953
      %v2889 = vmul.f32 %v2823, %v2823
      %v2890 = vmul.f32 %v2824, %v2824
      %v2891 = vmul.f32 %v2825, %v2825
      %v2892 = vmul.f32 %v2826, %v2826
      %v2893 = vmul.f32 %v2827, %v2827
      %v2894 = vmul.f32 %v2828, %v2828
      %v2895 = vmul.f32 %v2829, %v2829
      %v2896 = vmul.f32 %v2830, %v2830
      %v2897 = vmul.f32 %v2831, %v2831
      %v2898 = vmul.f32 %v2832, %v2832
      %v2899 = vmul.f32 %v2833, %v2833
      %v2900 = vmul.f32 %v2834, %v2834
      %v2901 = vmul.f32 %v2835, %v2835
      %v2902 = vmul.f32 %v2836, %v2836
      %v2903 = vmul.f32 %v2837, %v2837
      %v2904 = vmul.f32 %v2838, %v2838
      %2905 = vadd.xlane.f32.xlu0 %v2889
      %v2906 = vpop.xlane.xlu0 %2905
      %2907 = vadd.xlane.f32.xlu0 %v2890
      %v2908 = vpop.xlane.xlu0 %2907
      %2909 = vadd.xlane.f32.xlu0 %v2891
      %v2910 = vpop.xlane.xlu0 %2909
      %2911 = vadd.xlane.f32.xlu0 %v2892
      %v2912 = vpop.xlane.xlu0 %2911
      %2913 = vadd.xlane.f32.xlu0 %v2893
      %v2914 = vpop.xlane.xlu0 %2913
      %2915 = vadd.xlane.f32.xlu0 %v2894
      %v2916 = vpop.xlane.xlu0 %2915
      %2917 = vadd.xlane.f32.xlu0 %v2895
      %v2918 = vpop.xlane.xlu0 %2917
      %2919 = vadd.xlane.f32.xlu0 %v2896
      %v2920 = vpop.xlane.xlu0 %2919
      %2921 = vadd.xlane.f32.xlu0 %v2897
      %v2922 = vpop.xlane.xlu0 %2921
      %2923 = vadd.xlane.f32.xlu0 %v2898
      %v2924 = vpop.xlane.xlu0 %2923
      %2925 = vadd.xlane.f32.xlu0 %v2899
      %v2926 = vpop.xlane.xlu0 %2925
      %2927 = vadd.xlane.f32.xlu0 %v2900
      %v2928 = vpop.xlane.xlu0 %2927
      %2929 = vadd.xlane.f32.xlu0 %v2901
      %v2930 = vpop.xlane.xlu0 %2929
      %2931 = vadd.xlane.f32.xlu0 %v2902
      %v2932 = vpop.xlane.xlu0 %2931
      %2933 = vadd.xlane.f32.xlu0 %v2903
      %v2934 = vpop.xlane.xlu0 %2933
      %2935 = vadd.xlane.f32.xlu0 %v2904
      %v2936 = vpop.xlane.xlu0 %2935
      %v2937 = vmul.f32 %v2906, %v953
      %v2938 = vmul.f32 %v2908, %v953
      %v2939 = vmul.f32 %v2910, %v953
      %v2940 = vmul.f32 %v2912, %v953
      %v2941 = vmul.f32 %v2914, %v953
      %v2942 = vmul.f32 %v2916, %v953
      %v2943 = vmul.f32 %v2918, %v953
      %v2944 = vmul.f32 %v2920, %v953
      %v2945 = vmul.f32 %v2922, %v953
      %v2946 = vmul.f32 %v2924, %v953
      %v2947 = vmul.f32 %v2926, %v953
      %v2948 = vmul.f32 %v2928, %v953
      %v2949 = vmul.f32 %v2930, %v953
      %v2950 = vmul.f32 %v2932, %v953
      %v2951 = vmul.f32 %v2934, %v953
      %v2952 = vmul.f32 %v2936, %v953
      %v2953 = vmul.f32 %v2873, %v2873
      %v2954 = vmul.f32 %v2874, %v2874
      %v2955 = vmul.f32 %v2875, %v2875
      %v2956 = vmul.f32 %v2876, %v2876
      %v2957 = vmul.f32 %v2877, %v2877
      %v2958 = vmul.f32 %v2878, %v2878
      %v2959 = vmul.f32 %v2879, %v2879
      %v2960 = vmul.f32 %v2880, %v2880
      %v2961 = vmul.f32 %v2881, %v2881
      %v2962 = vmul.f32 %v2882, %v2882
      %v2963 = vmul.f32 %v2883, %v2883
      %v2964 = vmul.f32 %v2884, %v2884
      %v2965 = vmul.f32 %v2885, %v2885
      %v2966 = vmul.f32 %v2886, %v2886
      %v2967 = vmul.f32 %v2887, %v2887
      %v2968 = vmul.f32 %v2888, %v2888
      %v2969 = vsub.f32 %v2937, %v2953
      %v2970 = vsub.f32 %v2938, %v2954
      %v2971 = vsub.f32 %v2939, %v2955
      %v2972 = vsub.f32 %v2940, %v2956
      %v2973 = vsub.f32 %v2941, %v2957
      %v2974 = vsub.f32 %v2942, %v2958
      %v2975 = vsub.f32 %v2943, %v2959
      %v2976 = vsub.f32 %v2944, %v2960
      %v2977 = vsub.f32 %v2945, %v2961
      %v2978 = vsub.f32 %v2946, %v2962
      %v2979 = vsub.f32 %v2947, %v2963
      %v2980 = vsub.f32 %v2948, %v2964
      %v2981 = vsub.f32 %v2949, %v2965
      %v2982 = vsub.f32 %v2950, %v2966
      %v2983 = vsub.f32 %v2951, %v2967
      %v2984 = vsub.f32 %v2952, %v2968
      %v2985 = vsub.f32 %v2823, %v2873
      %v2986 = vsub.f32 %v2824, %v2874
      %v2987 = vsub.f32 %v2825, %v2875
      %v2988 = vsub.f32 %v2826, %v2876
      %v2989 = vsub.f32 %v2827, %v2877
      %v2990 = vsub.f32 %v2828, %v2878
      %v2991 = vsub.f32 %v2829, %v2879
      %v2992 = vsub.f32 %v2830, %v2880
      %v2993 = vsub.f32 %v2831, %v2881
      %v2994 = vsub.f32 %v2832, %v2882
      %v2995 = vsub.f32 %v2833, %v2883
      %v2996 = vsub.f32 %v2834, %v2884
      %v2997 = vsub.f32 %v2835, %v2885
      %v2998 = vsub.f32 %v2836, %v2886
      %v2999 = vsub.f32 %v2837, %v2887
      %v3000 = vsub.f32 %v2838, %v2888
      %v3001 = vadd.f32 %v2969, 1e-05
      %v3002 = vadd.f32 %v2970, 1e-05
      %v3003 = vadd.f32 %v2971, 1e-05
      %v3004 = vadd.f32 %v2972, 1e-05
      %v3005 = vadd.f32 %v2973, 1e-05
      %v3006 = vadd.f32 %v2974, 1e-05
      %v3007 = vadd.f32 %v2975, 1e-05
      %v3008 = vadd.f32 %v2976, 1e-05
      %v3009 = vadd.f32 %v2977, 1e-05
      %v3010 = vadd.f32 %v2978, 1e-05
      %v3011 = vadd.f32 %v2979, 1e-05
      %v3012 = vadd.f32 %v2980, 1e-05
      %v3013 = vadd.f32 %v2981, 1e-05
      %v3014 = vadd.f32 %v2982, 1e-05
      %v3015 = vadd.f32 %v2983, 1e-05
      %v3016 = vadd.f32 %v2984, 1e-05
      %v3017 = vrsqrt.pop %v3001
      %v3018 = vrsqrt.pop %v3002
      %v3019 = vrsqrt.pop %v3003
      %v3020 = vrsqrt.pop %v3004
      %v3021 = vrsqrt.pop %v3005
      %v3022 = vrsqrt.pop %v3006
      %v3023 = vrsqrt.pop %v3007
      %v3024 = vrsqrt.pop %v3008
      %v3025 = vrsqrt.pop %v3009
      %v3026 = vrsqrt.pop %v3010
      %v3027 = vrsqrt.pop %v3011
      %v3028 = vrsqrt.pop %v3012
      %v3029 = vrsqrt.pop %v3013
      %v3030 = vrsqrt.pop %v3014
      %v3031 = vrsqrt.pop %v3015
      %v3032 = vrsqrt.pop %v3016
      %v3033 = vmul.f32 %v2985, %v3017
      %v3034 = vmul.f32 %v2986, %v3018
      %v3035 = vmul.f32 %v2987, %v3019
      %v3036 = vmul.f32 %v2988, %v3020
      %v3037 = vmul.f32 %v2989, %v3021
      %v3038 = vmul.f32 %v2990, %v3022
      %v3039 = vmul.f32 %v2991, %v3023
      %v3040 = vmul.f32 %v2992, %v3024
      %v3041 = vmul.f32 %v2993, %v3025
      %v3042 = vmul.f32 %v2994, %v3026
      %v3043 = vmul.f32 %v2995, %v3027
      %v3044 = vmul.f32 %v2996, %v3028
      %v3045 = vmul.f32 %v2997, %v3029
      %v3046 = vmul.f32 %v2998, %v3030
      %v3047 = vmul.f32 %v2999, %v3031
      %v3048 = vmul.f32 %v3000, %v3032
      %v3050 = vlaneseq
      %v3051 = vshrl.u32 %v3050, 7
      %v3052 = vsub.s32 0, %v3051
      %v3053 = vrot.slane %v2839, %v3052
      %v3055 = vmul.f32 %v3033, %v3053
      %v3056 = vmul.f32 %v3034, %v3053
      %v3057 = vmul.f32 %v3035, %v3053
      %v3058 = vmul.f32 %v3036, %v3053
      %v3059 = vmul.f32 %v3037, %v3053
      %v3060 = vmul.f32 %v3038, %v3053
      %v3061 = vmul.f32 %v3039, %v3053
      %v3062 = vmul.f32 %v3040, %v3053
      %v3063 = vmul.f32 %v3041, %v3053
      %v3064 = vmul.f32 %v3042, %v3053
      %v3065 = vmul.f32 %v3043, %v3053
      %v3066 = vmul.f32 %v3044, %v3053
      %v3067 = vmul.f32 %v3045, %v3053
      %v3068 = vmul.f32 %v3046, %v3053
      %v3069 = vmul.f32 %v3047, %v3053
      %v3070 = vmul.f32 %v3048, %v3053
      %v3072 = vlaneseq
      %v3073 = vshrl.u32 %v3072, 7
      %v3074 = vsub.s32 0, %v3073
      %v3075 = vrot.slane %v2840, %v3074
      %v3077 = vadd.f32 %v3055, %v3075
      %v3078 = vadd.f32 %v3056, %v3075
      %v3079 = vadd.f32 %v3057, %v3075
      %v3080 = vadd.f32 %v3058, %v3075
      %v3081 = vadd.f32 %v3059, %v3075
      %v3082 = vadd.f32 %v3060, %v3075
      %v3083 = vadd.f32 %v3061, %v3075
      %v3084 = vadd.f32 %v3062, %v3075
      %v3085 = vadd.f32 %v3063, %v3075
      %v3086 = vadd.f32 %v3064, %v3075
      %v3087 = vadd.f32 %v3065, %v3075
      %v3088 = vadd.f32 %v3066, %v3075
      %v3089 = vadd.f32 %v3067, %v3075
      %v3090 = vadd.f32 %v3068, %v3075
      %v3091 = vadd.f32 %v3069, %v3075
      %v3092 = vadd.f32 %v3070, %v3075
      %v3093 = vpack.c.bf16 %v3078, %v3077
      %v3094 = vpack.c.bf16 %v3080, %v3079
      %v3095 = vpack.c.bf16 %v3082, %v3081
      %v3096 = vpack.c.bf16 %v3084, %v3083
      %v3097 = vpack.c.bf16 %v3086, %v3085
      %v3098 = vpack.c.bf16 %v3088, %v3087
      %v3099 = vpack.c.bf16 %v3090, %v3089
      %v3100 = vpack.c.bf16 %v3092, %v3091
      %v3101 = vld [vmem:[%s826] sm:$0xff]
      %v3102 = vld [vmem:[%s826 + $0x8] sm:$0xff]
      %v3103 = vld [vmem:[%s826 + $0x10] sm:$0xff]
      %v3104 = vld [vmem:[%s826 + $0x18] sm:$0xff]
      %v3105 = vld [vmem:[%s826 + $0x20] sm:$0xff]
      %v3106 = vld [vmem:[%s826 + $0x28] sm:$0xff]
      %v3107 = vld [vmem:[%s826 + $0x30] sm:$0xff]
      %v3108 = vld [vmem:[%s826 + $0x38] sm:$0xff]
      %v3109 = vld [vmem:[%s826 + $0x40] sm:$0xff]
      %v3110 = vld [vmem:[%s826 + $0x48] sm:$0xff]
      %v3111 = vld [vmem:[%s826 + $0x50] sm:$0xff]
      %v3112 = vld [vmem:[%s826 + $0x58] sm:$0xff]
      %v3113 = vld [vmem:[%s826 + $0x60] sm:$0xff]
      %v3114 = vld [vmem:[%s826 + $0x68] sm:$0xff]
      %v3115 = vld [vmem:[%s826 + $0x70] sm:$0xff]
      %v3116 = vld [vmem:[%s826 + $0x78] sm:$0xff]
      %v3117 = vld [vmem:[%s826 + $0x80] sm:$0xff]
      %v3118 = vld [vmem:[%s826 + $0x88] sm:$0xff]
      %v3119 = vld [vmem:[%s826 + $0x90] sm:$0xff]
      %v3120 = vld [vmem:[%s826 + $0x98] sm:$0xff]
      %v3121 = vld [vmem:[%s826 + $0xa0] sm:$0xff]
      %v3122 = vld [vmem:[%s826 + $0xa8] sm:$0xff]
      %v3123 = vld [vmem:[%s826 + $0xb0] sm:$0xff]
      %v3124 = vld [vmem:[%s826 + $0xb8] sm:$0xff]
      %v3125 = vld [vmem:[%s826 + $0xc0] sm:$0xff]
      %v3126 = vld [vmem:[%s826 + $0xc8] sm:$0xff]
      %v3127 = vld [vmem:[%s826 + $0xd0] sm:$0xff]
      %v3128 = vld [vmem:[%s826 + $0xd8] sm:$0xff]
      %v3129 = vld [vmem:[%s826 + $0xe0] sm:$0xff]
      %v3130 = vld [vmem:[%s826 + $0xe8] sm:$0xff]
      %v3131 = vld [vmem:[%s826 + $0xf0] sm:$0xff]
      %v3132 = vld [vmem:[%s826 + $0xf8] sm:$0xff]
      %v3133 = vld [vmem:[%s830] sm:$0xf]
      %v3135 = vlaneseq
      %v3136 = vshrl.u32 %v3135, 7
      %v3137 = vsub.s32 0, %v3136
      %v3138 = vrot.slane %v3133, %v3137
      %v3139 = vlaneseq
      %v3140 = vshrl.u32 %v3139, 7
      %v3141 = vsub.s32 1, %v3140
      %v3142 = vrot.slane %v3133, %v3141
      %v3143 = vlaneseq
      %v3144 = vshrl.u32 %v3143, 7
      %v3145 = vsub.s32 2, %v3144
      %v3146 = vrot.slane %v3133, %v3145
      %v3147 = vlaneseq
      %v3148 = vshrl.u32 %v3147, 7
      %v3149 = vsub.s32 3, %v3148
      %v3150 = vrot.slane %v3133, %v3149
      %v3187 = vunpack.c.l.b16 %v3101
      %v3188 = vunpack.c.h.b16 %v3101
      %v3189 = vunpack.c.l.b16 %v3102
      %v3190 = vunpack.c.h.b16 %v3102
      %v3191 = vunpack.c.l.b16 %v3103
      %v3192 = vunpack.c.h.b16 %v3103
      %v3193 = vunpack.c.l.b16 %v3104
      %v3194 = vunpack.c.h.b16 %v3104
      %v3195 = vunpack.c.l.b16 %v3105
      %v3196 = vunpack.c.h.b16 %v3105
      %v3197 = vunpack.c.l.b16 %v3106
      %v3198 = vunpack.c.h.b16 %v3106
      %v3199 = vunpack.c.l.b16 %v3107
      %v3200 = vunpack.c.h.b16 %v3107
      %v3201 = vunpack.c.l.b16 %v3108
      %v3202 = vunpack.c.h.b16 %v3108
      %v3203 = vunpack.c.l.b16 %v3109
      %v3204 = vunpack.c.h.b16 %v3109
      %v3205 = vunpack.c.l.b16 %v3110
      %v3206 = vunpack.c.h.b16 %v3110
      %v3207 = vunpack.c.l.b16 %v3111
      %v3208 = vunpack.c.h.b16 %v3111
      %v3209 = vunpack.c.l.b16 %v3112
      %v3210 = vunpack.c.h.b16 %v3112
      %v3211 = vunpack.c.l.b16 %v3113
      %v3212 = vunpack.c.h.b16 %v3113
      %v3213 = vunpack.c.l.b16 %v3114
      %v3214 = vunpack.c.h.b16 %v3114
      %v3215 = vunpack.c.l.b16 %v3115
      %v3216 = vunpack.c.h.b16 %v3115
      %v3217 = vunpack.c.l.b16 %v3116
      %v3218 = vunpack.c.h.b16 %v3116
      %v3219 = vunpack.c.l.b16 %v3117
      %v3220 = vunpack.c.h.b16 %v3117
      %v3221 = vunpack.c.l.b16 %v3118
      %v3222 = vunpack.c.h.b16 %v3118
      %v3223 = vunpack.c.l.b16 %v3119
      %v3224 = vunpack.c.h.b16 %v3119
      %v3225 = vunpack.c.l.b16 %v3120
      %v3226 = vunpack.c.h.b16 %v3120
      %v3227 = vunpack.c.l.b16 %v3121
      %v3228 = vunpack.c.h.b16 %v3121
      %v3229 = vunpack.c.l.b16 %v3122
      %v3230 = vunpack.c.h.b16 %v3122
      %v3231 = vunpack.c.l.b16 %v3123
      %v3232 = vunpack.c.h.b16 %v3123
      %v3233 = vunpack.c.l.b16 %v3124
      %v3234 = vunpack.c.h.b16 %v3124
      %v3235 = vunpack.c.l.b16 %v3125
      %v3236 = vunpack.c.h.b16 %v3125
      %v3237 = vunpack.c.l.b16 %v3126
      %v3238 = vunpack.c.h.b16 %v3126
      %v3239 = vunpack.c.l.b16 %v3127
      %v3240 = vunpack.c.h.b16 %v3127
      %v3241 = vunpack.c.l.b16 %v3128
      %v3242 = vunpack.c.h.b16 %v3128
      %v3243 = vunpack.c.l.b16 %v3129
      %v3244 = vunpack.c.h.b16 %v3129
      %v3245 = vunpack.c.l.b16 %v3130
      %v3246 = vunpack.c.h.b16 %v3130
      %v3247 = vunpack.c.l.b16 %v3131
      %v3248 = vunpack.c.h.b16 %v3131
      %v3249 = vunpack.c.l.b16 %v3132
      %v3250 = vunpack.c.h.b16 %v3132
      %v3251 = vpack.c.b16 %v3191, %v3187
      %v3252 = vpack.c.b16 %v3192, %v3188
      %v3253 = vpack.c.b16 %v3193, %v3189
      %v3254 = vpack.c.b16 %v3194, %v3190
      %v3255 = vpack.c.b16 %v3199, %v3195
      %v3256 = vpack.c.b16 %v3200, %v3196
      %v3257 = vpack.c.b16 %v3201, %v3197
      %v3258 = vpack.c.b16 %v3202, %v3198
      %v3259 = vpack.c.b16 %v3207, %v3203
      %v3260 = vpack.c.b16 %v3208, %v3204
      %v3261 = vpack.c.b16 %v3209, %v3205
      %v3262 = vpack.c.b16 %v3210, %v3206
      %v3263 = vpack.c.b16 %v3215, %v3211
      %v3264 = vpack.c.b16 %v3216, %v3212
      %v3265 = vpack.c.b16 %v3217, %v3213
      %v3266 = vpack.c.b16 %v3218, %v3214
      %v3267 = vpack.c.b16 %v3223, %v3219
      %v3268 = vpack.c.b16 %v3224, %v3220
      %v3269 = vpack.c.b16 %v3225, %v3221
      %v3270 = vpack.c.b16 %v3226, %v3222
      %v3271 = vpack.c.b16 %v3231, %v3227
      %v3272 = vpack.c.b16 %v3232, %v3228
      %v3273 = vpack.c.b16 %v3233, %v3229
      %v3274 = vpack.c.b16 %v3234, %v3230
      %v3275 = vpack.c.b16 %v3239, %v3235
      %v3276 = vpack.c.b16 %v3240, %v3236
      %v3277 = vpack.c.b16 %v3241, %v3237
      %v3278 = vpack.c.b16 %v3242, %v3238
      %v3279 = vpack.c.b16 %v3247, %v3243
      %v3280 = vpack.c.b16 %v3248, %v3244
      %v3281 = vpack.c.b16 %v3249, %v3245
      %v3282 = vpack.c.b16 %v3250, %v3246
      %3315 = vmatprep.subr.bf16.mxu0 %v3252
      %3316 = vmatpush1.bf16.msra.mxu0 %v3251
      %3317 = vmatprep.subr.bf16.mxu0 %v3256
      %3318 = vmatpush1.bf16.msra.mxu0 %v3255
      %3319 = vmatprep.subr.bf16.mxu0 %v3260
      %3320 = vmatpush1.bf16.msra.mxu0 %v3259
      %3321 = vmatprep.subr.bf16.mxu0 %v3264
      %3322 = vmatpush1.bf16.msra.mxu0 %v3263
      %3323 = vmatprep.subr.bf16.mxu0 %v3268
      %3324 = vmatpush1.bf16.msra.mxu0 %v3267
      %3325 = vmatprep.subr.bf16.mxu0 %v3272
      %3326 = vmatpush1.bf16.msra.mxu0 %v3271
      %3327 = vmatprep.subr.bf16.mxu0 %v3276
      %3328 = vmatpush1.bf16.msra.mxu0 %v3275
      %3329 = vmatprep.subr.bf16.mxu0 %v3280
      %3330 = vmatpush1.bf16.msra.mxu0 %v3279
      %3331 = vmatprep.subr.bf16.mxu0 0
      %3332 = vmatpush1.bf16.msra.mxu0 0
      %3333 = vmatprep.subr.bf16.mxu0 0
      %3334 = vmatpush1.bf16.msra.mxu0 0
      %3335 = vmatprep.subr.bf16.mxu0 0
      %3336 = vmatpush1.bf16.msra.mxu0 0
      %3337 = vmatprep.subr.bf16.mxu0 0
      %3338 = vmatpush1.bf16.msra.mxu0 0
      %3339 = vmatprep.subr.bf16.mxu0 0
      %3340 = vmatpush1.bf16.msra.mxu0 0
      %3341 = vmatprep.subr.bf16.mxu0 0
      %3342 = vmatpush1.bf16.msra.mxu0 0
      %3343 = vmatprep.subr.bf16.mxu0 0
      %3344 = vmatpush1.bf16.msra.mxu0 0
      %3345 = vmatprep.subr.bf16.mxu0 0
      %3346 = vmatpush1.bf16.msra.mxu0 0
      %3347 = vmatprep.mubr.bf16.mxu0 0
      %3348 = vmatmul.mubr.bf16.gmra.mrb[0].mxu0 %v3093
      %v3349 = vpop.f32.mrb[0].mxu0
      %v3350 = vadd.f32 %v3138, %v3349
      %v3351 = vpop.f32.mrb[0].mxu0
      %v3352 = vadd.f32 %v3142, %v3351
      %v3353 = vpop.f32.mrb[0].mxu0
      %v3354 = vadd.f32 %v3138, %v3353
      %v3355 = vpop.f32.mrb[0].mxu0
      %v3356 = vadd.f32 %v3142, %v3355
      %3357 = vmatprep.mubr.bf16.mxu0 0
      %3358 = vmatmul.mubr.bf16.gmra.mrb[0].mxu0 %v3094
      %v3359 = vpop.f32.mrb[0].mxu0
      %v3360 = vadd.f32 %v3138, %v3359
      %v3361 = vpop.f32.mrb[0].mxu0
      %v3362 = vadd.f32 %v3142, %v3361
      %v3363 = vpop.f32.mrb[0].mxu0
      %v3364 = vadd.f32 %v3138, %v3363
      %v3365 = vpop.f32.mrb[0].mxu0
      %v3366 = vadd.f32 %v3142, %v3365
      %3367 = vmatprep.mubr.bf16.mxu0 0
      %3368 = vmatmul.mubr.bf16.gmra.mrb[0].mxu0 %v3095
      %v3369 = vpop.f32.mrb[0].mxu0
      %v3370 = vadd.f32 %v3138, %v3369
      %v3371 = vpop.f32.mrb[0].mxu0
      %v3372 = vadd.f32 %v3142, %v3371
      %v3373 = vpop.f32.mrb[0].mxu0
      %v3374 = vadd.f32 %v3138, %v3373
      %v3375 = vpop.f32.mrb[0].mxu0
      %v3376 = vadd.f32 %v3142, %v3375
      %3377 = vmatprep.mubr.bf16.mxu0 0
      %3378 = vmatmul.mubr.bf16.gmra.mrb[0].mxu0 %v3096
      %v3379 = vpop.f32.mrb[0].mxu0
      %v3380 = vadd.f32 %v3138, %v3379
      %v3381 = vpop.f32.mrb[0].mxu0
      %v3382 = vadd.f32 %v3142, %v3381
      %v3383 = vpop.f32.mrb[0].mxu0
      %v3384 = vadd.f32 %v3138, %v3383
      %v3385 = vpop.f32.mrb[0].mxu0
      %v3386 = vadd.f32 %v3142, %v3385
      %3387 = vmatprep.mubr.bf16.mxu0 0
      %3388 = vmatmul.mubr.bf16.gmra.mrb[0].mxu0 %v3097
      %v3389 = vpop.f32.mrb[0].mxu0
      %v3390 = vadd.f32 %v3138, %v3389
      %v3391 = vpop.f32.mrb[0].mxu0
      %v3392 = vadd.f32 %v3142, %v3391
      %v3393 = vpop.f32.mrb[0].mxu0
      %v3394 = vadd.f32 %v3138, %v3393
      %v3395 = vpop.f32.mrb[0].mxu0
      %v3396 = vadd.f32 %v3142, %v3395
      %3397 = vmatprep.mubr.bf16.mxu0 0
      %3398 = vmatmul.mubr.bf16.gmra.mrb[0].mxu0 %v3098
      %v3399 = vpop.f32.mrb[0].mxu0
      %v3400 = vadd.f32 %v3138, %v3399
      %v3401 = vpop.f32.mrb[0].mxu0
      %v3402 = vadd.f32 %v3142, %v3401
      %v3403 = vpop.f32.mrb[0].mxu0
      %v3404 = vadd.f32 %v3138, %v3403
      %v3405 = vpop.f32.mrb[0].mxu0
      %v3406 = vadd.f32 %v3142, %v3405
      %3407 = vmatprep.mubr.bf16.mxu0 0
      %3408 = vmatmul.mubr.bf16.gmra.mrb[0].mxu0 %v3099
      %v3409 = vpop.f32.mrb[0].mxu0
      %v3410 = vadd.f32 %v3138, %v3409
      %v3411 = vpop.f32.mrb[0].mxu0
      %v3412 = vadd.f32 %v3142, %v3411
      %v3413 = vpop.f32.mrb[0].mxu0
      %v3414 = vadd.f32 %v3138, %v3413
      %v3415 = vpop.f32.mrb[0].mxu0
      %v3416 = vadd.f32 %v3142, %v3415
      %3417 = vmatprep.mubr.bf16.mxu0 0
      %3418 = vmatmul.mubr.bf16.gmra.mrb[0].mxu0 %v3100
      %v3419 = vpop.f32.mrb[0].mxu0
      %v3420 = vadd.f32 %v3138, %v3419
      %v3421 = vpop.f32.mrb[0].mxu0
      %v3422 = vadd.f32 %v3142, %v3421
      %v3423 = vpop.f32.mrb[0].mxu0
      %v3424 = vadd.f32 %v3138, %v3423
      %v3425 = vpop.f32.mrb[0].mxu0
      %v3426 = vadd.f32 %v3142, %v3425
      %3427 = vdwg.mxu0
      %3428 = vmatprep.subr.bf16.mxu0 %v3254
      %3429 = vmatpush1.bf16.msra.mxu0 %v3253
      %3430 = vmatprep.subr.bf16.mxu0 %v3258
      %3431 = vmatpush1.bf16.msra.mxu0 %v3257
      %3432 = vmatprep.subr.bf16.mxu0 %v3262
      %3433 = vmatpush1.bf16.msra.mxu0 %v3261
      %3434 = vmatprep.subr.bf16.mxu0 %v3266
      %3435 = vmatpush1.bf16.msra.mxu0 %v3265
      %3436 = vmatprep.subr.bf16.mxu0 %v3270
      %3437 = vmatpush1.bf16.msra.mxu0 %v3269
      %3438 = vmatprep.subr.bf16.mxu0 %v3274
      %3439 = vmatpush1.bf16.msra.mxu0 %v3273
      %3440 = vmatprep.subr.bf16.mxu0 %v3278
      %3441 = vmatpush1.bf16.msra.mxu0 %v3277
      %3442 = vmatprep.subr.bf16.mxu0 %v3282
      %3443 = vmatpush1.bf16.msra.mxu0 %v3281
      %3444 = vmatprep.subr.bf16.mxu0 0
      %3445 = vmatpush1.bf16.msra.mxu0 0
      %3446 = vmatprep.subr.bf16.mxu0 0
      %3447 = vmatpush1.bf16.msra.mxu0 0
      %3448 = vmatprep.subr.bf16.mxu0 0
      %3449 = vmatpush1.bf16.msra.mxu0 0
      %3450 = vmatprep.subr.bf16.mxu0 0
      %3451 = vmatpush1.bf16.msra.mxu0 0
      %3452 = vmatprep.subr.bf16.mxu0 0
      %3453 = vmatpush1.bf16.msra.mxu0 0
      %3454 = vmatprep.subr.bf16.mxu0 0
      %3455 = vmatpush1.bf16.msra.mxu0 0
      %3456 = vmatprep.subr.bf16.mxu0 0
      %3457 = vmatpush1.bf16.msra.mxu0 0
      %3458 = vmatprep.subr.bf16.mxu0 0
      %3459 = vmatpush1.bf16.msra.mxu0 0
      %3460 = vmatprep.mubr.bf16.mxu0 0
      %3461 = vmatmul.mubr.bf16.gmra.mrb[0].mxu0 %v3093
      %v3462 = vpop.f32.mrb[0].mxu0
      %v3463 = vadd.f32 %v3146, %v3462
      %v3464 = vpop.f32.mrb[0].mxu0
      %v3465 = vadd.f32 %v3150, %v3464
      %v3466 = vpop.f32.mrb[0].mxu0
      %v3467 = vadd.f32 %v3146, %v3466
      %v3468 = vpop.f32.mrb[0].mxu0
      %v3469 = vadd.f32 %v3150, %v3468
      %3470 = vmatprep.mubr.bf16.mxu0 0
      %3471 = vmatmul.mubr.bf16.gmra.mrb[0].mxu0 %v3094
      %v3472 = vpop.f32.mrb[0].mxu0
      %v3473 = vadd.f32 %v3146, %v3472
      %v3474 = vpop.f32.mrb[0].mxu0
      %v3475 = vadd.f32 %v3150, %v3474
      %v3476 = vpop.f32.mrb[0].mxu0
      %v3477 = vadd.f32 %v3146, %v3476
      %v3478 = vpop.f32.mrb[0].mxu0
      %v3479 = vadd.f32 %v3150, %v3478
      %3480 = vmatprep.mubr.bf16.mxu0 0
      %3481 = vmatmul.mubr.bf16.gmra.mrb[0].mxu0 %v3095
      %v3482 = vpop.f32.mrb[0].mxu0
      %v3483 = vadd.f32 %v3146, %v3482
      %v3484 = vpop.f32.mrb[0].mxu0
      %v3485 = vadd.f32 %v3150, %v3484
      %v3486 = vpop.f32.mrb[0].mxu0
      %v3487 = vadd.f32 %v3146, %v3486
      %v3488 = vpop.f32.mrb[0].mxu0
      %v3489 = vadd.f32 %v3150, %v3488
      %3490 = vmatprep.mubr.bf16.mxu0 0
      %3491 = vmatmul.mubr.bf16.gmra.mrb[0].mxu0 %v3096
      %v3492 = vpop.f32.mrb[0].mxu0
      %v3493 = vadd.f32 %v3146, %v3492
      %v3494 = vpop.f32.mrb[0].mxu0
      %v3495 = vadd.f32 %v3150, %v3494
      %v3496 = vpop.f32.mrb[0].mxu0
      %v3497 = vadd.f32 %v3146, %v3496
      %v3498 = vpop.f32.mrb[0].mxu0
      %v3499 = vadd.f32 %v3150, %v3498
      %3500 = vmatprep.mubr.bf16.mxu0 0
      %3501 = vmatmul.mubr.bf16.gmra.mrb[0].mxu0 %v3097
      %v3502 = vpop.f32.mrb[0].mxu0
      %v3503 = vadd.f32 %v3146, %v3502
      %v3504 = vpop.f32.mrb[0].mxu0
      %v3505 = vadd.f32 %v3150, %v3504
      %v3506 = vpop.f32.mrb[0].mxu0
      %v3507 = vadd.f32 %v3146, %v3506
      %v3508 = vpop.f32.mrb[0].mxu0
      %v3509 = vadd.f32 %v3150, %v3508
      %3510 = vmatprep.mubr.bf16.mxu0 0
      %3511 = vmatmul.mubr.bf16.gmra.mrb[0].mxu0 %v3098
      %v3512 = vpop.f32.mrb[0].mxu0
      %v3513 = vadd.f32 %v3146, %v3512
      %v3514 = vpop.f32.mrb[0].mxu0
      %v3515 = vadd.f32 %v3150, %v3514
      %v3516 = vpop.f32.mrb[0].mxu0
      %v3517 = vadd.f32 %v3146, %v3516
      %v3518 = vpop.f32.mrb[0].mxu0
      %v3519 = vadd.f32 %v3150, %v3518
      %3520 = vmatprep.mubr.bf16.mxu0 0
      %3521 = vmatmul.mubr.bf16.gmra.mrb[0].mxu0 %v3099
      %v3522 = vpop.f32.mrb[0].mxu0
      %v3523 = vadd.f32 %v3146, %v3522
      %v3524 = vpop.f32.mrb[0].mxu0
      %v3525 = vadd.f32 %v3150, %v3524
      %v3526 = vpop.f32.mrb[0].mxu0
      %v3527 = vadd.f32 %v3146, %v3526
      %v3528 = vpop.f32.mrb[0].mxu0
      %v3529 = vadd.f32 %v3150, %v3528
      %3530 = vmatprep.mubr.bf16.mxu0 0
      %3531 = vmatmul.mubr.bf16.gmra.mrb[0].mxu0 %v3100
      %v3532 = vpop.f32.mrb[0].mxu0
      %v3533 = vadd.f32 %v3146, %v3532
      %v3534 = vpop.f32.mrb[0].mxu0
      %v3535 = vadd.f32 %v3150, %v3534
      %v3536 = vpop.f32.mrb[0].mxu0
      %v3537 = vadd.f32 %v3146, %v3536
      %v3538 = vpop.f32.mrb[0].mxu0
      %v3539 = vadd.f32 %v3150, %v3538
      %3540 = vdwg.mxu0
      %v3541 = vmul.f32 %v3350, 1.702
      %v3542 = vmul.f32 %v3352, 1.702
      %v3543 = vmul.f32 %v3463, 1.702
      %v3544 = vmul.f32 %v3465, 1.702
      %v3545 = vmul.f32 %v3354, 1.702
      %v3546 = vmul.f32 %v3356, 1.702
      %v3547 = vmul.f32 %v3467, 1.702
      %v3548 = vmul.f32 %v3469, 1.702
      %v3549 = vmul.f32 %v3360, 1.702
      %v3550 = vmul.f32 %v3362, 1.702
      %v3551 = vmul.f32 %v3473, 1.702
      %v3552 = vmul.f32 %v3475, 1.702
      %v3553 = vmul.f32 %v3364, 1.702
      %v3554 = vmul.f32 %v3366, 1.702
      %v3555 = vmul.f32 %v3477, 1.702
      %v3556 = vmul.f32 %v3479, 1.702
      %v3557 = vmul.f32 %v3370, 1.702
      %v3558 = vmul.f32 %v3372, 1.702
      %v3559 = vmul.f32 %v3483, 1.702
      %v3560 = vmul.f32 %v3485, 1.702
      %v3561 = vmul.f32 %v3374, 1.702
      %v3562 = vmul.f32 %v3376, 1.702
      %v3563 = vmul.f32 %v3487, 1.702
      %v3564 = vmul.f32 %v3489, 1.702
      %v3565 = vmul.f32 %v3380, 1.702
      %v3566 = vmul.f32 %v3382, 1.702
      %v3567 = vmul.f32 %v3493, 1.702
      %v3568 = vmul.f32 %v3495, 1.702
      %v3569 = vmul.f32 %v3384, 1.702
      %v3570 = vmul.f32 %v3386, 1.702
      %v3571 = vmul.f32 %v3497, 1.702
      %v3572 = vmul.f32 %v3499, 1.702
      %v3573 = vmul.f32 %v3390, 1.702
      %v3574 = vmul.f32 %v3392, 1.702
      %v3575 = vmul.f32 %v3503, 1.702
      %v3576 = vmul.f32 %v3505, 1.702
      %v3577 = vmul.f32 %v3394, 1.702
      %v3578 = vmul.f32 %v3396, 1.702
      %v3579 = vmul.f32 %v3507, 1.702
      %v3580 = vmul.f32 %v3509, 1.702
      %v3581 = vmul.f32 %v3400, 1.702
      %v3582 = vmul.f32 %v3402, 1.702
      %v3583 = vmul.f32 %v3513, 1.702
      %v3584 = vmul.f32 %v3515, 1.702
      %v3585 = vmul.f32 %v3404, 1.702
      %v3586 = vmul.f32 %v3406, 1.702
      %v3587 = vmul.f32 %v3517, 1.702
      %v3588 = vmul.f32 %v3519, 1.702
      %v3589 = vmul.f32 %v3410, 1.702
      %v3590 = vmul.f32 %v3412, 1.702
      %v3591 = vmul.f32 %v3523, 1.702
      %v3592 = vmul.f32 %v3525, 1.702
      %v3593 = vmul.f32 %v3414, 1.702
      %v3594 = vmul.f32 %v3416, 1.702
      %v3595 = vmul.f32 %v3527, 1.702
      %v3596 = vmul.f32 %v3529, 1.702
      %v3597 = vmul.f32 %v3420, 1.702
      %v3598 = vmul.f32 %v3422, 1.702
      %v3599 = vmul.f32 %v3533, 1.702
      %v3600 = vmul.f32 %v3535, 1.702
      %v3601 = vmul.f32 %v3424, 1.702
      %v3602 = vmul.f32 %v3426, 1.702
      %v3603 = vmul.f32 %v3537, 1.702
      %v3604 = vmul.f32 %v3539, 1.702
      %v3605 = vxor.u32 %v3541, 2147483648
      %v3606 = vxor.u32 %v3542, 2147483648
      %v3607 = vxor.u32 %v3543, 2147483648
      %v3608 = vxor.u32 %v3544, 2147483648
      %v3609 = vxor.u32 %v3545, 2147483648
      %v3610 = vxor.u32 %v3546, 2147483648
      %v3611 = vxor.u32 %v3547, 2147483648
      %v3612 = vxor.u32 %v3548, 2147483648
      %v3613 = vxor.u32 %v3549, 2147483648
      %v3614 = vxor.u32 %v3550, 2147483648
      %v3615 = vxor.u32 %v3551, 2147483648
      %v3616 = vxor.u32 %v3552, 2147483648
      %v3617 = vxor.u32 %v3553, 2147483648
      %v3618 = vxor.u32 %v3554, 2147483648
      %v3619 = vxor.u32 %v3555, 2147483648
      %v3620 = vxor.u32 %v3556, 2147483648
      %v3621 = vxor.u32 %v3557, 2147483648
      %v3622 = vxor.u32 %v3558, 2147483648
      %v3623 = vxor.u32 %v3559, 2147483648
      %v3624 = vxor.u32 %v3560, 2147483648
      %v3625 = vxor.u32 %v3561, 2147483648
      %v3626 = vxor.u32 %v3562, 2147483648
      %v3627 = vxor.u32 %v3563, 2147483648
      %v3628 = vxor.u32 %v3564, 2147483648
      %v3629 = vxor.u32 %v3565, 2147483648
      %v3630 = vxor.u32 %v3566, 2147483648
      %v3631 = vxor.u32 %v3567, 2147483648
      %v3632 = vxor.u32 %v3568, 2147483648
      %v3633 = vxor.u32 %v3569, 2147483648
      %v3634 = vxor.u32 %v3570, 2147483648
      %v3635 = vxor.u32 %v3571, 2147483648
      %v3636 = vxor.u32 %v3572, 2147483648
      %v3637 = vxor.u32 %v3573, 2147483648
      %v3638 = vxor.u32 %v3574, 2147483648
      %v3639 = vxor.u32 %v3575, 2147483648
      %v3640 = vxor.u32 %v3576, 2147483648
      %v3641 = vxor.u32 %v3577, 2147483648
      %v3642 = vxor.u32 %v3578, 2147483648
      %v3643 = vxor.u32 %v3579, 2147483648
      %v3644 = vxor.u32 %v3580, 2147483648
      %v3645 = vxor.u32 %v3581, 2147483648
      %v3646 = vxor.u32 %v3582, 2147483648
      %v3647 = vxor.u32 %v3583, 2147483648
      %v3648 = vxor.u32 %v3584, 2147483648
      %v3649 = vxor.u32 %v3585, 2147483648
      %v3650 = vxor.u32 %v3586, 2147483648
      %v3651 = vxor.u32 %v3587, 2147483648
      %v3652 = vxor.u32 %v3588, 2147483648
      %v3653 = vxor.u32 %v3589, 2147483648
      %v3654 = vxor.u32 %v3590, 2147483648
      %v3655 = vxor.u32 %v3591, 2147483648
      %v3656 = vxor.u32 %v3592, 2147483648
      %v3657 = vxor.u32 %v3593, 2147483648
      %v3658 = vxor.u32 %v3594, 2147483648
      %v3659 = vxor.u32 %v3595, 2147483648
      %v3660 = vxor.u32 %v3596, 2147483648
      %v3661 = vxor.u32 %v3597, 2147483648
      %v3662 = vxor.u32 %v3598, 2147483648
      %v3663 = vxor.u32 %v3599, 2147483648
      %v3664 = vxor.u32 %v3600, 2147483648
      %v3665 = vxor.u32 %v3601, 2147483648
      %v3666 = vxor.u32 %v3602, 2147483648
      %v3667 = vxor.u32 %v3603, 2147483648
      %v3668 = vxor.u32 %v3604, 2147483648
      %v3669 = vmul.f32 %v3605, 1.442695
      %v3670 = vpow.pop %v3669
      %v3671 = vmul.f32 %v3606, 1.442695
      %v3672 = vpow.pop %v3671
      %v3673 = vmul.f32 %v3607, 1.442695
      %v3674 = vpow.pop %v3673
      %v3675 = vmul.f32 %v3608, 1.442695
      %v3676 = vpow.pop %v3675
      %v3677 = vmul.f32 %v3609, 1.442695
      %v3678 = vpow.pop %v3677
      %v3679 = vmul.f32 %v3610, 1.442695
      %v3680 = vpow.pop %v3679
      %v3681 = vmul.f32 %v3611, 1.442695
      %v3682 = vpow.pop %v3681
      %v3683 = vmul.f32 %v3612, 1.442695
      %v3684 = vpow.pop %v3683
      %v3685 = vmul.f32 %v3613, 1.442695
      %v3686 = vpow.pop %v3685
      %v3687 = vmul.f32 %v3614, 1.442695
      %v3688 = vpow.pop %v3687
      %v3689 = vmul.f32 %v3615, 1.442695
      %v3690 = vpow.pop %v3689
      %v3691 = vmul.f32 %v3616, 1.442695
      %v3692 = vpow.pop %v3691
      %v3693 = vmul.f32 %v3617, 1.442695
      %v3694 = vpow.pop %v3693
      %v3695 = vmul.f32 %v3618, 1.442695
      %v3696 = vpow.pop %v3695
      %v3697 = vmul.f32 %v3619, 1.442695
      %v3698 = vpow.pop %v3697
      %v3699 = vmul.f32 %v3620, 1.442695
      %v3700 = vpow.pop %v3699
      %v3701 = vmul.f32 %v3621, 1.442695
      %v3702 = vpow.pop %v3701
      %v3703 = vmul.f32 %v3622, 1.442695
      %v3704 = vpow.pop %v3703
      %v3705 = vmul.f32 %v3623, 1.442695
      %v3706 = vpow.pop %v3705
      %v3707 = vmul.f32 %v3624, 1.442695
      %v3708 = vpow.pop %v3707
      %v3709 = vmul.f32 %v3625, 1.442695
      %v3710 = vpow.pop %v3709
      %v3711 = vmul.f32 %v3626, 1.442695
      %v3712 = vpow.pop %v3711
      %v3713 = vmul.f32 %v3627, 1.442695
      %v3714 = vpow.pop %v3713
      %v3715 = vmul.f32 %v3628, 1.442695
      %v3716 = vpow.pop %v3715
      %v3717 = vmul.f32 %v3629, 1.442695
      %v3718 = vpow.pop %v3717
      %v3719 = vmul.f32 %v3630, 1.442695
      %v3720 = vpow.pop %v3719
      %v3721 = vmul.f32 %v3631, 1.442695
      %v3722 = vpow.pop %v3721
      %v3723 = vmul.f32 %v3632, 1.442695
      %v3724 = vpow.pop %v3723
      %v3725 = vmul.f32 %v3633, 1.442695
      %v3726 = vpow.pop %v3725
      %v3727 = vmul.f32 %v3634, 1.442695
      %v3728 = vpow.pop %v3727
      %v3729 = vmul.f32 %v3635, 1.442695
      %v3730 = vpow.pop %v3729
      %v3731 = vmul.f32 %v3636, 1.442695
      %v3732 = vpow.pop %v3731
      %v3733 = vmul.f32 %v3637, 1.442695
      %v3734 = vpow.pop %v3733
      %v3735 = vmul.f32 %v3638, 1.442695
      %v3736 = vpow.pop %v3735
      %v3737 = vmul.f32 %v3639, 1.442695
      %v3738 = vpow.pop %v3737
      %v3739 = vmul.f32 %v3640, 1.442695
      %v3740 = vpow.pop %v3739
      %v3741 = vmul.f32 %v3641, 1.442695
      %v3742 = vpow.pop %v3741
      %v3743 = vmul.f32 %v3642, 1.442695
      %v3744 = vpow.pop %v3743
      %v3745 = vmul.f32 %v3643, 1.442695
      %v3746 = vpow.pop %v3745
      %v3747 = vmul.f32 %v3644, 1.442695
      %v3748 = vpow.pop %v3747
      %v3749 = vmul.f32 %v3645, 1.442695
      %v3750 = vpow.pop %v3749
      %v3751 = vmul.f32 %v3646, 1.442695
      %v3752 = vpow.pop %v3751
      %v3753 = vmul.f32 %v3647, 1.442695
      %v3754 = vpow.pop %v3753
      %v3755 = vmul.f32 %v3648, 1.442695
      %v3756 = vpow.pop %v3755
      %v3757 = vmul.f32 %v3649, 1.442695
      %v3758 = vpow.pop %v3757
      %v3759 = vmul.f32 %v3650, 1.442695
      %v3760 = vpow.pop %v3759
      %v3761 = vmul.f32 %v3651, 1.442695
      %v3762 = vpow.pop %v3761
      %v3763 = vmul.f32 %v3652, 1.442695
      %v3764 = vpow.pop %v3763
      %v3765 = vmul.f32 %v3653, 1.442695
      %v3766 = vpow.pop %v3765
      %v3767 = vmul.f32 %v3654, 1.442695
      %v3768 = vpow.pop %v3767
      %v3769 = vmul.f32 %v3655, 1.442695
      %v3770 = vpow.pop %v3769
      %v3771 = vmul.f32 %v3656, 1.442695
      %v3772 = vpow.pop %v3771
      %v3773 = vmul.f32 %v3657, 1.442695
      %v3774 = vpow.pop %v3773
      %v3775 = vmul.f32 %v3658, 1.442695
      %v3776 = vpow.pop %v3775
      %v3777 = vmul.f32 %v3659, 1.442695
      %v3778 = vpow.pop %v3777
      %v3779 = vmul.f32 %v3660, 1.442695
      %v3780 = vpow.pop %v3779
      %v3781 = vmul.f32 %v3661, 1.442695
      %v3782 = vpow.pop %v3781
      %v3783 = vmul.f32 %v3662, 1.442695
      %v3784 = vpow.pop %v3783
      %v3785 = vmul.f32 %v3663, 1.442695
      %v3786 = vpow.pop %v3785
      %v3787 = vmul.f32 %v3664, 1.442695
      %v3788 = vpow.pop %v3787
      %v3789 = vmul.f32 %v3665, 1.442695
      %v3790 = vpow.pop %v3789
      %v3791 = vmul.f32 %v3666, 1.442695
      %v3792 = vpow.pop %v3791
      %v3793 = vmul.f32 %v3667, 1.442695
      %v3794 = vpow.pop %v3793
      %v3795 = vmul.f32 %v3668, 1.442695
      %v3796 = vpow.pop %v3795
      %v3797 = vadd.f32 %v3670, 1.0
      %v3798 = vadd.f32 %v3672, 1.0
      %v3799 = vadd.f32 %v3674, 1.0
      %v3800 = vadd.f32 %v3676, 1.0
      %v3801 = vadd.f32 %v3678, 1.0
      %v3802 = vadd.f32 %v3680, 1.0
      %v3803 = vadd.f32 %v3682, 1.0
      %v3804 = vadd.f32 %v3684, 1.0
      %v3805 = vadd.f32 %v3686, 1.0
      %v3806 = vadd.f32 %v3688, 1.0
      %v3807 = vadd.f32 %v3690, 1.0
      %v3808 = vadd.f32 %v3692, 1.0
      %v3809 = vadd.f32 %v3694, 1.0
      %v3810 = vadd.f32 %v3696, 1.0
      %v3811 = vadd.f32 %v3698, 1.0
      %v3812 = vadd.f32 %v3700, 1.0
      %v3813 = vadd.f32 %v3702, 1.0
      %v3814 = vadd.f32 %v3704, 1.0
      %v3815 = vadd.f32 %v3706, 1.0
      %v3816 = vadd.f32 %v3708, 1.0
      %v3817 = vadd.f32 %v3710, 1.0
      %v3818 = vadd.f32 %v3712, 1.0
      %v3819 = vadd.f32 %v3714, 1.0
      %v3820 = vadd.f32 %v3716, 1.0
      %v3821 = vadd.f32 %v3718, 1.0
      %v3822 = vadd.f32 %v3720, 1.0
      %v3823 = vadd.f32 %v3722, 1.0
      %v3824 = vadd.f32 %v3724, 1.0
      %v3825 = vadd.f32 %v3726, 1.0
      %v3826 = vadd.f32 %v3728, 1.0
      %v3827 = vadd.f32 %v3730, 1.0
      %v3828 = vadd.f32 %v3732, 1.0
      %v3829 = vadd.f32 %v3734, 1.0
      %v3830 = vadd.f32 %v3736, 1.0
      %v3831 = vadd.f32 %v3738, 1.0
      %v3832 = vadd.f32 %v3740, 1.0
      %v3833 = vadd.f32 %v3742, 1.0
      %v3834 = vadd.f32 %v3744, 1.0
      %v3835 = vadd.f32 %v3746, 1.0
      %v3836 = vadd.f32 %v3748, 1.0
      %v3837 = vadd.f32 %v3750, 1.0
      %v3838 = vadd.f32 %v3752, 1.0
      %v3839 = vadd.f32 %v3754, 1.0
      %v3840 = vadd.f32 %v3756, 1.0
      %v3841 = vadd.f32 %v3758, 1.0
      %v3842 = vadd.f32 %v3760, 1.0
      %v3843 = vadd.f32 %v3762, 1.0
      %v3844 = vadd.f32 %v3764, 1.0
      %v3845 = vadd.f32 %v3766, 1.0
      %v3846 = vadd.f32 %v3768, 1.0
      %v3847 = vadd.f32 %v3770, 1.0
      %v3848 = vadd.f32 %v3772, 1.0
      %v3849 = vadd.f32 %v3774, 1.0
      %v3850 = vadd.f32 %v3776, 1.0
      %v3851 = vadd.f32 %v3778, 1.0
      %v3852 = vadd.f32 %v3780, 1.0
      %v3853 = vadd.f32 %v3782, 1.0
      %v3854 = vadd.f32 %v3784, 1.0
      %v3855 = vadd.f32 %v3786, 1.0
      %v3856 = vadd.f32 %v3788, 1.0
      %v3857 = vadd.f32 %v3790, 1.0
      %v3858 = vadd.f32 %v3792, 1.0
      %v3859 = vadd.f32 %v3794, 1.0
      %v3860 = vadd.f32 %v3796, 1.0
      %v3861 = vrcp.pop %v3797
      %v3862 = vmul.f32 1.0, %v3861
      %v3863 = vrcp.pop %v3798
      %v3864 = vmul.f32 1.0, %v3863
      %v3865 = vrcp.pop %v3799
      %v3866 = vmul.f32 1.0, %v3865
      %v3867 = vrcp.pop %v3800
      %v3868 = vmul.f32 1.0, %v3867
      %v3869 = vrcp.pop %v3801
      %v3870 = vmul.f32 1.0, %v3869
      %v3871 = vrcp.pop %v3802
      %v3872 = vmul.f32 1.0, %v3871
      %v3873 = vrcp.pop %v3803
      %v3874 = vmul.f32 1.0, %v3873
      %v3875 = vrcp.pop %v3804
      %v3876 = vmul.f32 1.0, %v3875
      %v3877 = vrcp.pop %v3805
      %v3878 = vmul.f32 1.0, %v3877
      %v3879 = vrcp.pop %v3806
      %v3880 = vmul.f32 1.0, %v3879
      %v3881 = vrcp.pop %v3807
      %v3882 = vmul.f32 1.0, %v3881
      %v3883 = vrcp.pop %v3808
      %v3884 = vmul.f32 1.0, %v3883
      %v3885 = vrcp.pop %v3809
      %v3886 = vmul.f32 1.0, %v3885
      %v3887 = vrcp.pop %v3810
      %v3888 = vmul.f32 1.0, %v3887
      %v3889 = vrcp.pop %v3811
      %v3890 = vmul.f32 1.0, %v3889
      %v3891 = vrcp.pop %v3812
      %v3892 = vmul.f32 1.0, %v3891
      %v3893 = vrcp.pop %v3813
      %v3894 = vmul.f32 1.0, %v3893
      %v3895 = vrcp.pop %v3814
      %v3896 = vmul.f32 1.0, %v3895
      %v3897 = vrcp.pop %v3815
      %v3898 = vmul.f32 1.0, %v3897
      %v3899 = vrcp.pop %v3816
      %v3900 = vmul.f32 1.0, %v3899
      %v3901 = vrcp.pop %v3817
      %v3902 = vmul.f32 1.0, %v3901
      %v3903 = vrcp.pop %v3818
      %v3904 = vmul.f32 1.0, %v3903
      %v3905 = vrcp.pop %v3819
      %v3906 = vmul.f32 1.0, %v3905
      %v3907 = vrcp.pop %v3820
      %v3908 = vmul.f32 1.0, %v3907
      %v3909 = vrcp.pop %v3821
      %v3910 = vmul.f32 1.0, %v3909
      %v3911 = vrcp.pop %v3822
      %v3912 = vmul.f32 1.0, %v3911
      %v3913 = vrcp.pop %v3823
      %v3914 = vmul.f32 1.0, %v3913
      %v3915 = vrcp.pop %v3824
      %v3916 = vmul.f32 1.0, %v3915
      %v3917 = vrcp.pop %v3825
      %v3918 = vmul.f32 1.0, %v3917
      %v3919 = vrcp.pop %v3826
      %v3920 = vmul.f32 1.0, %v3919
      %v3921 = vrcp.pop %v3827
      %v3922 = vmul.f32 1.0, %v3921
      %v3923 = vrcp.pop %v3828
      %v3924 = vmul.f32 1.0, %v3923
      %v3925 = vrcp.pop %v3829
      %v3926 = vmul.f32 1.0, %v3925
      %v3927 = vrcp.pop %v3830
      %v3928 = vmul.f32 1.0, %v3927
      %v3929 = vrcp.pop %v3831
      %v3930 = vmul.f32 1.0, %v3929
      %v3931 = vrcp.pop %v3832
      %v3932 = vmul.f32 1.0, %v3931
      %v3933 = vrcp.pop %v3833
      %v3934 = vmul.f32 1.0, %v3933
      %v3935 = vrcp.pop %v3834
      %v3936 = vmul.f32 1.0, %v3935
      %v3937 = vrcp.pop %v3835
      %v3938 = vmul.f32 1.0, %v3937
      %v3939 = vrcp.pop %v3836
      %v3940 = vmul.f32 1.0, %v3939
      %v3941 = vrcp.pop %v3837
      %v3942 = vmul.f32 1.0, %v3941
      %v3943 = vrcp.pop %v3838
      %v3944 = vmul.f32 1.0, %v3943
      %v3945 = vrcp.pop %v3839
      %v3946 = vmul.f32 1.0, %v3945
      %v3947 = vrcp.pop %v3840
      %v3948 = vmul.f32 1.0, %v3947
      %v3949 = vrcp.pop %v3841
      %v3950 = vmul.f32 1.0, %v3949
      %v3951 = vrcp.pop %v3842
      %v3952 = vmul.f32 1.0, %v3951
      %v3953 = vrcp.pop %v3843
      %v3954 = vmul.f32 1.0, %v3953
      %v3955 = vrcp.pop %v3844
      %v3956 = vmul.f32 1.0, %v3955
      %v3957 = vrcp.pop %v3845
      %v3958 = vmul.f32 1.0, %v3957
      %v3959 = vrcp.pop %v3846
      %v3960 = vmul.f32 1.0, %v3959
      %v3961 = vrcp.pop %v3847
      %v3962 = vmul.f32 1.0, %v3961
      %v3963 = vrcp.pop %v3848
      %v3964 = vmul.f32 1.0, %v3963
      %v3965 = vrcp.pop %v3849
      %v3966 = vmul.f32 1.0, %v3965
      %v3967 = vrcp.pop %v3850
      %v3968 = vmul.f32 1.0, %v3967
      %v3969 = vrcp.pop %v3851
      %v3970 = vmul.f32 1.0, %v3969
      %v3971 = vrcp.pop %v3852
      %v3972 = vmul.f32 1.0, %v3971
      %v3973 = vrcp.pop %v3853
      %v3974 = vmul.f32 1.0, %v3973
      %v3975 = vrcp.pop %v3854
      %v3976 = vmul.f32 1.0, %v3975
      %v3977 = vrcp.pop %v3855
      %v3978 = vmul.f32 1.0, %v3977
      %v3979 = vrcp.pop %v3856
      %v3980 = vmul.f32 1.0, %v3979
      %v3981 = vrcp.pop %v3857
      %v3982 = vmul.f32 1.0, %v3981
      %v3983 = vrcp.pop %v3858
      %v3984 = vmul.f32 1.0, %v3983
      %v3985 = vrcp.pop %v3859
      %v3986 = vmul.f32 1.0, %v3985
      %v3987 = vrcp.pop %v3860
      %v3988 = vmul.f32 1.0, %v3987
      %v3989 = vmul.f32 %v3350, %v3862
      %v3990 = vmul.f32 %v3352, %v3864
      %v3991 = vmul.f32 %v3463, %v3866
      %v3992 = vmul.f32 %v3465, %v3868
      %v3993 = vmul.f32 %v3354, %v3870
      %v3994 = vmul.f32 %v3356, %v3872
      %v3995 = vmul.f32 %v3467, %v3874
      %v3996 = vmul.f32 %v3469, %v3876
      %v3997 = vmul.f32 %v3360, %v3878
      %v3998 = vmul.f32 %v3362, %v3880
      %v3999 = vmul.f32 %v3473, %v3882
      %v4000 = vmul.f32 %v3475, %v3884
      %v4001 = vmul.f32 %v3364, %v3886
      %v4002 = vmul.f32 %v3366, %v3888
      %v4003 = vmul.f32 %v3477, %v3890
      %v4004 = vmul.f32 %v3479, %v3892
      %v4005 = vmul.f32 %v3370, %v3894
      %v4006 = vmul.f32 %v3372, %v3896
      %v4007 = vmul.f32 %v3483, %v3898
      %v4008 = vmul.f32 %v3485, %v3900
      %v4009 = vmul.f32 %v3374, %v3902
      %v4010 = vmul.f32 %v3376, %v3904
      %v4011 = vmul.f32 %v3487, %v3906
      %v4012 = vmul.f32 %v3489, %v3908
      %v4013 = vmul.f32 %v3380, %v3910
      %v4014 = vmul.f32 %v3382, %v3912
      %v4015 = vmul.f32 %v3493, %v3914
      %v4016 = vmul.f32 %v3495, %v3916
      %v4017 = vmul.f32 %v3384, %v3918
      %v4018 = vmul.f32 %v3386, %v3920
      %v4019 = vmul.f32 %v3497, %v3922
      %v4020 = vmul.f32 %v3499, %v3924
      %v4021 = vmul.f32 %v3390, %v3926
      %v4022 = vmul.f32 %v3392, %v3928
      %v4023 = vmul.f32 %v3503, %v3930
      %v4024 = vmul.f32 %v3505, %v3932
      %v4025 = vmul.f32 %v3394, %v3934
      %v4026 = vmul.f32 %v3396, %v3936
      %v4027 = vmul.f32 %v3507, %v3938
      %v4028 = vmul.f32 %v3509, %v3940
      %v4029 = vmul.f32 %v3400, %v3942
      %v4030 = vmul.f32 %v3402, %v3944
      %v4031 = vmul.f32 %v3513, %v3946
      %v4032 = vmul.f32 %v3515, %v3948
      %v4033 = vmul.f32 %v3404, %v3950
      %v4034 = vmul.f32 %v3406, %v3952
      %v4035 = vmul.f32 %v3517, %v3954
      %v4036 = vmul.f32 %v3519, %v3956
      %v4037 = vmul.f32 %v3410, %v3958
      %v4038 = vmul.f32 %v3412, %v3960
      %v4039 = vmul.f32 %v3523, %v3962
      %v4040 = vmul.f32 %v3525, %v3964
      %v4041 = vmul.f32 %v3414, %v3966
      %v4042 = vmul.f32 %v3416, %v3968
      %v4043 = vmul.f32 %v3527, %v3970
      %v4044 = vmul.f32 %v3529, %v3972
      %v4045 = vmul.f32 %v3420, %v3974
      %v4046 = vmul.f32 %v3422, %v3976
      %v4047 = vmul.f32 %v3533, %v3978
      %v4048 = vmul.f32 %v3535, %v3980
      %v4049 = vmul.f32 %v3424, %v3982
      %v4050 = vmul.f32 %v3426, %v3984
      %v4051 = vmul.f32 %v3537, %v3986
      %v4052 = vmul.f32 %v3539, %v3988
      %v4053 = vpack.c.bf16 %v3993, %v3989
      %v4054 = vpack.c.bf16 %v3994, %v3990
      %v4055 = vpack.c.bf16 %v3995, %v3991
      %v4056 = vpack.c.bf16 %v3996, %v3992
      %v4057 = vpack.c.bf16 %v4001, %v3997
      %v4058 = vpack.c.bf16 %v4002, %v3998
      %v4059 = vpack.c.bf16 %v4003, %v3999
      %v4060 = vpack.c.bf16 %v4004, %v4000
      %v4061 = vpack.c.bf16 %v4009, %v4005
      %v4062 = vpack.c.bf16 %v4010, %v4006
      %v4063 = vpack.c.bf16 %v4011, %v4007
      %v4064 = vpack.c.bf16 %v4012, %v4008
      %v4065 = vpack.c.bf16 %v4017, %v4013
      %v4066 = vpack.c.bf16 %v4018, %v4014
      %v4067 = vpack.c.bf16 %v4019, %v4015
      %v4068 = vpack.c.bf16 %v4020, %v4016
      %v4069 = vpack.c.bf16 %v4025, %v4021
      %v4070 = vpack.c.bf16 %v4026, %v4022
      %v4071 = vpack.c.bf16 %v4027, %v4023
      %v4072 = vpack.c.bf16 %v4028, %v4024
      %v4073 = vpack.c.bf16 %v4033, %v4029
      %v4074 = vpack.c.bf16 %v4034, %v4030
      %v4075 = vpack.c.bf16 %v4035, %v4031
      %v4076 = vpack.c.bf16 %v4036, %v4032
      %v4077 = vpack.c.bf16 %v4041, %v4037
      %v4078 = vpack.c.bf16 %v4042, %v4038
      %v4079 = vpack.c.bf16 %v4043, %v4039
      %v4080 = vpack.c.bf16 %v4044, %v4040
      %v4081 = vpack.c.bf16 %v4049, %v4045
      %v4082 = vpack.c.bf16 %v4050, %v4046
      %v4083 = vpack.c.bf16 %v4051, %v4047
      %v4084 = vpack.c.bf16 %v4052, %v4048
      %v4085 = vld [vmem:[%s835] sm:$0xf]
      %v4086 = vld [vmem:[%s835 + $0x4] sm:$0xf]
      %v4087 = vld [vmem:[%s835 + $0x8] sm:$0xf]
      %v4088 = vld [vmem:[%s835 + $0xc] sm:$0xf]
      %v4089 = vld [vmem:[%s835 + $0x10] sm:$0xf]
      %v4090 = vld [vmem:[%s835 + $0x14] sm:$0xf]
      %v4091 = vld [vmem:[%s835 + $0x18] sm:$0xf]
      %v4092 = vld [vmem:[%s835 + $0x1c] sm:$0xf]
      %v4093 = vld [vmem:[%s835 + $0x20] sm:$0xf]
      %v4094 = vld [vmem:[%s835 + $0x24] sm:$0xf]
      %v4095 = vld [vmem:[%s835 + $0x28] sm:$0xf]
      %v4096 = vld [vmem:[%s835 + $0x2c] sm:$0xf]
      %v4097 = vld [vmem:[%s835 + $0x30] sm:$0xf]
      %v4098 = vld [vmem:[%s835 + $0x34] sm:$0xf]
      %v4099 = vld [vmem:[%s835 + $0x38] sm:$0xf]
      %v4100 = vld [vmem:[%s835 + $0x3c] sm:$0xf]
      %v4101 = vld [vmem:[%s835 + $0x40] sm:$0xf]
      %v4102 = vld [vmem:[%s835 + $0x44] sm:$0xf]
      %v4103 = vld [vmem:[%s835 + $0x48] sm:$0xf]
      %v4104 = vld [vmem:[%s835 + $0x4c] sm:$0xf]
      %v4105 = vld [vmem:[%s835 + $0x50] sm:$0xf]
      %v4106 = vld [vmem:[%s835 + $0x54] sm:$0xf]
      %v4107 = vld [vmem:[%s835 + $0x58] sm:$0xf]
      %v4108 = vld [vmem:[%s835 + $0x5c] sm:$0xf]
      %v4109 = vld [vmem:[%s835 + $0x60] sm:$0xf]
      %v4110 = vld [vmem:[%s835 + $0x64] sm:$0xf]
      %v4111 = vld [vmem:[%s835 + $0x68] sm:$0xf]
      %v4112 = vld [vmem:[%s835 + $0x6c] sm:$0xf]
      %v4113 = vld [vmem:[%s835 + $0x70] sm:$0xf]
      %v4114 = vld [vmem:[%s835 + $0x74] sm:$0xf]
      %v4115 = vld [vmem:[%s835 + $0x78] sm:$0xf]
      %v4116 = vld [vmem:[%s835 + $0x7c] sm:$0xf]
      %v4117 = vld [vmem:[%s835 + $0x80] sm:$0xf]
      %v4118 = vld [vmem:[%s835 + $0x84] sm:$0xf]
      %v4119 = vld [vmem:[%s835 + $0x88] sm:$0xf]
      %v4120 = vld [vmem:[%s835 + $0x8c] sm:$0xf]
      %v4121 = vld [vmem:[%s835 + $0x90] sm:$0xf]
      %v4122 = vld [vmem:[%s835 + $0x94] sm:$0xf]
      %v4123 = vld [vmem:[%s835 + $0x98] sm:$0xf]
      %v4124 = vld [vmem:[%s835 + $0x9c] sm:$0xf]
      %v4125 = vld [vmem:[%s835 + $0xa0] sm:$0xf]
      %v4126 = vld [vmem:[%s835 + $0xa4] sm:$0xf]
      %v4127 = vld [vmem:[%s835 + $0xa8] sm:$0xf]
      %v4128 = vld [vmem:[%s835 + $0xac] sm:$0xf]
      %v4129 = vld [vmem:[%s835 + $0xb0] sm:$0xf]
      %v4130 = vld [vmem:[%s835 + $0xb4] sm:$0xf]
      %v4131 = vld [vmem:[%s835 + $0xb8] sm:$0xf]
      %v4132 = vld [vmem:[%s835 + $0xbc] sm:$0xf]
      %v4133 = vld [vmem:[%s835 + $0xc0] sm:$0xf]
      %v4134 = vld [vmem:[%s835 + $0xc4] sm:$0xf]
      %v4135 = vld [vmem:[%s835 + $0xc8] sm:$0xf]
      %v4136 = vld [vmem:[%s835 + $0xcc] sm:$0xf]
      %v4137 = vld [vmem:[%s835 + $0xd0] sm:$0xf]
      %v4138 = vld [vmem:[%s835 + $0xd4] sm:$0xf]
      %v4139 = vld [vmem:[%s835 + $0xd8] sm:$0xf]
      %v4140 = vld [vmem:[%s835 + $0xdc] sm:$0xf]
      %v4141 = vld [vmem:[%s835 + $0xe0] sm:$0xf]
      %v4142 = vld [vmem:[%s835 + $0xe4] sm:$0xf]
      %v4143 = vld [vmem:[%s835 + $0xe8] sm:$0xf]
      %v4144 = vld [vmem:[%s835 + $0xec] sm:$0xf]
      %v4145 = vld [vmem:[%s835 + $0xf0] sm:$0xf]
      %v4146 = vld [vmem:[%s835 + $0xf4] sm:$0xf]
      %v4147 = vld [vmem:[%s835 + $0xf8] sm:$0xf]
      %v4148 = vld [vmem:[%s835 + $0xfc] sm:$0xf]
      %v4149 = vld [vmem:[%s838] sm:$0x1]
      %v4151 = vlaneseq
      %v4152 = vshrl.u32 %v4151, 7
      %v4153 = vsub.s32 0, %v4152
      %v4154 = vrot.slane %v4149, %v4153
      %v4220 = vunpack.c.l.b16 %v4085
      %v4221 = vunpack.c.l.b16 %v4086
      %v4222 = vunpack.c.l.b16 %v4087
      %v4223 = vunpack.c.l.b16 %v4088
      %v4224 = vunpack.c.l.b16 %v4089
      %v4225 = vunpack.c.l.b16 %v4090
      %v4226 = vunpack.c.l.b16 %v4091
      %v4227 = vunpack.c.l.b16 %v4092
      %v4228 = vunpack.c.l.b16 %v4093
      %v4229 = vunpack.c.l.b16 %v4094
      %v4230 = vunpack.c.l.b16 %v4095
      %v4231 = vunpack.c.l.b16 %v4096
      %v4232 = vunpack.c.l.b16 %v4097
      %v4233 = vunpack.c.l.b16 %v4098
      %v4234 = vunpack.c.l.b16 %v4099
      %v4235 = vunpack.c.l.b16 %v4100
      %v4236 = vunpack.c.l.b16 %v4101
      %v4237 = vunpack.c.l.b16 %v4102
      %v4238 = vunpack.c.l.b16 %v4103
      %v4239 = vunpack.c.l.b16 %v4104
      %v4240 = vunpack.c.l.b16 %v4105
      %v4241 = vunpack.c.l.b16 %v4106
      %v4242 = vunpack.c.l.b16 %v4107
      %v4243 = vunpack.c.l.b16 %v4108
      %v4244 = vunpack.c.l.b16 %v4109
      %v4245 = vunpack.c.l.b16 %v4110
      %v4246 = vunpack.c.l.b16 %v4111
      %v4247 = vunpack.c.l.b16 %v4112
      %v4248 = vunpack.c.l.b16 %v4113
      %v4249 = vunpack.c.l.b16 %v4114
      %v4250 = vunpack.c.l.b16 %v4115
      %v4251 = vunpack.c.l.b16 %v4116
      %v4252 = vunpack.c.l.b16 %v4117
      %v4253 = vunpack.c.l.b16 %v4118
      %v4254 = vunpack.c.l.b16 %v4119
      %v4255 = vunpack.c.l.b16 %v4120
      %v4256 = vunpack.c.l.b16 %v4121
      %v4257 = vunpack.c.l.b16 %v4122
      %v4258 = vunpack.c.l.b16 %v4123
      %v4259 = vunpack.c.l.b16 %v4124
      %v4260 = vunpack.c.l.b16 %v4125
      %v4261 = vunpack.c.l.b16 %v4126
      %v4262 = vunpack.c.l.b16 %v4127
      %v4263 = vunpack.c.l.b16 %v4128
      %v4264 = vunpack.c.l.b16 %v4129
      %v4265 = vunpack.c.l.b16 %v4130
      %v4266 = vunpack.c.l.b16 %v4131
      %v4267 = vunpack.c.l.b16 %v4132
      %v4268 = vunpack.c.l.b16 %v4133
      %v4269 = vunpack.c.l.b16 %v4134
      %v4270 = vunpack.c.l.b16 %v4135
      %v4271 = vunpack.c.l.b16 %v4136
      %v4272 = vunpack.c.l.b16 %v4137
      %v4273 = vunpack.c.l.b16 %v4138
      %v4274 = vunpack.c.l.b16 %v4139
      %v4275 = vunpack.c.l.b16 %v4140
      %v4276 = vunpack.c.l.b16 %v4141
      %v4277 = vunpack.c.l.b16 %v4142
      %v4278 = vunpack.c.l.b16 %v4143
      %v4279 = vunpack.c.l.b16 %v4144
      %v4280 = vunpack.c.l.b16 %v4145
      %v4281 = vunpack.c.l.b16 %v4146
      %v4282 = vunpack.c.l.b16 %v4147
      %v4283 = vunpack.c.l.b16 %v4148
      %v4284 = vpack.c.b16 %v4221, %v4220
      %v4285 = vpack.c.b16 %v4223, %v4222
      %v4286 = vpack.c.b16 %v4225, %v4224
      %v4287 = vpack.c.b16 %v4227, %v4226
      %v4288 = vpack.c.b16 %v4229, %v4228
      %v4289 = vpack.c.b16 %v4231, %v4230
      %v4290 = vpack.c.b16 %v4233, %v4232
      %v4291 = vpack.c.b16 %v4235, %v4234
      %v4292 = vpack.c.b16 %v4237, %v4236
      %v4293 = vpack.c.b16 %v4239, %v4238
      %v4294 = vpack.c.b16 %v4241, %v4240
      %v4295 = vpack.c.b16 %v4243, %v4242
      %v4296 = vpack.c.b16 %v4245, %v4244
      %v4297 = vpack.c.b16 %v4247, %v4246
      %v4298 = vpack.c.b16 %v4249, %v4248
      %v4299 = vpack.c.b16 %v4251, %v4250
      %v4300 = vpack.c.b16 %v4253, %v4252
      %v4301 = vpack.c.b16 %v4255, %v4254
      %v4302 = vpack.c.b16 %v4257, %v4256
      %v4303 = vpack.c.b16 %v4259, %v4258
      %v4304 = vpack.c.b16 %v4261, %v4260
      %v4305 = vpack.c.b16 %v4263, %v4262
      %v4306 = vpack.c.b16 %v4265, %v4264
      %v4307 = vpack.c.b16 %v4267, %v4266
      %v4308 = vpack.c.b16 %v4269, %v4268
      %v4309 = vpack.c.b16 %v4271, %v4270
      %v4310 = vpack.c.b16 %v4273, %v4272
      %v4311 = vpack.c.b16 %v4275, %v4274
      %v4312 = vpack.c.b16 %v4277, %v4276
      %v4313 = vpack.c.b16 %v4279, %v4278
      %v4314 = vpack.c.b16 %v4281, %v4280
      %v4315 = vpack.c.b16 %v4283, %v4282
      %4348 = vmatprep.subr.bf16.mxu0 0
      %4349 = vmatpush1.bf16.msra.mxu0 %v4284
      %4350 = vmatprep.subr.bf16.mxu0 0
      %4351 = vmatpush1.bf16.msra.mxu0 %v4285
      %4352 = vmatprep.subr.bf16.mxu0 0
      %4353 = vmatpush1.bf16.msra.mxu0 %v4286
      %4354 = vmatprep.subr.bf16.mxu0 0
      %4355 = vmatpush1.bf16.msra.mxu0 %v4287
      %4356 = vmatprep.subr.bf16.mxu0 0
      %4357 = vmatpush1.bf16.msra.mxu0 %v4288
      %4358 = vmatprep.subr.bf16.mxu0 0
      %4359 = vmatpush1.bf16.msra.mxu0 %v4289
      %4360 = vmatprep.subr.bf16.mxu0 0
      %4361 = vmatpush1.bf16.msra.mxu0 %v4290
      %4362 = vmatprep.subr.bf16.mxu0 0
      %4363 = vmatpush1.bf16.msra.mxu0 %v4291
      %4364 = vmatprep.subr.bf16.mxu0 0
      %4365 = vmatpush1.bf16.msra.mxu0 %v4292
      %4366 = vmatprep.subr.bf16.mxu0 0
      %4367 = vmatpush1.bf16.msra.mxu0 %v4293
      %4368 = vmatprep.subr.bf16.mxu0 0
      %4369 = vmatpush1.bf16.msra.mxu0 %v4294
      %4370 = vmatprep.subr.bf16.mxu0 0
      %4371 = vmatpush1.bf16.msra.mxu0 %v4295
      %4372 = vmatprep.subr.bf16.mxu0 0
      %4373 = vmatpush1.bf16.msra.mxu0 %v4296
      %4374 = vmatprep.subr.bf16.mxu0 0
      %4375 = vmatpush1.bf16.msra.mxu0 %v4297
      %4376 = vmatprep.subr.bf16.mxu0 0
      %4377 = vmatpush1.bf16.msra.mxu0 %v4298
      %4378 = vmatprep.subr.bf16.mxu0 0
      %4379 = vmatpush1.bf16.msra.mxu0 %v4299
      %4380 = vmatprep.mubr.bf16.mxu0 %v4054
      %4381 = vmatmul.mubr.bf16.gmra.mrb[0].mxu0 %v4053
      %v4382 = vpop.f32.mrb[0].mxu0
      %v4383 = vadd.f32 %v4154, %v4382
      %v4384 = vpop.f32.mrb[0].mxu0
      %v4385 = vpop.f32.mrb[0].mxu0
      %v4386 = vadd.f32 %v4154, %v4385
      %v4387 = vpop.f32.mrb[0].mxu0
      %4388 = vmatprep.mubr.bf16.mxu0 %v4058
      %4389 = vmatmul.mubr.bf16.gmra.mrb[0].mxu0 %v4057
      %v4390 = vpop.f32.mrb[0].mxu0
      %v4391 = vadd.f32 %v4154, %v4390
      %v4392 = vpop.f32.mrb[0].mxu0
      %v4393 = vpop.f32.mrb[0].mxu0
      %v4394 = vadd.f32 %v4154, %v4393
      %v4395 = vpop.f32.mrb[0].mxu0
      %4396 = vmatprep.mubr.bf16.mxu0 %v4062
      %4397 = vmatmul.mubr.bf16.gmra.mrb[0].mxu0 %v4061
      %v4398 = vpop.f32.mrb[0].mxu0
      %v4399 = vadd.f32 %v4154, %v4398
      %v4400 = vpop.f32.mrb[0].mxu0
      %v4401 = vpop.f32.mrb[0].mxu0
      %v4402 = vadd.f32 %v4154, %v4401
      %v4403 = vpop.f32.mrb[0].mxu0
      %4404 = vmatprep.mubr.bf16.mxu0 %v4066
      %4405 = vmatmul.mubr.bf16.gmra.mrb[0].mxu0 %v4065
      %v4406 = vpop.f32.mrb[0].mxu0
      %v4407 = vadd.f32 %v4154, %v4406
      %v4408 = vpop.f32.mrb[0].mxu0
      %v4409 = vpop.f32.mrb[0].mxu0
      %v4410 = vadd.f32 %v4154, %v4409
      %v4411 = vpop.f32.mrb[0].mxu0
      %4412 = vmatprep.mubr.bf16.mxu0 %v4070
      %4413 = vmatmul.mubr.bf16.gmra.mrb[0].mxu0 %v4069
      %v4414 = vpop.f32.mrb[0].mxu0
      %v4415 = vadd.f32 %v4154, %v4414
      %v4416 = vpop.f32.mrb[0].mxu0
      %v4417 = vpop.f32.mrb[0].mxu0
      %v4418 = vadd.f32 %v4154, %v4417
      %v4419 = vpop.f32.mrb[0].mxu0
      %4420 = vmatprep.mubr.bf16.mxu0 %v4074
      %4421 = vmatmul.mubr.bf16.gmra.mrb[0].mxu0 %v4073
      %v4422 = vpop.f32.mrb[0].mxu0
      %v4423 = vadd.f32 %v4154, %v4422
      %v4424 = vpop.f32.mrb[0].mxu0
      %v4425 = vpop.f32.mrb[0].mxu0
      %v4426 = vadd.f32 %v4154, %v4425
      %v4427 = vpop.f32.mrb[0].mxu0
      %4428 = vmatprep.mubr.bf16.mxu0 %v4078
      %4429 = vmatmul.mubr.bf16.gmra.mrb[0].mxu0 %v4077
      %v4430 = vpop.f32.mrb[0].mxu0
      %v4431 = vadd.f32 %v4154, %v4430
      %v4432 = vpop.f32.mrb[0].mxu0
      %v4433 = vpop.f32.mrb[0].mxu0
      %v4434 = vadd.f32 %v4154, %v4433
      %v4435 = vpop.f32.mrb[0].mxu0
      %4436 = vmatprep.mubr.bf16.mxu0 %v4082
      %4437 = vmatmul.mubr.bf16.gmra.mrb[0].mxu0 %v4081
      %v4438 = vpop.f32.mrb[0].mxu0
      %v4439 = vadd.f32 %v4154, %v4438
      %v4440 = vpop.f32.mrb[0].mxu0
      %v4441 = vpop.f32.mrb[0].mxu0
      %v4442 = vadd.f32 %v4154, %v4441
      %v4443 = vpop.f32.mrb[0].mxu0
      %4444 = vdwg.mxu0
      %4445 = vmatprep.subr.bf16.mxu0 0
      %4446 = vmatpush1.bf16.msra.mxu0 %v4300
      %4447 = vmatprep.subr.bf16.mxu0 0
      %4448 = vmatpush1.bf16.msra.mxu0 %v4301
      %4449 = vmatprep.subr.bf16.mxu0 0
      %4450 = vmatpush1.bf16.msra.mxu0 %v4302
      %4451 = vmatprep.subr.bf16.mxu0 0
      %4452 = vmatpush1.bf16.msra.mxu0 %v4303
      %4453 = vmatprep.subr.bf16.mxu0 0
      %4454 = vmatpush1.bf16.msra.mxu0 %v4304
      %4455 = vmatprep.subr.bf16.mxu0 0
      %4456 = vmatpush1.bf16.msra.mxu0 %v4305
      %4457 = vmatprep.subr.bf16.mxu0 0
      %4458 = vmatpush1.bf16.msra.mxu0 %v4306
      %4459 = vmatprep.subr.bf16.mxu0 0
      %4460 = vmatpush1.bf16.msra.mxu0 %v4307
      %4461 = vmatprep.subr.bf16.mxu0 0
      %4462 = vmatpush1.bf16.msra.mxu0 %v4308
      %4463 = vmatprep.subr.bf16.mxu0 0
      %4464 = vmatpush1.bf16.msra.mxu0 %v4309
      %4465 = vmatprep.subr.bf16.mxu0 0
      %4466 = vmatpush1.bf16.msra.mxu0 %v4310
      %4467 = vmatprep.subr.bf16.mxu0 0
      %4468 = vmatpush1.bf16.msra.mxu0 %v4311
      %4469 = vmatprep.subr.bf16.mxu0 0
      %4470 = vmatpush1.bf16.msra.mxu0 %v4312
      %4471 = vmatprep.subr.bf16.mxu0 0
      %4472 = vmatpush1.bf16.msra.mxu0 %v4313
      %4473 = vmatprep.subr.bf16.mxu0 0
      %4474 = vmatpush1.bf16.msra.mxu0 %v4314
      %4475 = vmatprep.subr.bf16.mxu0 0
      %4476 = vmatpush1.bf16.msra.mxu0 %v4315
      %4477 = vmatprep.mubr.bf16.mxu0 %v4056
      %4478 = vmatmul.mubr.bf16.gmra.mrb[0].mxu0 %v4055
      %v4479 = vpop.f32.mrb[0].mxu0
      %v4480 = vadd.f32 %v4383, %v4479
      %v4481 = vpop.f32.mrb[0].mxu0
      %v4482 = vpop.f32.mrb[0].mxu0
      %v4483 = vadd.f32 %v4386, %v4482
      %v4484 = vpop.f32.mrb[0].mxu0
      %4485 = vmatprep.mubr.bf16.mxu0 %v4060
      %4486 = vmatmul.mubr.bf16.gmra.mrb[0].mxu0 %v4059
      %v4487 = vpop.f32.mrb[0].mxu0
      %v4488 = vadd.f32 %v4391, %v4487
      %v4489 = vpop.f32.mrb[0].mxu0
      %v4490 = vpop.f32.mrb[0].mxu0
      %v4491 = vadd.f32 %v4394, %v4490
      %v4492 = vpop.f32.mrb[0].mxu0
      %4493 = vmatprep.mubr.bf16.mxu0 %v4064
      %4494 = vmatmul.mubr.bf16.gmra.mrb[0].mxu0 %v4063
      %v4495 = vpop.f32.mrb[0].mxu0
      %v4496 = vadd.f32 %v4399, %v4495
      %v4497 = vpop.f32.mrb[0].mxu0
      %v4498 = vpop.f32.mrb[0].mxu0
      %v4499 = vadd.f32 %v4402, %v4498
      %v4500 = vpop.f32.mrb[0].mxu0
      %4501 = vmatprep.mubr.bf16.mxu0 %v4068
      %4502 = vmatmul.mubr.bf16.gmra.mrb[0].mxu0 %v4067
      %v4503 = vpop.f32.mrb[0].mxu0
      %v4504 = vadd.f32 %v4407, %v4503
      %v4505 = vpop.f32.mrb[0].mxu0
      %v4506 = vpop.f32.mrb[0].mxu0
      %v4507 = vadd.f32 %v4410, %v4506
      %v4508 = vpop.f32.mrb[0].mxu0
      %4509 = vmatprep.mubr.bf16.mxu0 %v4072
      %4510 = vmatmul.mubr.bf16.gmra.mrb[0].mxu0 %v4071
      %v4511 = vpop.f32.mrb[0].mxu0
      %v4512 = vadd.f32 %v4415, %v4511
      %v4513 = vpop.f32.mrb[0].mxu0
      %v4514 = vpop.f32.mrb[0].mxu0
      %v4515 = vadd.f32 %v4418, %v4514
      %v4516 = vpop.f32.mrb[0].mxu0
      %4517 = vmatprep.mubr.bf16.mxu0 %v4076
      %4518 = vmatmul.mubr.bf16.gmra.mrb[0].mxu0 %v4075
      %v4519 = vpop.f32.mrb[0].mxu0
      %v4520 = vadd.f32 %v4423, %v4519
      %v4521 = vpop.f32.mrb[0].mxu0
      %v4522 = vpop.f32.mrb[0].mxu0
      %v4523 = vadd.f32 %v4426, %v4522
      %v4524 = vpop.f32.mrb[0].mxu0
      %4525 = vmatprep.mubr.bf16.mxu0 %v4080
      %4526 = vmatmul.mubr.bf16.gmra.mrb[0].mxu0 %v4079
      %v4527 = vpop.f32.mrb[0].mxu0
      %v4528 = vadd.f32 %v4431, %v4527
      %v4529 = vpop.f32.mrb[0].mxu0
      %v4530 = vpop.f32.mrb[0].mxu0
      %v4531 = vadd.f32 %v4434, %v4530
      %v4532 = vpop.f32.mrb[0].mxu0
      %4533 = vmatprep.mubr.bf16.mxu0 %v4084
      %4534 = vmatmul.mubr.bf16.gmra.mrb[0].mxu0 %v4083
      %v4535 = vpop.f32.mrb[0].mxu0
      %v4536 = vadd.f32 %v4439, %v4535
      %v4537 = vpop.f32.mrb[0].mxu0
      %v4538 = vpop.f32.mrb[0].mxu0
      %v4539 = vadd.f32 %v4442, %v4538
      %v4540 = vpop.f32.mrb[0].mxu0
      %4541 = vdwg.mxu0
      %v4542 = vadd.f32 %v2823, %v4480
      %v4543 = vadd.f32 %v2824, %v4483
      %v4544 = vadd.f32 %v2825, %v4488
      %v4545 = vadd.f32 %v2826, %v4491
      %v4546 = vadd.f32 %v2827, %v4496
      %v4547 = vadd.f32 %v2828, %v4499
      %v4548 = vadd.f32 %v2829, %v4504
      %v4549 = vadd.f32 %v2830, %v4507
      %v4550 = vadd.f32 %v2831, %v4512
      %v4551 = vadd.f32 %v2832, %v4515
      %v4552 = vadd.f32 %v2833, %v4520
      %v4553 = vadd.f32 %v2834, %v4523
      %v4554 = vadd.f32 %v2835, %v4528
      %v4555 = vadd.f32 %v2836, %v4531
      %v4556 = vadd.f32 %v2837, %v4536
      %v4557 = vadd.f32 %v2838, %v4539
      %4558 = vst [vmem:[#allocation2] sm:$0xff] %v4542
      %4559 = vst [vmem:[#allocation2 + $0x8] sm:$0xff] %v4543
      %4560 = vst [vmem:[#allocation2 + $0x10] sm:$0xff] %v4544
      %4561 = vst [vmem:[#allocation2 + $0x18] sm:$0xff] %v4545
      %4562 = vst [vmem:[#allocation2 + $0x20] sm:$0xff] %v4546
      %4563 = vst [vmem:[#allocation2 + $0x28] sm:$0xff] %v4547
      %4564 = vst [vmem:[#allocation2 + $0x30] sm:$0xff] %v4548
      %4565 = vst [vmem:[#allocation2 + $0x38] sm:$0xff] %v4549
      %4566 = vst [vmem:[#allocation2 + $0x40] sm:$0xff] %v4550
      %4567 = vst [vmem:[#allocation2 + $0x48] sm:$0xff] %v4551
      %4568 = vst [vmem:[#allocation2 + $0x50] sm:$0xff] %v4552
      %4569 = vst [vmem:[#allocation2 + $0x58] sm:$0xff] %v4553
      %4570 = vst [vmem:[#allocation2 + $0x60] sm:$0xff] %v4554
      %4571 = vst [vmem:[#allocation2 + $0x68] sm:$0xff] %v4555
      %4572 = vst [vmem:[#allocation2 + $0x70] sm:$0xff] %v4556
      %4573 = vst [vmem:[#allocation2 + $0x78] sm:$0xff] %v4557
      // Predicated region
      $region93: #{_clip_forward_all.1} parent=87 // pred_check
        %p4574 = pneg %p851
      $region94: #{_clip_forward_all.1} parent=87 // pred_check_branch
        %4576 = sbr.rel (%p4574) target = $region96
      $region95: #{_clip_forward_all.1} parent=87 // pred_region
        %v4577 = vld [vmem:[%s15] sm:$0x1]
        %v4578 = vld [vmem:[%s16] sm:$0x1]
        %4579 = vadd.xlane.f32.xlu0 %v4542
        %v4580 = vpop.xlane.xlu0 %4579
        %4581 = vadd.xlane.f32.xlu0 %v4543
        %v4582 = vpop.xlane.xlu0 %4581
        %4583 = vadd.xlane.f32.xlu0 %v4544
        %v4584 = vpop.xlane.xlu0 %4583
        %4585 = vadd.xlane.f32.xlu0 %v4545
        %v4586 = vpop.xlane.xlu0 %4585
        %4587 = vadd.xlane.f32.xlu0 %v4546
        %v4588 = vpop.xlane.xlu0 %4587
        %4589 = vadd.xlane.f32.xlu0 %v4547
        %v4590 = vpop.xlane.xlu0 %4589
        %4591 = vadd.xlane.f32.xlu0 %v4548
        %v4592 = vpop.xlane.xlu0 %4591
        %4593 = vadd.xlane.f32.xlu0 %v4549
        %v4594 = vpop.xlane.xlu0 %4593
        %4595 = vadd.xlane.f32.xlu0 %v4550
        %v4596 = vpop.xlane.xlu0 %4595
        %4597 = vadd.xlane.f32.xlu0 %v4551
        %v4598 = vpop.xlane.xlu0 %4597
        %4599 = vadd.xlane.f32.xlu0 %v4552
        %v4600 = vpop.xlane.xlu0 %4599
        %4601 = vadd.xlane.f32.xlu0 %v4553
        %v4602 = vpop.xlane.xlu0 %4601
        %4603 = vadd.xlane.f32.xlu0 %v4554
        %v4604 = vpop.xlane.xlu0 %4603
        %4605 = vadd.xlane.f32.xlu0 %v4555
        %v4606 = vpop.xlane.xlu0 %4605
        %4607 = vadd.xlane.f32.xlu0 %v4556
        %v4608 = vpop.xlane.xlu0 %4607
        %4609 = vadd.xlane.f32.xlu0 %v4557
        %v4610 = vpop.xlane.xlu0 %4609
        %v4611 = vmul.f32 %v4580, %v953
        %v4612 = vmul.f32 %v4582, %v953
        %v4613 = vmul.f32 %v4584, %v953
        %v4614 = vmul.f32 %v4586, %v953
        %v4615 = vmul.f32 %v4588, %v953
        %v4616 = vmul.f32 %v4590, %v953
        %v4617 = vmul.f32 %v4592, %v953
        %v4618 = vmul.f32 %v4594, %v953
        %v4619 = vmul.f32 %v4596, %v953
        %v4620 = vmul.f32 %v4598, %v953
        %v4621 = vmul.f32 %v4600, %v953
        %v4622 = vmul.f32 %v4602, %v953
        %v4623 = vmul.f32 %v4604, %v953
        %v4624 = vmul.f32 %v4606, %v953
        %v4625 = vmul.f32 %v4608, %v953
        %v4626 = vmul.f32 %v4610, %v953
        %v4627 = vmul.f32 %v4542, %v4542
        %v4628 = vmul.f32 %v4543, %v4543
        %v4629 = vmul.f32 %v4544, %v4544
        %v4630 = vmul.f32 %v4545, %v4545
        %v4631 = vmul.f32 %v4546, %v4546
        %v4632 = vmul.f32 %v4547, %v4547
        %v4633 = vmul.f32 %v4548, %v4548
        %v4634 = vmul.f32 %v4549, %v4549
        %v4635 = vmul.f32 %v4550, %v4550
        %v4636 = vmul.f32 %v4551, %v4551
        %v4637 = vmul.f32 %v4552, %v4552
        %v4638 = vmul.f32 %v4553, %v4553
        %v4639 = vmul.f32 %v4554, %v4554
        %v4640 = vmul.f32 %v4555, %v4555
        %v4641 = vmul.f32 %v4556, %v4556
        %v4642 = vmul.f32 %v4557, %v4557
        %4643 = vadd.xlane.f32.xlu0 %v4627
        %v4644 = vpop.xlane.xlu0 %4643
        %4645 = vadd.xlane.f32.xlu0 %v4628
        %v4646 = vpop.xlane.xlu0 %4645
        %4647 = vadd.xlane.f32.xlu0 %v4629
        %v4648 = vpop.xlane.xlu0 %4647
        %4649 = vadd.xlane.f32.xlu0 %v4630
        %v4650 = vpop.xlane.xlu0 %4649
        %4651 = vadd.xlane.f32.xlu0 %v4631
        %v4652 = vpop.xlane.xlu0 %4651
        %4653 = vadd.xlane.f32.xlu0 %v4632
        %v4654 = vpop.xlane.xlu0 %4653
        %4655 = vadd.xlane.f32.xlu0 %v4633
        %v4656 = vpop.xlane.xlu0 %4655
        %4657 = vadd.xlane.f32.xlu0 %v4634
        %v4658 = vpop.xlane.xlu0 %4657
        %4659 = vadd.xlane.f32.xlu0 %v4635
        %v4660 = vpop.xlane.xlu0 %4659
        %4661 = vadd.xlane.f32.xlu0 %v4636
        %v4662 = vpop.xlane.xlu0 %4661
        %4663 = vadd.xlane.f32.xlu0 %v4637
        %v4664 = vpop.xlane.xlu0 %4663
        %4665 = vadd.xlane.f32.xlu0 %v4638
        %v4666 = vpop.xlane.xlu0 %4665
        %4667 = vadd.xlane.f32.xlu0 %v4639
        %v4668 = vpop.xlane.xlu0 %4667
        %4669 = vadd.xlane.f32.xlu0 %v4640
        %v4670 = vpop.xlane.xlu0 %4669
        %4671 = vadd.xlane.f32.xlu0 %v4641
        %v4672 = vpop.xlane.xlu0 %4671
        %4673 = vadd.xlane.f32.xlu0 %v4642
        %v4674 = vpop.xlane.xlu0 %4673
        %v4675 = vmul.f32 %v4644, %v953
        %v4676 = vmul.f32 %v4646, %v953
        %v4677 = vmul.f32 %v4648, %v953
        %v4678 = vmul.f32 %v4650, %v953
        %v4679 = vmul.f32 %v4652, %v953
        %v4680 = vmul.f32 %v4654, %v953
        %v4681 = vmul.f32 %v4656, %v953
        %v4682 = vmul.f32 %v4658, %v953
        %v4683 = vmul.f32 %v4660, %v953
        %v4684 = vmul.f32 %v4662, %v953
        %v4685 = vmul.f32 %v4664, %v953
        %v4686 = vmul.f32 %v4666, %v953
        %v4687 = vmul.f32 %v4668, %v953
        %v4688 = vmul.f32 %v4670, %v953
        %v4689 = vmul.f32 %v4672, %v953
        %v4690 = vmul.f32 %v4674, %v953
        %v4691 = vmul.f32 %v4611, %v4611
        %v4692 = vmul.f32 %v4612, %v4612
        %v4693 = vmul.f32 %v4613, %v4613
        %v4694 = vmul.f32 %v4614, %v4614
        %v4695 = vmul.f32 %v4615, %v4615
        %v4696 = vmul.f32 %v4616, %v4616
        %v4697 = vmul.f32 %v4617, %v4617
        %v4698 = vmul.f32 %v4618, %v4618
        %v4699 = vmul.f32 %v4619, %v4619
        %v4700 = vmul.f32 %v4620, %v4620
        %v4701 = vmul.f32 %v4621, %v4621
        %v4702 = vmul.f32 %v4622, %v4622
        %v4703 = vmul.f32 %v4623, %v4623
        %v4704 = vmul.f32 %v4624, %v4624
        %v4705 = vmul.f32 %v4625, %v4625
        %v4706 = vmul.f32 %v4626, %v4626
        %v4707 = vsub.f32 %v4675, %v4691
        %v4708 = vsub.f32 %v4676, %v4692
        %v4709 = vsub.f32 %v4677, %v4693
        %v4710 = vsub.f32 %v4678, %v4694
        %v4711 = vsub.f32 %v4679, %v4695
        %v4712 = vsub.f32 %v4680, %v4696
        %v4713 = vsub.f32 %v4681, %v4697
        %v4714 = vsub.f32 %v4682, %v4698
        %v4715 = vsub.f32 %v4683, %v4699
        %v4716 = vsub.f32 %v4684, %v4700
        %v4717 = vsub.f32 %v4685, %v4701
        %v4718 = vsub.f32 %v4686, %v4702
        %v4719 = vsub.f32 %v4687, %v4703
        %v4720 = vsub.f32 %v4688, %v4704
        %v4721 = vsub.f32 %v4689, %v4705
        %v4722 = vsub.f32 %v4690, %v4706
        %v4723 = vsub.f32 %v4542, %v4611
        %v4724 = vsub.f32 %v4543, %v4612
        %v4725 = vsub.f32 %v4544, %v4613
        %v4726 = vsub.f32 %v4545, %v4614
        %v4727 = vsub.f32 %v4546, %v4615
        %v4728 = vsub.f32 %v4547, %v4616
        %v4729 = vsub.f32 %v4548, %v4617
        %v4730 = vsub.f32 %v4549, %v4618
        %v4731 = vsub.f32 %v4550, %v4619
        %v4732 = vsub.f32 %v4551, %v4620
        %v4733 = vsub.f32 %v4552, %v4621
        %v4734 = vsub.f32 %v4553, %v4622
        %v4735 = vsub.f32 %v4554, %v4623
        %v4736 = vsub.f32 %v4555, %v4624
        %v4737 = vsub.f32 %v4556, %v4625
        %v4738 = vsub.f32 %v4557, %v4626
        %v4739 = vadd.f32 %v4707, 1e-05
        %v4740 = vadd.f32 %v4708, 1e-05
        %v4741 = vadd.f32 %v4709, 1e-05
        %v4742 = vadd.f32 %v4710, 1e-05
        %v4743 = vadd.f32 %v4711, 1e-05
        %v4744 = vadd.f32 %v4712, 1e-05
        %v4745 = vadd.f32 %v4713, 1e-05
        %v4746 = vadd.f32 %v4714, 1e-05
        %v4747 = vadd.f32 %v4715, 1e-05
        %v4748 = vadd.f32 %v4716, 1e-05
        %v4749 = vadd.f32 %v4717, 1e-05
        %v4750 = vadd.f32 %v4718, 1e-05
        %v4751 = vadd.f32 %v4719, 1e-05
        %v4752 = vadd.f32 %v4720, 1e-05
        %v4753 = vadd.f32 %v4721, 1e-05
        %v4754 = vadd.f32 %v4722, 1e-05
        %v4755 = vrsqrt.pop %v4739
        %v4756 = vrsqrt.pop %v4740
        %v4757 = vrsqrt.pop %v4741
        %v4758 = vrsqrt.pop %v4742
        %v4759 = vrsqrt.pop %v4743
        %v4760 = vrsqrt.pop %v4744
        %v4761 = vrsqrt.pop %v4745
        %v4762 = vrsqrt.pop %v4746
        %v4763 = vrsqrt.pop %v4747
        %v4764 = vrsqrt.pop %v4748
        %v4765 = vrsqrt.pop %v4749
        %v4766 = vrsqrt.pop %v4750
        %v4767 = vrsqrt.pop %v4751
        %v4768 = vrsqrt.pop %v4752
        %v4769 = vrsqrt.pop %v4753
        %v4770 = vrsqrt.pop %v4754
        %v4771 = vmul.f32 %v4723, %v4755
        %v4772 = vmul.f32 %v4724, %v4756
        %v4773 = vmul.f32 %v4725, %v4757
        %v4774 = vmul.f32 %v4726, %v4758
        %v4775 = vmul.f32 %v4727, %v4759
        %v4776 = vmul.f32 %v4728, %v4760
        %v4777 = vmul.f32 %v4729, %v4761
        %v4778 = vmul.f32 %v4730, %v4762
        %v4779 = vmul.f32 %v4731, %v4763
        %v4780 = vmul.f32 %v4732, %v4764
        %v4781 = vmul.f32 %v4733, %v4765
        %v4782 = vmul.f32 %v4734, %v4766
        %v4783 = vmul.f32 %v4735, %v4767
        %v4784 = vmul.f32 %v4736, %v4768
        %v4785 = vmul.f32 %v4737, %v4769
        %v4786 = vmul.f32 %v4738, %v4770
        %v4788 = vlaneseq
        %v4789 = vshrl.u32 %v4788, 7
        %v4790 = vsub.s32 0, %v4789
        %v4791 = vrot.slane %v4577, %v4790
        %v4793 = vmul.f32 %v4771, %v4791
        %v4794 = vmul.f32 %v4772, %v4791
        %v4795 = vmul.f32 %v4773, %v4791
        %v4796 = vmul.f32 %v4774, %v4791
        %v4797 = vmul.f32 %v4775, %v4791
        %v4798 = vmul.f32 %v4776, %v4791
        %v4799 = vmul.f32 %v4777, %v4791
        %v4800 = vmul.f32 %v4778, %v4791
        %v4801 = vmul.f32 %v4779, %v4791
        %v4802 = vmul.f32 %v4780, %v4791
        %v4803 = vmul.f32 %v4781, %v4791
        %v4804 = vmul.f32 %v4782, %v4791
        %v4805 = vmul.f32 %v4783, %v4791
        %v4806 = vmul.f32 %v4784, %v4791
        %v4807 = vmul.f32 %v4785, %v4791
        %v4808 = vmul.f32 %v4786, %v4791
        %v4810 = vlaneseq
        %v4811 = vshrl.u32 %v4810, 7
        %v4812 = vsub.s32 0, %v4811
        %v4813 = vrot.slane %v4578, %v4812
        %v4815 = vadd.f32 %v4793, %v4813
        %v4816 = vadd.f32 %v4794, %v4813
        %v4817 = vadd.f32 %v4795, %v4813
        %v4818 = vadd.f32 %v4796, %v4813
        %v4819 = vadd.f32 %v4797, %v4813
        %v4820 = vadd.f32 %v4798, %v4813
        %v4821 = vadd.f32 %v4799, %v4813
        %v4822 = vadd.f32 %v4800, %v4813
        %v4823 = vadd.f32 %v4801, %v4813
        %v4824 = vadd.f32 %v4802, %v4813
        %v4825 = vadd.f32 %v4803, %v4813
        %v4826 = vadd.f32 %v4804, %v4813
        %v4827 = vadd.f32 %v4805, %v4813
        %v4828 = vadd.f32 %v4806, %v4813
        %v4829 = vadd.f32 %v4807, %v4813
        %v4830 = vadd.f32 %v4808, %v4813
        %v4831 = vld [vmem:[%s792] sm:$0xff]
        %v4832 = vld [vmem:[%s792 + $0x8] sm:$0xff]
        %v4833 = vld [vmem:[%s792 + $0x10] sm:$0xff]
        %v4834 = vld [vmem:[%s792 + $0x18] sm:$0xff]
        %v4835 = vld [vmem:[%s792 + $0x20] sm:$0xff]
        %v4836 = vld [vmem:[%s792 + $0x28] sm:$0xff]
        %v4837 = vld [vmem:[%s792 + $0x30] sm:$0xff]
        %v4838 = vld [vmem:[%s792 + $0x38] sm:$0xff]
        %v4839 = vld [vmem:[%s792 + $0x40] sm:$0xff]
        %v4840 = vld [vmem:[%s792 + $0x48] sm:$0xff]
        %v4841 = vld [vmem:[%s792 + $0x50] sm:$0xff]
        %v4842 = vld [vmem:[%s792 + $0x58] sm:$0xff]
        %v4843 = vld [vmem:[%s792 + $0x60] sm:$0xff]
        %v4844 = vld [vmem:[%s792 + $0x68] sm:$0xff]
        %v4845 = vld [vmem:[%s792 + $0x70] sm:$0xff]
        %v4846 = vld [vmem:[%s792 + $0x78] sm:$0xff]
        %4848 = vset.pattern.permute.xlu0 0
        %4849 = vperm.xlu0 %4848, %v4831
        %v4850 = vpop.permute.xlu0 %4849
        %4853 = vset.pattern.permute.xlu0 0
        %4854 = vperm.xlu0 %4853, %v4832
        %v4855 = vpop.permute.xlu0 %4854
        %4858 = vset.pattern.permute.xlu0 0
        %4859 = vperm.xlu0 %4858, %v4833
        %v4860 = vpop.permute.xlu0 %4859
        %4863 = vset.pattern.permute.xlu0 0
        %4864 = vperm.xlu0 %4863, %v4834
        %v4865 = vpop.permute.xlu0 %4864
        %4868 = vset.pattern.permute.xlu0 0
        %4869 = vperm.xlu0 %4868, %v4835
        %v4870 = vpop.permute.xlu0 %4869
        %4873 = vset.pattern.permute.xlu0 0
        %4874 = vperm.xlu0 %4873, %v4836
        %v4875 = vpop.permute.xlu0 %4874
        %4878 = vset.pattern.permute.xlu0 0
        %4879 = vperm.xlu0 %4878, %v4837
        %v4880 = vpop.permute.xlu0 %4879
        %4883 = vset.pattern.permute.xlu0 0
        %4884 = vperm.xlu0 %4883, %v4838
        %v4885 = vpop.permute.xlu0 %4884
        %4888 = vset.pattern.permute.xlu0 0
        %4889 = vperm.xlu0 %4888, %v4839
        %v4890 = vpop.permute.xlu0 %4889
        %4893 = vset.pattern.permute.xlu0 0
        %4894 = vperm.xlu0 %4893, %v4840
        %v4895 = vpop.permute.xlu0 %4894
        %4898 = vset.pattern.permute.xlu0 0
        %4899 = vperm.xlu0 %4898, %v4841
        %v4900 = vpop.permute.xlu0 %4899
        %4903 = vset.pattern.permute.xlu0 0
        %4904 = vperm.xlu0 %4903, %v4842
        %v4905 = vpop.permute.xlu0 %4904
        %4908 = vset.pattern.permute.xlu0 0
        %4909 = vperm.xlu0 %4908, %v4843
        %v4910 = vpop.permute.xlu0 %4909
        %4913 = vset.pattern.permute.xlu0 0
        %4914 = vperm.xlu0 %4913, %v4844
        %v4915 = vpop.permute.xlu0 %4914
        %4918 = vset.pattern.permute.xlu0 0
        %4919 = vperm.xlu0 %4918, %v4845
        %v4920 = vpop.permute.xlu0 %4919
        %4923 = vset.pattern.permute.xlu0 0
        %4924 = vperm.xlu0 %4923, %v4846
        %v4925 = vpop.permute.xlu0 %4924
        %v4927 = vmul.f32 %v4815, %v4850
        %v4928 = vmul.f32 %v4816, %v4855
        %v4929 = vmul.f32 %v4817, %v4860
        %v4930 = vmul.f32 %v4818, %v4865
        %v4931 = vmul.f32 %v4819, %v4870
        %v4932 = vmul.f32 %v4820, %v4875
        %v4933 = vmul.f32 %v4821, %v4880
        %v4934 = vmul.f32 %v4822, %v4885
        %v4935 = vmul.f32 %v4823, %v4890
        %v4936 = vmul.f32 %v4824, %v4895
        %v4937 = vmul.f32 %v4825, %v4900
        %v4938 = vmul.f32 %v4826, %v4905
        %v4939 = vmul.f32 %v4827, %v4910
        %v4940 = vmul.f32 %v4828, %v4915
        %v4941 = vmul.f32 %v4829, %v4920
        %v4942 = vmul.f32 %v4830, %v4925
        %4943 = vst [vmem:[%s843] sm:$0xff] %v4927
        %4944 = vst [vmem:[%s843 + $0x8] sm:$0xff] %v4928
        %4945 = vst [vmem:[%s843 + $0x10] sm:$0xff] %v4929
        %4946 = vst [vmem:[%s843 + $0x18] sm:$0xff] %v4930
        %4947 = vst [vmem:[%s843 + $0x20] sm:$0xff] %v4931
        %4948 = vst [vmem:[%s843 + $0x28] sm:$0xff] %v4932
        %4949 = vst [vmem:[%s843 + $0x30] sm:$0xff] %v4933
        %4950 = vst [vmem:[%s843 + $0x38] sm:$0xff] %v4934
        %4951 = vst [vmem:[%s843 + $0x40] sm:$0xff] %v4935
        %4952 = vst [vmem:[%s843 + $0x48] sm:$0xff] %v4936
        %4953 = vst [vmem:[%s843 + $0x50] sm:$0xff] %v4937
        %4954 = vst [vmem:[%s843 + $0x58] sm:$0xff] %v4938
        %4955 = vst [vmem:[%s843 + $0x60] sm:$0xff] %v4939
        %4956 = vst [vmem:[%s843 + $0x68] sm:$0xff] %v4940
        %4957 = vst [vmem:[%s843 + $0x70] sm:$0xff] %v4941
        %4958 = vst [vmem:[%s843 + $0x78] sm:$0xff] %v4942
        %v4959 = vlaneseq
        %v4960 = vshrl.u32 %v4959, 7
        %v4961 = vadd.s32 %v4960, 8
        %v4962 = vadd.s32 %v4960, 16
        %v4963 = vadd.s32 %v4960, 24
        %v4964 = vadd.s32 %v4960, 32
        %v4965 = vadd.s32 %v4960, 40
        %v4966 = vadd.s32 %v4960, 48
        %v4967 = vadd.s32 %v4960, 56
        %v4968 = vadd.s32 %v4960, 64
        %v4969 = vadd.s32 %v4960, 72
        %v4970 = vadd.s32 %v4960, 80
        %v4971 = vadd.s32 %v4960, 88
        %v4972 = vadd.s32 %v4960, 96
        %v4973 = vadd.s32 %v4960, 104
        %v4974 = vadd.s32 %v4960, 112
        %v4975 = vadd.s32 %v4960, 120
        %vm4976 = vcmp.lt.s32.totalorder %v4960, 77
        %vm4977 = vcmp.lt.s32.totalorder %v4961, 77
        %vm4978 = vcmp.lt.s32.totalorder %v4962, 77
        %vm4979 = vcmp.lt.s32.totalorder %v4963, 77
        %vm4980 = vcmp.lt.s32.totalorder %v4964, 77
        %vm4981 = vcmp.lt.s32.totalorder %v4965, 77
        %vm4982 = vcmp.lt.s32.totalorder %v4966, 77
        %vm4983 = vcmp.lt.s32.totalorder %v4967, 77
        %vm4984 = vcmp.lt.s32.totalorder %v4968, 77
        %vm4985 = vcmp.lt.s32.totalorder %v4969, 77
        %vm4986 = vcmp.lt.s32.totalorder %v4970, 77
        %vm4987 = vcmp.lt.s32.totalorder %v4971, 77
        %vm4988 = vcmp.lt.s32.totalorder %v4972, 77
        %vm4989 = vcmp.lt.s32.totalorder %v4973, 77
        %vm4990 = vcmp.lt.s32.totalorder %v4974, 77
        %vm4991 = vcmp.lt.s32.totalorder %v4975, 77
        %v4992 = vsel %vm4976, 1, 0
        %v4993 = vsel %vm4977, 1, 0
        %v4994 = vsel %vm4978, 1, 0
        %v4995 = vsel %vm4979, 1, 0
        %v4996 = vsel %vm4980, 1, 0
        %v4997 = vsel %vm4981, 1, 0
        %v4998 = vsel %vm4982, 1, 0
        %v4999 = vsel %vm4983, 1, 0
        %v5000 = vsel %vm4984, 1, 0
        %v5001 = vsel %vm4985, 1, 0
        %v5002 = vsel %vm4986, 1, 0
        %v5003 = vsel %vm4987, 1, 0
        %v5004 = vsel %vm4988, 1, 0
        %v5005 = vsel %vm4989, 1, 0
        %v5006 = vsel %vm4990, 1, 0
        %v5007 = vsel %vm4991, 1, 0
        %v5008 = vcvt.s32.f32 %v4992
        %v5009 = vcvt.s32.f32 %v4993
        %v5010 = vcvt.s32.f32 %v4994
        %v5011 = vcvt.s32.f32 %v4995
        %v5012 = vcvt.s32.f32 %v4996
        %v5013 = vcvt.s32.f32 %v4997
        %v5014 = vcvt.s32.f32 %v4998
        %v5015 = vcvt.s32.f32 %v4999
        %v5016 = vcvt.s32.f32 %v5000
        %v5017 = vcvt.s32.f32 %v5001
        %v5018 = vcvt.s32.f32 %v5002
        %v5019 = vcvt.s32.f32 %v5003
        %v5020 = vcvt.s32.f32 %v5004
        %v5021 = vcvt.s32.f32 %v5005
        %v5022 = vcvt.s32.f32 %v5006
        %v5023 = vcvt.s32.f32 %v5007
        %v5024 = vmul.f32 %v4815, %v5008
        %v5025 = vmul.f32 %v4816, %v5009
        %v5026 = vmul.f32 %v4817, %v5010
        %v5027 = vmul.f32 %v4818, %v5011
        %v5028 = vmul.f32 %v4819, %v5012
        %v5029 = vmul.f32 %v4820, %v5013
        %v5030 = vmul.f32 %v4821, %v5014
        %v5031 = vmul.f32 %v4822, %v5015
        %v5032 = vmul.f32 %v4823, %v5016
        %v5033 = vmul.f32 %v4824, %v5017
        %v5034 = vmul.f32 %v4825, %v5018
        %v5035 = vmul.f32 %v4826, %v5019
        %v5036 = vmul.f32 %v4827, %v5020
        %v5037 = vmul.f32 %v4828, %v5021
        %v5038 = vmul.f32 %v4829, %v5022
        %v5039 = vmul.f32 %v4830, %v5023
        %v5040 = vadd.f32 %v5024, %v5025
        %v5041 = vadd.f32 %v5040, %v5026
        %v5042 = vadd.f32 %v5041, %v5027
        %v5043 = vadd.f32 %v5042, %v5028
        %v5044 = vadd.f32 %v5043, %v5029
        %v5045 = vadd.f32 %v5044, %v5030
        %v5046 = vadd.f32 %v5045, %v5031
        %v5047 = vadd.f32 %v5046, %v5032
        %v5048 = vadd.f32 %v5047, %v5033
        %v5049 = vadd.f32 %v5048, %v5034
        %v5050 = vadd.f32 %v5049, %v5035
        %v5051 = vadd.f32 %v5050, %v5036
        %v5052 = vadd.f32 %v5051, %v5037
        %v5053 = vadd.f32 %v5052, %v5038
        %v5054 = vadd.f32 %v5053, %v5039
        %v5055 = vrot.slane %v5054, 4
        %v5056 = vadd.f32 %v5054, %v5055
        %v5057 = vrot.slane %v5056, 2
        %v5058 = vadd.f32 %v5056, %v5057
        %v5059 = vrot.slane %v5058, 1
        %v5060 = vadd.f32 %v5058, %v5059
        %5061 = vst [vmem:[%s846] sm:$0x1] %v5060
        %v5062 = vmul.f32 %v4927, %v5008
        %v5063 = vmul.f32 %v4928, %v5009
        %v5064 = vmul.f32 %v4929, %v5010
        %v5065 = vmul.f32 %v4930, %v5011
        %v5066 = vmul.f32 %v4931, %v5012
        %v5067 = vmul.f32 %v4932, %v5013
        %v5068 = vmul.f32 %v4933, %v5014
        %v5069 = vmul.f32 %v4934, %v5015
        %v5070 = vmul.f32 %v4935, %v5016
        %v5071 = vmul.f32 %v4936, %v5017
        %v5072 = vmul.f32 %v4937, %v5018
        %v5073 = vmul.f32 %v4938, %v5019
        %v5074 = vmul.f32 %v4939, %v5020
        %v5075 = vmul.f32 %v4940, %v5021
        %v5076 = vmul.f32 %v4941, %v5022
        %v5077 = vmul.f32 %v4942, %v5023
        %v5078 = vadd.f32 %v5062, %v5063
        %v5079 = vadd.f32 %v5078, %v5064
        %v5080 = vadd.f32 %v5079, %v5065
        %v5081 = vadd.f32 %v5080, %v5066
        %v5082 = vadd.f32 %v5081, %v5067
        %v5083 = vadd.f32 %v5082, %v5068
        %v5084 = vadd.f32 %v5083, %v5069
        %v5085 = vadd.f32 %v5084, %v5070
        %v5086 = vadd.f32 %v5085, %v5071
        %v5087 = vadd.f32 %v5086, %v5072
        %v5088 = vadd.f32 %v5087, %v5073
        %v5089 = vadd.f32 %v5088, %v5074
        %v5090 = vadd.f32 %v5089, %v5075
        %v5091 = vadd.f32 %v5090, %v5076
        %v5092 = vadd.f32 %v5091, %v5077
        %v5093 = vrot.slane %v5092, 4
        %v5094 = vadd.f32 %v5092, %v5093
        %v5095 = vrot.slane %v5094, 2
        %v5096 = vadd.f32 %v5094, %v5095
        %v5097 = vrot.slane %v5096, 1
        %v5098 = vadd.f32 %v5096, %v5097
        %5099 = vst [vmem:[%s849] sm:$0x1] %v5098
      $region96: #{_clip_forward_all.1} parent=87 // pred_fallthru
        _
      %p5100 = scmp.lt.s32.totalorder %s35, 1
      %s5101 = scalar_select %p5100, %s35, 1
      %s5102 = smul.addr %s5101, 16
      %s5103 = smul.addr %s5102, 8
      %s5104 = scalar_lea.vmem %s17, %s5103
      %p5105 = scmp.lt.s32.totalorder %s35, 1
      %s5106 = scalar_select %p5105, %s35, 1
      %s5107 = scalar_lea.vmem %s18, %s5106
      %p5108 = scmp.lt.s32.totalorder %s35, 1
      %s5109 = scalar_select %p5108, %s35, 1
      %s5110 = scalar_lea.vmem %s19, %s5109
      // Predicated region
      $region97: #{_clip_forward_all.1} parent=87 // pred_check
        %p5111 = pneg %p488
      $region98: #{_clip_forward_all.1} parent=87 // pred_check_branch
        %5113 = sbr.rel (%p5111) target = $region100
      $region99: #{_clip_forward_all.1} parent=87 // pred_region
        _
      $region100: #{_clip_forward_all.1} parent=87 // pred_fallthru
        _
      // Predicated region
      $region101: #{_clip_forward_all.1} parent=87 // pred_check
        %p5114 = pneg %p514
      $region102: #{_clip_forward_all.1} parent=87 // pred_check_branch
        %5116 = sbr.rel (%p5114) target = $region104
      $region103: #{_clip_forward_all.1} parent=87 // pred_region
        _
      $region104: #{_clip_forward_all.1} parent=87 // pred_fallthru
        _
      // Predicated region
      $region105: #{_clip_forward_all.1} parent=87 // pred_check
        %p5117 = pneg %p540
      $region106: #{_clip_forward_all.1} parent=87 // pred_check_branch
        %5119 = sbr.rel (%p5117) target = $region108
      $region107: #{_clip_forward_all.1} parent=87 // pred_region
        _
      $region108: #{_clip_forward_all.1} parent=87 // pred_fallthru
        _
    $region88: #{_clip_forward_all.1} parent=5 // pred_fallthru
      _
    %p5120 = scmp.le.s32.totalorder 2, %s26
    // Predicated region
    $region109: #{_clip_forward_all.1} parent=5 // pred_check
      %p5121 = pneg %p5120
    $region110: #{_clip_forward_all.1} parent=5 // pred_check_branch
      %5123 = sbr.rel (%p5121) target = $region112
    $region111: #{_clip_forward_all.1} parent=5 // pred_region
      %s5124 = ssub.s32 %s26, 2
      // Predicated region
      $region113: #{_clip_forward_all.1} parent=111 // pred_check
        %p5125 = pneg %p494
      $region114: #{_clip_forward_all.1} parent=111 // pred_check_branch
        %5127 = sbr.rel (%p5125) target = $region116
      $region115: #{_clip_forward_all.1} parent=111 // pred_region
        %p5128 = scmp.lt.s32.totalorder %s37, 1
        %s5129 = scalar_select %p5128, %s37, 1
        %s5130 = smul.addr %s5129, 16
        %s5131 = smul.addr %s5130, 8
        %s5132 = scalar_lea.vmem %s17, %s5131
      $region116: #{_clip_forward_all.1} parent=111 // pred_fallthru
        _
      // Predicated region
      $region117: #{_clip_forward_all.1} parent=111 // pred_check
        %p5133 = pneg %p520
      $region118: #{_clip_forward_all.1} parent=111 // pred_check_branch
        %5135 = sbr.rel (%p5133) target = $region120
      $region119: #{_clip_forward_all.1} parent=111 // pred_region
        %p5136 = scmp.lt.s32.totalorder %s37, 1
        %s5137 = scalar_select %p5136, %s37, 1
        %s5138 = scalar_lea.vmem %s18, %s5137
      $region120: #{_clip_forward_all.1} parent=111 // pred_fallthru
        _
      // Predicated region
      $region121: #{_clip_forward_all.1} parent=111 // pred_check
        %p5139 = pneg %p546
      $region122: #{_clip_forward_all.1} parent=111 // pred_check_branch
        %5141 = sbr.rel (%p5139) target = $region124
      $region123: #{_clip_forward_all.1} parent=111 // pred_region
        %p5142 = scmp.lt.s32.totalorder %s37, 1
        %s5143 = scalar_select %p5142, %s37, 1
        %s5144 = scalar_lea.vmem %s19, %s5143
      $region124: #{_clip_forward_all.1} parent=111 // pred_fallthru
        _
    $region112: #{_clip_forward_all.1} parent=5 // pred_fallthru
      _
  $region6: #{_clip_forward_all.1} parent=0 // loop_footer
    %s30 = sadd.s32 1, %s26
  $region7: #{_clip_forward_all.1} parent=0 // loop_footer_branch
    %25 = sbr.rel target = $region3
  $region8: #{_clip_forward_all.1} parent=0 // loop_exit
    _

</llo_original>
